<compile_context>
chip_gen: v7x
topology: tpu7x:2x2x1
jax: 0.10.0
libtpu: 0.0.40
codegen_flags: <defaults>
</compile_context>

<pallas_src>
import functools

import jax
import jax.numpy as jnp
from jax.experimental import pallas as pl
from jax.experimental.pallas import tpu as pltpu

C_IN = 3
GROWTH = 32
C_OUT = 2 * GROWTH               # 64 conv output channels
FEAT = C_OUT + 6 * GROWTH        # 256 = linear1.in_features (must equal W)
HID = 2
NUM_CLASSES = 5


def _cnn_kernel(x_ref, a_ref, b1_ref, alpha_ref, w2_ref, b2_ref,
                xo_ref, yo_ref, col_ref, *, H, W, B):
    # x_ref    : (B, C_IN, H+2, W+2)        bf16  spatially padded input
    # a_ref    : (9*(W+2), C_OUT*HID)       bf16  composite conv1∘linear1 weight
    # b1_ref   : (1, C_OUT*HID)             f32
    # alpha_ref: (1,)                       f32   shared PReLU slope (SMEM)
    # w2_ref   : (C_OUT*HID, C_OUT*NC)      bf16  block-diagonal linear2 weight
    # b2_ref   : (1, C_OUT*NC)              f32
    # col_ref  : (B*H, 9*(W+2))             bf16  fused-im2col scratch (VMEM)
    WP = W + 2

    # ---- fused im2col over 3-row windows.  One aligned plane load per
    #      (b, ci); the three kh row-shifts are taken on the loaded value,
    #      and the stores go straight to bf16 (no casts).  Every row/column
    #      block of col_ref is rewritten each grid step, so no zeroing and
    #      no stale-scratch hazard under "parallel" semantics.
    for b in range(B):
        r0 = b * H
        for ci in range(C_IN):
            plane = x_ref[b, ci]                          # (H+2, WP) bf16
            for kh in range(3):
                c0 = (ci * 3 + kh) * WP
                col_ref[r0:r0 + H, c0:c0 + WP] = plane[kh:kh + H, :]

    # ---- conv1 + linear1 fused into ONE bf16 MXU matmul, f32 accumulation:
    #      (B*H, 9*WP) @ (9*WP, C_OUT*HID) -> (B*H, 128)
    h1 = jnp.dot(col_ref[...], a_ref[...],
                 preferred_element_type=jnp.float32) + b1_ref[...]

    # shared-alpha PReLU
    alpha = alpha_ref[0]
    h1 = jnp.where(h1 > 0, h1, alpha * h1)                # (B*H, 128) f32

    # ---- linear2 via block-diagonal (per conv channel) weight, bf16 MXU,
    #      batched over the whole B*H chunk in one matmul.
    y = jnp.dot(h1.astype(jnp.bfloat16), w2_ref[...],
                preferred_element_type=jnp.float32) + b2_ref[...]

    # lane-dense output stores (128 and 320 lanes wide, one per step).
    xo_ref[...] = h1
    yo_ref[...] = y


def cnn_forward(x, params, *, batch_chunk=None):
    """x: (N, 3, H, 256) float32.  Returns (x_out, y_out) matching the torch module."""
    N, C, H, W = x.shape
    assert C == C_IN and W == FEAT, "module requires 3 input channels and W == 256"
    wc, w1, b1, alpha, w2, b2 = params

    if batch_chunk is None:
        target = max(1, 64 // max(H, 1))     # aim for ~64 matmul rows per step
        cands = [c for c in range(1, N + 1)
                 if N % c == 0 and c <= target
                 and ((c * H) % 8 == 0 or c == N)]
        if not cands:
            cands = [N]
        multi = [c for c in cands if N // c >= 2]   # >=2 steps: v7x megacore
        batch_chunk = max(multi) if multi else max(cands)
    B = batch_chunk
    assert N % B == 0 and ((B * H) % 8 == 0 or B == N)

    WP = W + 2
    K9 = 9 * WP

    # ---- wrapper glue: spatial halo pad only, bf16 input (halves input DMA).
    xp = jnp.pad(x.astype(jnp.bfloat16), ((0, 0), (0, 0), (1, 1), (1, 1)))

    # Composite conv1∘linear1 weight:
    #   A[(ci,kh,p),(o,j)] = sum_kw wc[o,ci,kh,kw] * w1[j, p-kw]   (p in [0,W+1])
    w1s = jnp.stack([jnp.pad(w1.astype(jnp.float32), ((0, 0), (kw, 2 - kw)))
                     for kw in range(3)])                     # (3, HID, WP)
    a_mat = jnp.einsum("oihk,kjp->ihpoj", wc.astype(jnp.float32), w1s)
    a_mat = a_mat.reshape(K9, C_OUT * HID).astype(jnp.bfloat16)

    b1_blk = jnp.tile(b1.astype(jnp.float32), C_OUT).reshape(1, C_OUT * HID)
    alpha_s = alpha.reshape(1).astype(jnp.float32)

    # Block-diagonal linear2 weight: one (HID, NC) block per conv channel.
    eye = jnp.eye(C_OUT, dtype=jnp.float32)
    w2_blk = jnp.einsum("ab,jk->ajbk", eye, w2.T.astype(jnp.float32))
    w2_blk = w2_blk.reshape(C_OUT * HID, C_OUT * NUM_CLASSES).astype(jnp.bfloat16)
    b2_blk = jnp.tile(b2.astype(jnp.float32), C_OUT).reshape(1, C_OUT * NUM_CLASSES)

    kernel = functools.partial(_cnn_kernel, H=H, W=W, B=B)
    out_shapes = (
        jax.ShapeDtypeStruct((N * H, C_OUT * HID), jnp.float32),
        jax.ShapeDtypeStruct((N * H, C_OUT * NUM_CLASSES), jnp.float32),
    )

    grid_spec = pltpu.PrefetchScalarGridSpec(
        num_scalar_prefetch=0,
        grid=(N // B,),
        in_specs=[
            pl.BlockSpec((B, C_IN, H + 2, WP), lambda g: (g, 0, 0, 0)),
            pl.BlockSpec((K9, C_OUT * HID), lambda g: (0, 0)),
            pl.BlockSpec((1, C_OUT * HID), lambda g: (0, 0)),
            pl.BlockSpec(memory_space=pltpu.MemorySpace.SMEM),   # alpha scalar
            pl.BlockSpec((C_OUT * HID, C_OUT * NUM_CLASSES), lambda g: (0, 0)),
            pl.BlockSpec((1, C_OUT * NUM_CLASSES), lambda g: (0, 0)),
        ],
        out_specs=[
            pl.BlockSpec((B * H, C_OUT * HID), lambda g: (g, 0)),
            pl.BlockSpec((B * H, C_OUT * NUM_CLASSES), lambda g: (g, 0)),
        ],
        scratch_shapes=[pltpu.VMEM((B * H, K9), jnp.bfloat16)],
    )

    xo, yo = pl.pallas_call(
        kernel,
        out_shape=out_shapes,
        grid_spec=grid_spec,
        compiler_params=pltpu.CompilerParams(
            dimension_semantics=("parallel",)),
    )(xp, a_mat, b1_blk, alpha_s, w2_blk, b2_blk)

    # Lane-dense kernel outputs -> PyTorch layout (cheap wrapper reshapes).
    x_out = xo.reshape(N, H, C_OUT, HID).transpose(0, 2, 1, 3)
    y_out = yo.reshape(N, H, C_OUT, NUM_CLASSES).transpose(0, 2, 1, 3)
    return x_out, y_out


def cnn_reference(x, params):
    """Pure-JAX (f32) reference with identical semantics to the PyTorch forward."""
    wc, w1, b1, alpha, w2, b2 = params
    conv = jax.lax.conv_general_dilated(
        x, wc, window_strides=(1, 1), padding=((1, 1), (1, 1)),
        dimension_numbers=("NCHW", "OIHW", "NCHW"))
    h1 = conv @ w1.T + b1                    # linear on last (W) axis
    h1 = jnp.where(h1 > 0, h1, alpha * h1)   # PReLU with shared alpha
    y = h1 @ w2.T + b2
    return h1, y


if __name__ == "__main__":
    key = jax.random.PRNGKey(0)
    ks = jax.random.split(key, 6)

    N, H, W = 2, 8, FEAT                     # W is forced to 256 by linear1
    x = jax.random.normal(ks[0], (N, C_IN, H, W), jnp.float32)

    # Deterministic synthetic parameters (shapes from the module __init__).
    wc = jax.random.normal(ks[1], (C_OUT, C_IN, 3, 3), jnp.float32) * 0.1
    w1 = jax.random.normal(ks[2], (HID, FEAT), jnp.float32) * 0.05
    b1 = jax.random.normal(ks[3], (HID,), jnp.float32) * 0.05
    alpha = jnp.full((1,), 0.25, jnp.float32)            # PReLU default init
    w2 = jax.random.normal(ks[4], (NUM_CLASSES, HID), jnp.float32) * 0.5
    b2 = jax.random.normal(ks[5], (NUM_CLASSES,), jnp.float32) * 0.05
    params = (wc, w1, b1, alpha, w2, b2)

    x_out, y_out = jax.jit(cnn_forward)(x, params)
    jax.block_until_ready((x_out, y_out))

    x_ref, y_ref = cnn_reference(x, params)
    assert x_out.shape == (N, C_OUT, H, HID)
    assert y_out.shape == (N, C_OUT, H, NUM_CLASSES)
    # bf16 matmul operands: expect ~1e-3 level error vs the f32 reference.
    assert jnp.allclose(x_out, x_ref, atol=2e-2, rtol=2e-2), \
        float(jnp.max(jnp.abs(x_out - x_ref)))
    assert jnp.allclose(y_out, y_ref, atol=2e-2, rtol=2e-2), \
        float(jnp.max(jnp.abs(y_out - y_ref)))

    print("KERNEL_OK")
</pallas_src>

<mosaic_0001>
module attributes {stable_mosaic.version = 11 : i64} {
  func.func @_cnn_kernel(%arg0: i32, %arg1: memref<1x3x10x258xbf16, #tpu.memory_space<vmem>>, %arg2: memref<2322x128xbf16, #tpu.memory_space<vmem>>, %arg3: memref<1x128xf32, #tpu.memory_space<vmem>>, %arg4: memref<1xf32, #tpu.memory_space<smem>>, %arg5: memref<128x320xbf16, #tpu.memory_space<vmem>>, %arg6: memref<1x320xf32, #tpu.memory_space<vmem>>, %arg7: memref<8x128xf32, #tpu.memory_space<vmem>>, %arg8: memref<8x320xf32, #tpu.memory_space<vmem>>, %arg9: memref<8x2322xbf16, #tpu.memory_space<vmem>>) attributes {dimension_semantics = [#tpu.dimension_semantics<parallel>], iteration_bounds = array<i64: 2>, scalar_prefetch = 0 : i64, scratch_operands = 1 : i64, tpu.core_type = #tpu.core_type<tc>, window_params = [{transform_indices = @transform_0, window_bounds = array<i64: 1, 3, 10, 258>}, {pipeline_mode = #tpu.pipeline_mode<synchronous>, transform_indices = @transform_1, window_bounds = array<i64: 2322, 128>}, {pipeline_mode = #tpu.pipeline_mode<synchronous>, transform_indices = @transform_2, window_bounds = array<i64: 1, 128>}, {transform_indices = @transform_3, window_bounds = array<i64: 1>}, {pipeline_mode = #tpu.pipeline_mode<synchronous>, transform_indices = @transform_4, window_bounds = array<i64: 128, 320>}, {pipeline_mode = #tpu.pipeline_mode<synchronous>, transform_indices = @transform_5, window_bounds = array<i64: 1, 320>}, {transform_indices = @transform_6, window_bounds = array<i64: 8, 128>}, {transform_indices = @transform_7, window_bounds = array<i64: 8, 320>}]} {
    %c0 = arith.constant 0 : index
    %c0_0 = arith.constant 0 : index
    %c0_1 = arith.constant 0 : index
    %c0_2 = arith.constant 0 : index
    %0 = vector.load %arg1[%c0, %c0_0, %c0_1, %c0_2] : memref<1x3x10x258xbf16, #tpu.memory_space<vmem>>, vector<1x1x10x258xbf16>
    %1 = vector.shape_cast %0 : vector<1x1x10x258xbf16> to vector<10x258xbf16>
    %2 = vector.extract_strided_slice %1 {offsets = [0, 0], sizes = [8, 258], strides = [1, 1]} : vector<10x258xbf16> to vector<8x258xbf16>
    %c0_3 = arith.constant 0 : index
    %c0_4 = arith.constant 0 : index
    %3 = vector.load %arg9[%c0_3, %c0_4] : memref<8x2322xbf16, #tpu.memory_space<vmem>>, vector<8x258xbf16>
    tpu.vector_store %arg9[%c0_3, %c0_4], %2 {strides = array<i32>} : memref<8x2322xbf16, #tpu.memory_space<vmem>>, vector<8x258xbf16>,
    %4 = vector.extract_strided_slice %1 {offsets = [1, 0], sizes = [8, 258], strides = [1, 1]} : vector<10x258xbf16> to vector<8x258xbf16>
    %c0_5 = arith.constant 0 : index
    %c258 = arith.constant 258 : index
    %5 = vector.load %arg9[%c0_5, %c258] : memref<8x2322xbf16, #tpu.memory_space<vmem>>, vector<8x258xbf16>
    tpu.vector_store %arg9[%c0_5, %c258], %4 {strides = array<i32>} : memref<8x2322xbf16, #tpu.memory_space<vmem>>, vector<8x258xbf16>,
    %6 = vector.extract_strided_slice %1 {offsets = [2, 0], sizes = [8, 258], strides = [1, 1]} : vector<10x258xbf16> to vector<8x258xbf16>
    %c0_6 = arith.constant 0 : index
    %c516 = arith.constant 516 : index
    %7 = vector.load %arg9[%c0_6, %c516] : memref<8x2322xbf16, #tpu.memory_space<vmem>>, vector<8x258xbf16>
    tpu.vector_store %arg9[%c0_6, %c516], %6 {strides = array<i32>} : memref<8x2322xbf16, #tpu.memory_space<vmem>>, vector<8x258xbf16>,
    %c0_7 = arith.constant 0 : index
    %c1 = arith.constant 1 : index
    %c0_8 = arith.constant 0 : index
    %c0_9 = arith.constant 0 : index
    %8 = vector.load %arg1[%c0_7, %c1, %c0_8, %c0_9] : memref<1x3x10x258xbf16, #tpu.memory_space<vmem>>, vector<1x1x10x258xbf16>
    %9 = vector.shape_cast %8 : vector<1x1x10x258xbf16> to vector<10x258xbf16>
    %10 = vector.extract_strided_slice %9 {offsets = [0, 0], sizes = [8, 258], strides = [1, 1]} : vector<10x258xbf16> to vector<8x258xbf16>
    %c0_10 = arith.constant 0 : index
    %c774 = arith.constant 774 : index
    %11 = vector.load %arg9[%c0_10, %c774] : memref<8x2322xbf16, #tpu.memory_space<vmem>>, vector<8x258xbf16>
    tpu.vector_store %arg9[%c0_10, %c774], %10 {strides = array<i32>} : memref<8x2322xbf16, #tpu.memory_space<vmem>>, vector<8x258xbf16>,
    %12 = vector.extract_strided_slice %9 {offsets = [1, 0], sizes = [8, 258], strides = [1, 1]} : vector<10x258xbf16> to vector<8x258xbf16>
    %c0_11 = arith.constant 0 : index
    %c1032 = arith.constant 1032 : index
    %13 = vector.load %arg9[%c0_11, %c1032] : memref<8x2322xbf16, #tpu.memory_space<vmem>>, vector<8x258xbf16>
    tpu.vector_store %arg9[%c0_11, %c1032], %12 {strides = array<i32>} : memref<8x2322xbf16, #tpu.memory_space<vmem>>, vector<8x258xbf16>,
    %14 = vector.extract_strided_slice %9 {offsets = [2, 0], sizes = [8, 258], strides = [1, 1]} : vector<10x258xbf16> to vector<8x258xbf16>
    %c0_12 = arith.constant 0 : index
    %c1290 = arith.constant 1290 : index
    %15 = vector.load %arg9[%c0_12, %c1290] : memref<8x2322xbf16, #tpu.memory_space<vmem>>, vector<8x258xbf16>
    tpu.vector_store %arg9[%c0_12, %c1290], %14 {strides = array<i32>} : memref<8x2322xbf16, #tpu.memory_space<vmem>>, vector<8x258xbf16>,
    %c0_13 = arith.constant 0 : index
    %c2 = arith.constant 2 : index
    %c0_14 = arith.constant 0 : index
    %c0_15 = arith.constant 0 : index
    %16 = vector.load %arg1[%c0_13, %c2, %c0_14, %c0_15] : memref<1x3x10x258xbf16, #tpu.memory_space<vmem>>, vector<1x1x10x258xbf16>
    %17 = vector.shape_cast %16 : vector<1x1x10x258xbf16> to vector<10x258xbf16>
    %18 = vector.extract_strided_slice %17 {offsets = [0, 0], sizes = [8, 258], strides = [1, 1]} : vector<10x258xbf16> to vector<8x258xbf16>
    %c0_16 = arith.constant 0 : index
    %c1548 = arith.constant 1548 : index
    %19 = vector.load %arg9[%c0_16, %c1548] : memref<8x2322xbf16, #tpu.memory_space<vmem>>, vector<8x258xbf16>
    tpu.vector_store %arg9[%c0_16, %c1548], %18 {strides = array<i32>} : memref<8x2322xbf16, #tpu.memory_space<vmem>>, vector<8x258xbf16>,
    %20 = vector.extract_strided_slice %17 {offsets = [1, 0], sizes = [8, 258], strides = [1, 1]} : vector<10x258xbf16> to vector<8x258xbf16>
    %c0_17 = arith.constant 0 : index
    %c1806 = arith.constant 1806 : index
    %21 = vector.load %arg9[%c0_17, %c1806] : memref<8x2322xbf16, #tpu.memory_space<vmem>>, vector<8x258xbf16>
    tpu.vector_store %arg9[%c0_17, %c1806], %20 {strides = array<i32>} : memref<8x2322xbf16, #tpu.memory_space<vmem>>, vector<8x258xbf16>,
    %22 = vector.extract_strided_slice %17 {offsets = [2, 0], sizes = [8, 258], strides = [1, 1]} : vector<10x258xbf16> to vector<8x258xbf16>
    %c0_18 = arith.constant 0 : index
    %c2064 = arith.constant 2064 : index
    %23 = vector.load %arg9[%c0_18, %c2064] : memref<8x2322xbf16, #tpu.memory_space<vmem>>, vector<8x258xbf16>
    tpu.vector_store %arg9[%c0_18, %c2064], %22 {strides = array<i32>} : memref<8x2322xbf16, #tpu.memory_space<vmem>>, vector<8x258xbf16>,
    %c0_19 = arith.constant 0 : index
    %c0_20 = arith.constant 0 : index
    %24 = vector.load %arg9[%c0_19, %c0_20] : memref<8x2322xbf16, #tpu.memory_space<vmem>>, vector<8x2322xbf16>
    %c0_21 = arith.constant 0 : index
    %c0_22 = arith.constant 0 : index
    %25 = vector.load %arg2[%c0_21, %c0_22] : memref<2322x128xbf16, #tpu.memory_space<vmem>>, vector<2322x128xbf16>
    %cst = arith.constant dense<0.000000e+00> : vector<8x128xf32>
    %26 = tpu.matmul %24, %25, %cst {dimension_numbers = #tpu.dot_dimension_numbers<[1], [0], [0], [1], [0, 0, 1, 1], [], []>} : vector<8x2322xbf16>, vector<2322x128xbf16>, vector<8x128xf32> -> vector<8x128xf32>
    %c0_23 = arith.constant 0 : index
    %c0_24 = arith.constant 0 : index
    %27 = vector.load %arg3[%c0_23, %c0_24] : memref<1x128xf32, #tpu.memory_space<vmem>>, vector<1x128xf32>
    %28 = vector.broadcast %27 : vector<1x128xf32> to vector<8x128xf32>
    %29 = arith.addf %26, %28 : vector<8x128xf32>
    %c0_25 = arith.constant 0 : index
    %30 = memref.load %arg4[%c0_25] : memref<1xf32, #tpu.memory_space<smem>>
    %cst_26 = arith.constant 0.000000e+00 : f32
    %31 = vector.broadcast %cst_26 : f32 to vector<8x128xf32>
    %32 = arith.cmpf ogt, %29, %31 : vector<8x128xf32>
    %33 = vector.broadcast %30 : f32 to vector<8x128xf32>
    %34 = arith.mulf %33, %29 : vector<8x128xf32>
    %35 = arith.select %32, %29, %34 : vector<8x128xi1>, vector<8x128xf32>
    %36 = arith.truncf %35 : vector<8x128xf32> to vector<8x128xbf16>
    %c0_27 = arith.constant 0 : index
    %c0_28 = arith.constant 0 : index
    %37 = vector.load %arg5[%c0_27, %c0_28] : memref<128x320xbf16, #tpu.memory_space<vmem>>, vector<128x320xbf16>
    %cst_29 = arith.constant dense<0.000000e+00> : vector<8x320xf32>
    %38 = tpu.matmul %36, %37, %cst_29 {dimension_numbers = #tpu.dot_dimension_numbers<[1], [0], [0], [1], [0, 0, 1, 1], [], []>} : vector<8x128xbf16>, vector<128x320xbf16>, vector<8x320xf32> -> vector<8x320xf32>
    %c0_30 = arith.constant 0 : index
    %c0_31 = arith.constant 0 : index
    %39 = vector.load %arg6[%c0_30, %c0_31] : memref<1x320xf32, #tpu.memory_space<vmem>>, vector<1x320xf32>
    %40 = vector.broadcast %39 : vector<1x320xf32> to vector<8x320xf32>
    %41 = arith.addf %38, %40 : vector<8x320xf32>
    %c0_32 = arith.constant 0 : index
    %c0_33 = arith.constant 0 : index
    %42 = vector.load %arg7[%c0_32, %c0_33] : memref<8x128xf32, #tpu.memory_space<vmem>>, vector<8x128xf32>
    tpu.vector_store %arg7[%c0_32, %c0_33], %35 {strides = array<i32>} : memref<8x128xf32, #tpu.memory_space<vmem>>, vector<8x128xf32>,
    %c0_34 = arith.constant 0 : index
    %c0_35 = arith.constant 0 : index
    %43 = vector.load %arg8[%c0_34, %c0_35] : memref<8x320xf32, #tpu.memory_space<vmem>>, vector<8x320xf32>
    tpu.vector_store %arg8[%c0_34, %c0_35], %41 {strides = array<i32>} : memref<8x320xf32, #tpu.memory_space<vmem>>, vector<8x320xf32>,
    return
  }
  func.func @transform_0(%arg0: i32) -> (i32, i32, i32, i32) {
    %c0_i32 = arith.constant 0 : i32
    %c0_i32_0 = arith.constant 0 : i32
    %c0_i32_1 = arith.constant 0 : i32
    %c0_i32_2 = arith.constant 0 : i32
    return %arg0, %c0_i32, %c0_i32_0, %c0_i32_1 : i32, i32, i32, i32
  }
  func.func @transform_1(%arg0: i32) -> (i32, i32) {
    %c0_i32 = arith.constant 0 : i32
    %c0_i32_0 = arith.constant 0 : i32
    %c0_i32_1 = arith.constant 0 : i32
    return %c0_i32, %c0_i32_0 : i32, i32
  }
  func.func @transform_2(%arg0: i32) -> (i32, i32) {
    %c0_i32 = arith.constant 0 : i32
    %c0_i32_0 = arith.constant 0 : i32
    %c0_i32_1 = arith.constant 0 : i32
    return %c0_i32, %c0_i32_0 : i32, i32
  }
  func.func @transform_3(%arg0: i32) -> i32 {
    %c0_i32 = arith.constant 0 : i32
    %c0_i32_0 = arith.constant 0 : i32
    return %c0_i32 : i32
  }
  func.func @transform_4(%arg0: i32) -> (i32, i32) {
    %c0_i32 = arith.constant 0 : i32
    %c0_i32_0 = arith.constant 0 : i32
    %c0_i32_1 = arith.constant 0 : i32
    return %c0_i32, %c0_i32_0 : i32, i32
  }
  func.func @transform_5(%arg0: i32) -> (i32, i32) {
    %c0_i32 = arith.constant 0 : i32
    %c0_i32_0 = arith.constant 0 : i32
    %c0_i32_1 = arith.constant 0 : i32
    return %c0_i32, %c0_i32_0 : i32, i32
  }
  func.func @transform_6(%arg0: i32) -> (i32, i32) {
    %c0_i32 = arith.constant 0 : i32
    %c0_i32_0 = arith.constant 0 : i32
    return %arg0, %c0_i32 : i32, i32
  }
  func.func @transform_7(%arg0: i32) -> (i32, i32) {
    %c0_i32 = arith.constant 0 : i32
    %c0_i32_0 = arith.constant 0 : i32
    return %arg0, %c0_i32 : i32, i32
  }
}

</mosaic_0001>

<llo_original>
// kernel: tile.18
$region0: #{tile.18}
  #allocation0 [shape = 's32[1]{0}', space=sflag, size = 0x4, scoped, tag = 'scoped memory for tile.18']
  %s0 = inlined_call_operand.vmem [shape: f32[5], index: 0, kind: input, shape index: {}]
  %s1 = inlined_call_operand.vmem [shape: f32[64,5], index: 1, kind: output, shape index: {}]
  // Predicated region
  $region2: #{tile.18} parent=0 // pred_check
    _
  $region3: #{tile.18} parent=0 // pred_check_branch
    %3 = sbr.rel (0) target = $region5
  $region4: #{tile.18} parent=0 // pred_region
    _
  $region5: #{tile.18} parent=0 // pred_fallthru
    _
  %v4 = vld [vmem:[%s0] ss:$0 sm:$0xff]
  %5 = vst [vmem:[%s1] sm:$0xff] %v4
  %s6 = scalar_lea.vmem %s1, 8
  %7 = vst [vmem:[%s6] sm:$0xff] %v4
  %s8 = scalar_lea.vmem %s1, 16
  %9 = vst [vmem:[%s8] sm:$0xff] %v4
  %s10 = scalar_lea.vmem %s1, 24
  %11 = vst [vmem:[%s10] sm:$0xff] %v4
  %s12 = scalar_lea.vmem %s1, 32
  %13 = vst [vmem:[%s12] sm:$0xff] %v4
  %s14 = scalar_lea.vmem %s1, 40
  %15 = vst [vmem:[%s14] sm:$0xff] %v4
  %s16 = scalar_lea.vmem %s1, 48
  %17 = vst [vmem:[%s16] sm:$0xff] %v4
  %s18 = scalar_lea.vmem %s1, 56
  %19 = vst [vmem:[%s18] sm:$0xff] %v4

// kernel: tile.19
$region0: #{tile.19}
  %s0 = inlined_call_operand.vmem [shape: f32[64,5], index: 0, kind: input, shape index: {}]
  %s1 = inlined_call_operand.vmem [shape: f32[1,320], index: 1, kind: output, shape index: {}]
  $region1: #{tile.19} parent=0
    #allocation0 [shape = 'u8[12288]{0}', space=vmem, size = 0x3000, scoped, tag = 'scoped mem for output reshape']
    %v2 = vld [vmem:[%s0] sm:$0x1]
    %vm3 = vcmask 39936
    %4 = vst.msk [vmem:[#allocation0] sm:$0x1] %vm3, %v2
    %s5 = scalar_lea.vmem %s0, 51
    %v6 = vld [vmem:[%s5] sm:$0x1]
    %s7 = scalar_lea.vmem %s0, 51
    %v8 = vld [vmem:[%s7] sm:$0x1]
    %vm9 = vcmask 7168
    %v10 = vsel %vm9, %v8, %v6
    %11 = vrot.lane.b32.xlu0 %v10, 127
    %v12 = vpop.permute.xlu0 %11
    %vm13 = vcmask 31744
    %s14 = scalar_lea.vmem [#allocation0], 16
    %15 = vst.msk [vmem:[%s14] sm:$0x1] %vm13, %v12
    %vm16 = vcmask 1048568
    %s17 = scalar_lea.vmem [#allocation0], 8
    %18 = vst.msk [vmem:[%s17] sm:$0x1] %vm16, %v12
    %s19 = scalar_lea.vmem %s0, 25
    %v20 = vld [vmem:[%s19] sm:$0x1]
    %s21 = scalar_lea.vmem %s0, 25
    %v22 = vld [vmem:[%s21] sm:$0x1]
    %vm23 = vcmask 23552
    %v24 = vsel %vm23, %v22, %v20
    %25 = vrot.lane.b32.xlu0 %v24, 125
    %v26 = vpop.permute.xlu0 %25
    %vm27 = vcmask 15360
    %s28 = scalar_lea.vmem [#allocation0], 8
    %29 = vst.msk [vmem:[%s28] sm:$0x1] %vm27, %v26
    %vm30 = vcmask 1048552
    %31 = vst.msk [vmem:[#allocation0] sm:$0x1] %vm30, %v26
    %s32 = scalar_lea.vmem %s0, 50
    %v33 = vld [vmem:[%s32] sm:$0x1]
    %34 = vrot.lane.b32.xlu0 %v33, 122
    %v35 = vpop.permute.xlu0 %34
    %vm36 = vcmask 1040336
    %s37 = scalar_lea.vmem [#allocation0], 8
    %38 = vst.msk [vmem:[%s37] sm:$0x1] %vm36, %v35
    %s39 = scalar_lea.vmem %s0, 24
    %v40 = vld [vmem:[%s39] sm:$0x1]
    %41 = vrot.lane.b32.xlu0 %v40, 120
    %v42 = vpop.permute.xlu0 %41
    %vm43 = vcmask 1023936
    %44 = vst.msk [vmem:[#allocation0] sm:$0x1] %vm43, %v42
    %s45 = scalar_lea.vmem %s0, 49
    %v46 = vld [vmem:[%s45] sm:$0x1]
    %47 = vrot.lane.b32.xlu0 %v46, 117
    %v48 = vpop.permute.xlu0 %47
    %vm49 = vcmask 999336
    %s50 = scalar_lea.vmem [#allocation0], 8
    %51 = vst.msk [vmem:[%s50] sm:$0x1] %vm49, %v48
    %s52 = scalar_lea.vmem %s0, 23
    %v53 = vld [vmem:[%s52] sm:$0x1]
    %54 = vrot.lane.b32.xlu0 %v53, 115
    %v55 = vpop.permute.xlu0 %54
    %vm56 = vcmask 982936
    %57 = vst.msk [vmem:[#allocation0] sm:$0x1] %vm56, %v55
    %s58 = scalar_lea.vmem %s0, 48
    %v59 = vld [vmem:[%s58] sm:$0x1]
    %60 = vrot.lane.b32.xlu0 %v59, 112
    %v61 = vpop.permute.xlu0 %60
    %vm62 = vcmask 958336
    %s63 = scalar_lea.vmem [#allocation0], 8
    %64 = vst.msk [vmem:[%s63] sm:$0x1] %vm62, %v61
    %s65 = scalar_lea.vmem %s0, 22
    %v66 = vld [vmem:[%s65] sm:$0x1]
    %67 = vrot.lane.b32.xlu0 %v66, 110
    %v68 = vpop.permute.xlu0 %67
    %vm69 = vcmask 941936
    %70 = vst.msk [vmem:[#allocation0] sm:$0x1] %vm69, %v68
    %s71 = scalar_lea.vmem %s0, 47
    %v72 = vld [vmem:[%s71] sm:$0x1]
    %73 = vrot.lane.b32.xlu0 %v72, 107
    %v74 = vpop.permute.xlu0 %73
    %vm75 = vcmask 917336
    %s76 = scalar_lea.vmem [#allocation0], 8
    %77 = vst.msk [vmem:[%s76] sm:$0x1] %vm75, %v74
    %s78 = scalar_lea.vmem %s0, 21
    %v79 = vld [vmem:[%s78] sm:$0x1]
    %80 = vrot.lane.b32.xlu0 %v79, 105
    %v81 = vpop.permute.xlu0 %80
    %vm82 = vcmask 900936
    %83 = vst.msk [vmem:[#allocation0] sm:$0x1] %vm82, %v81
    %s84 = scalar_lea.vmem %s0, 46
    %v85 = vld [vmem:[%s84] sm:$0x1]
    %86 = vrot.lane.b32.xlu0 %v85, 102
    %v87 = vpop.permute.xlu0 %86
    %vm88 = vcmask 876336
    %s89 = scalar_lea.vmem [#allocation0], 8
    %90 = vst.msk [vmem:[%s89] sm:$0x1] %vm88, %v87
    %s91 = scalar_lea.vmem %s0, 20
    %v92 = vld [vmem:[%s91] sm:$0x1]
    %93 = vrot.lane.b32.xlu0 %v92, 100
    %v94 = vpop.permute.xlu0 %93
    %vm95 = vcmask 859936
    %96 = vst.msk [vmem:[#allocation0] sm:$0x1] %vm95, %v94
    %s97 = scalar_lea.vmem %s0, 45
    %v98 = vld [vmem:[%s97] sm:$0x1]
    %99 = vrot.lane.b32.xlu0 %v98, 97
    %v100 = vpop.permute.xlu0 %99
    %vm101 = vcmask 835336
    %s102 = scalar_lea.vmem [#allocation0], 8
    %103 = vst.msk [vmem:[%s102] sm:$0x1] %vm101, %v100
    %s104 = scalar_lea.vmem %s0, 19
    %v105 = vld [vmem:[%s104] sm:$0x1]
    %106 = vrot.lane.b32.xlu0 %v105, 95
    %v107 = vpop.permute.xlu0 %106
    %vm108 = vcmask 818936
    %109 = vst.msk [vmem:[#allocation0] sm:$0x1] %vm108, %v107
    %s110 = scalar_lea.vmem %s0, 44
    %v111 = vld [vmem:[%s110] sm:$0x1]
    %112 = vrot.lane.b32.xlu0 %v111, 92
    %v113 = vpop.permute.xlu0 %112
    %vm114 = vcmask 794336
    %s115 = scalar_lea.vmem [#allocation0], 8
    %116 = vst.msk [vmem:[%s115] sm:$0x1] %vm114, %v113
    %s117 = scalar_lea.vmem %s0, 18
    %v118 = vld [vmem:[%s117] sm:$0x1]
    %119 = vrot.lane.b32.xlu0 %v118, 90
    %v120 = vpop.permute.xlu0 %119
    %vm121 = vcmask 777936
    %122 = vst.msk [vmem:[#allocation0] sm:$0x1] %vm121, %v120
    %s123 = scalar_lea.vmem %s0, 43
    %v124 = vld [vmem:[%s123] sm:$0x1]
    %125 = vrot.lane.b32.xlu0 %v124, 87
    %v126 = vpop.permute.xlu0 %125
    %vm127 = vcmask 753336
    %s128 = scalar_lea.vmem [#allocation0], 8
    %129 = vst.msk [vmem:[%s128] sm:$0x1] %vm127, %v126
    %s130 = scalar_lea.vmem %s0, 17
    %v131 = vld [vmem:[%s130] sm:$0x1]
    %132 = vrot.lane.b32.xlu0 %v131, 85
    %v133 = vpop.permute.xlu0 %132
    %vm134 = vcmask 736936
    %135 = vst.msk [vmem:[#allocation0] sm:$0x1] %vm134, %v133
    %s136 = scalar_lea.vmem %s0, 42
    %v137 = vld [vmem:[%s136] sm:$0x1]
    %138 = vrot.lane.b32.xlu0 %v137, 82
    %v139 = vpop.permute.xlu0 %138
    %vm140 = vcmask 712336
    %s141 = scalar_lea.vmem [#allocation0], 8
    %142 = vst.msk [vmem:[%s141] sm:$0x1] %vm140, %v139
    %s143 = scalar_lea.vmem %s0, 16
    %v144 = vld [vmem:[%s143] sm:$0x1]
    %145 = vrot.lane.b32.xlu0 %v144, 80
    %v146 = vpop.permute.xlu0 %145
    %vm147 = vcmask 695936
    %148 = vst.msk [vmem:[#allocation0] sm:$0x1] %vm147, %v146
    %s149 = scalar_lea.vmem %s0, 41
    %v150 = vld [vmem:[%s149] sm:$0x1]
    %151 = vrot.lane.b32.xlu0 %v150, 77
    %v152 = vpop.permute.xlu0 %151
    %vm153 = vcmask 671336
    %s154 = scalar_lea.vmem [#allocation0], 8
    %155 = vst.msk [vmem:[%s154] sm:$0x1] %vm153, %v152
    %s156 = scalar_lea.vmem %s0, 15
    %v157 = vld [vmem:[%s156] sm:$0x1]
    %158 = vrot.lane.b32.xlu0 %v157, 75
    %v159 = vpop.permute.xlu0 %158
    %vm160 = vcmask 654936
    %161 = vst.msk [vmem:[#allocation0] sm:$0x1] %vm160, %v159
    %s162 = scalar_lea.vmem %s0, 40
    %v163 = vld [vmem:[%s162] sm:$0x1]
    %164 = vrot.lane.b32.xlu0 %v163, 72
    %v165 = vpop.permute.xlu0 %164
    %vm166 = vcmask 630336
    %s167 = scalar_lea.vmem [#allocation0], 8
    %168 = vst.msk [vmem:[%s167] sm:$0x1] %vm166, %v165
    %s169 = scalar_lea.vmem %s0, 14
    %v170 = vld [vmem:[%s169] sm:$0x1]
    %171 = vrot.lane.b32.xlu0 %v170, 70
    %v172 = vpop.permute.xlu0 %171
    %vm173 = vcmask 613936
    %174 = vst.msk [vmem:[#allocation0] sm:$0x1] %vm173, %v172
    %s175 = scalar_lea.vmem %s0, 39
    %v176 = vld [vmem:[%s175] sm:$0x1]
    %177 = vrot.lane.b32.xlu0 %v176, 67
    %v178 = vpop.permute.xlu0 %177
    %vm179 = vcmask 589336
    %s180 = scalar_lea.vmem [#allocation0], 8
    %181 = vst.msk [vmem:[%s180] sm:$0x1] %vm179, %v178
    %s182 = scalar_lea.vmem %s0, 13
    %v183 = vld [vmem:[%s182] sm:$0x1]
    %184 = vrot.lane.b32.xlu0 %v183, 65
    %v185 = vpop.permute.xlu0 %184
    %vm186 = vcmask 572936
    %187 = vst.msk [vmem:[#allocation0] sm:$0x1] %vm186, %v185
    %s188 = scalar_lea.vmem %s0, 38
    %v189 = vld [vmem:[%s188] sm:$0x1]
    %190 = vrot.lane.b32.xlu0 %v189, 62
    %v191 = vpop.permute.xlu0 %190
    %vm192 = vcmask 548336
    %s193 = scalar_lea.vmem [#allocation0], 8
    %194 = vst.msk [vmem:[%s193] sm:$0x1] %vm192, %v191
    %s195 = scalar_lea.vmem %s0, 12
    %v196 = vld [vmem:[%s195] sm:$0x1]
    %197 = vrot.lane.b32.xlu0 %v196, 60
    %v198 = vpop.permute.xlu0 %197
    %vm199 = vcmask 531936
    %200 = vst.msk [vmem:[#allocation0] sm:$0x1] %vm199, %v198
    %s201 = scalar_lea.vmem %s0, 63
    %v202 = vld [vmem:[%s201] sm:$0x1]
    %203 = vrot.lane.b32.xlu0 %v202, 59
    %v204 = vpop.permute.xlu0 %203
    %vm205 = vcmask 523736
    %s206 = scalar_lea.vmem [#allocation0], 16
    %207 = vst.msk [vmem:[%s206] sm:$0x1] %vm205, %v204
    %s208 = scalar_lea.vmem %s0, 37
    %v209 = vld [vmem:[%s208] sm:$0x1]
    %210 = vrot.lane.b32.xlu0 %v209, 57
    %v211 = vpop.permute.xlu0 %210
    %vm212 = vcmask 507336
    %s213 = scalar_lea.vmem [#allocation0], 8
    %214 = vst.msk [vmem:[%s213] sm:$0x1] %vm212, %v211
    %s215 = scalar_lea.vmem %s0, 11
    %v216 = vld [vmem:[%s215] sm:$0x1]
    %217 = vrot.lane.b32.xlu0 %v216, 55
    %v218 = vpop.permute.xlu0 %217
    %vm219 = vcmask 490936
    %220 = vst.msk [vmem:[#allocation0] sm:$0x1] %vm219, %v218
    %s221 = scalar_lea.vmem %s0, 62
    %v222 = vld [vmem:[%s221] sm:$0x1]
    %223 = vrot.lane.b32.xlu0 %v222, 54
    %v224 = vpop.permute.xlu0 %223
    %vm225 = vcmask 482736
    %s226 = scalar_lea.vmem [#allocation0], 16
    %227 = vst.msk [vmem:[%s226] sm:$0x1] %vm225, %v224
    %s228 = scalar_lea.vmem %s0, 36
    %v229 = vld [vmem:[%s228] sm:$0x1]
    %230 = vrot.lane.b32.xlu0 %v229, 52
    %v231 = vpop.permute.xlu0 %230
    %vm232 = vcmask 466336
    %s233 = scalar_lea.vmem [#allocation0], 8
    %234 = vst.msk [vmem:[%s233] sm:$0x1] %vm232, %v231
    %s235 = scalar_lea.vmem %s0, 10
    %v236 = vld [vmem:[%s235] sm:$0x1]
    %237 = vrot.lane.b32.xlu0 %v236, 50
    %v238 = vpop.permute.xlu0 %237
    %vm239 = vcmask 449936
    %240 = vst.msk [vmem:[#allocation0] sm:$0x1] %vm239, %v238
    %s241 = scalar_lea.vmem %s0, 61
    %v242 = vld [vmem:[%s241] sm:$0x1]
    %243 = vrot.lane.b32.xlu0 %v242, 49
    %v244 = vpop.permute.xlu0 %243
    %vm245 = vcmask 441736
    %s246 = scalar_lea.vmem [#allocation0], 16
    %247 = vst.msk [vmem:[%s246] sm:$0x1] %vm245, %v244
    %s248 = scalar_lea.vmem %s0, 35
    %v249 = vld [vmem:[%s248] sm:$0x1]
    %250 = vrot.lane.b32.xlu0 %v249, 47
    %v251 = vpop.permute.xlu0 %250
    %vm252 = vcmask 425336
    %s253 = scalar_lea.vmem [#allocation0], 8
    %254 = vst.msk [vmem:[%s253] sm:$0x1] %vm252, %v251
    %s255 = scalar_lea.vmem %s0, 9
    %v256 = vld [vmem:[%s255] sm:$0x1]
    %257 = vrot.lane.b32.xlu0 %v256, 45
    %v258 = vpop.permute.xlu0 %257
    %vm259 = vcmask 408936
    %260 = vst.msk [vmem:[#allocation0] sm:$0x1] %vm259, %v258
    %s261 = scalar_lea.vmem %s0, 60
    %v262 = vld [vmem:[%s261] sm:$0x1]
    %263 = vrot.lane.b32.xlu0 %v262, 44
    %v264 = vpop.permute.xlu0 %263
    %vm265 = vcmask 400736
    %s266 = scalar_lea.vmem [#allocation0], 16
    %267 = vst.msk [vmem:[%s266] sm:$0x1] %vm265, %v264
    %s268 = scalar_lea.vmem %s0, 34
    %v269 = vld [vmem:[%s268] sm:$0x1]
    %270 = vrot.lane.b32.xlu0 %v269, 42
    %v271 = vpop.permute.xlu0 %270
    %vm272 = vcmask 384336
    %s273 = scalar_lea.vmem [#allocation0], 8
    %274 = vst.msk [vmem:[%s273] sm:$0x1] %vm272, %v271
    %s275 = scalar_lea.vmem %s0, 8
    %v276 = vld [vmem:[%s275] sm:$0x1]
    %277 = vrot.lane.b32.xlu0 %v276, 40
    %v278 = vpop.permute.xlu0 %277
    %vm279 = vcmask 367936
    %280 = vst.msk [vmem:[#allocation0] sm:$0x1] %vm279, %v278
    %s281 = scalar_lea.vmem %s0, 59
    %v282 = vld [vmem:[%s281] sm:$0x1]
    %283 = vrot.lane.b32.xlu0 %v282, 39
    %v284 = vpop.permute.xlu0 %283
    %vm285 = vcmask 359736
    %s286 = scalar_lea.vmem [#allocation0], 16
    %287 = vst.msk [vmem:[%s286] sm:$0x1] %vm285, %v284
    %s288 = scalar_lea.vmem %s0, 33
    %v289 = vld [vmem:[%s288] sm:$0x1]
    %290 = vrot.lane.b32.xlu0 %v289, 37
    %v291 = vpop.permute.xlu0 %290
    %vm292 = vcmask 343336
    %s293 = scalar_lea.vmem [#allocation0], 8
    %294 = vst.msk [vmem:[%s293] sm:$0x1] %vm292, %v291
    %s295 = scalar_lea.vmem %s0, 7
    %v296 = vld [vmem:[%s295] sm:$0x1]
    %297 = vrot.lane.b32.xlu0 %v296, 35
    %v298 = vpop.permute.xlu0 %297
    %vm299 = vcmask 326936
    %300 = vst.msk [vmem:[#allocation0] sm:$0x1] %vm299, %v298
    %s301 = scalar_lea.vmem %s0, 58
    %v302 = vld [vmem:[%s301] sm:$0x1]
    %303 = vrot.lane.b32.xlu0 %v302, 34
    %v304 = vpop.permute.xlu0 %303
    %vm305 = vcmask 318736
    %s306 = scalar_lea.vmem [#allocation0], 16
    %307 = vst.msk [vmem:[%s306] sm:$0x1] %vm305, %v304
    %s308 = scalar_lea.vmem %s0, 32
    %v309 = vld [vmem:[%s308] sm:$0x1]
    %310 = vrot.lane.b32.xlu0 %v309, 32
    %v311 = vpop.permute.xlu0 %310
    %vm312 = vcmask 302336
    %s313 = scalar_lea.vmem [#allocation0], 8
    %314 = vst.msk [vmem:[%s313] sm:$0x1] %vm312, %v311
    %s315 = scalar_lea.vmem %s0, 6
    %v316 = vld [vmem:[%s315] sm:$0x1]
    %317 = vrot.lane.b32.xlu0 %v316, 30
    %v318 = vpop.permute.xlu0 %317
    %vm319 = vcmask 285936
    %320 = vst.msk [vmem:[#allocation0] sm:$0x1] %vm319, %v318
    %s321 = scalar_lea.vmem %s0, 57
    %v322 = vld [vmem:[%s321] sm:$0x1]
    %323 = vrot.lane.b32.xlu0 %v322, 29
    %v324 = vpop.permute.xlu0 %323
    %vm325 = vcmask 277736
    %s326 = scalar_lea.vmem [#allocation0], 16
    %327 = vst.msk [vmem:[%s326] sm:$0x1] %vm325, %v324
    %s328 = scalar_lea.vmem %s0, 31
    %v329 = vld [vmem:[%s328] sm:$0x1]
    %330 = vrot.lane.b32.xlu0 %v329, 27
    %v331 = vpop.permute.xlu0 %330
    %vm332 = vcmask 261336
    %s333 = scalar_lea.vmem [#allocation0], 8
    %334 = vst.msk [vmem:[%s333] sm:$0x1] %vm332, %v331
    %s335 = scalar_lea.vmem %s0, 5
    %v336 = vld [vmem:[%s335] sm:$0x1]
    %337 = vrot.lane.b32.xlu0 %v336, 25
    %v338 = vpop.permute.xlu0 %337
    %vm339 = vcmask 244936
    %340 = vst.msk [vmem:[#allocation0] sm:$0x1] %vm339, %v338
    %s341 = scalar_lea.vmem %s0, 56
    %v342 = vld [vmem:[%s341] sm:$0x1]
    %343 = vrot.lane.b32.xlu0 %v342, 24
    %v344 = vpop.permute.xlu0 %343
    %vm345 = vcmask 236736
    %s346 = scalar_lea.vmem [#allocation0], 16
    %347 = vst.msk [vmem:[%s346] sm:$0x1] %vm345, %v344
    %s348 = scalar_lea.vmem %s0, 30
    %v349 = vld [vmem:[%s348] sm:$0x1]
    %350 = vrot.lane.b32.xlu0 %v349, 22
    %v351 = vpop.permute.xlu0 %350
    %vm352 = vcmask 220336
    %s353 = scalar_lea.vmem [#allocation0], 8
    %354 = vst.msk [vmem:[%s353] sm:$0x1] %vm352, %v351
    %s355 = scalar_lea.vmem %s0, 4
    %v356 = vld [vmem:[%s355] sm:$0x1]
    %357 = vrot.lane.b32.xlu0 %v356, 20
    %v358 = vpop.permute.xlu0 %357
    %vm359 = vcmask 203936
    %360 = vst.msk [vmem:[#allocation0] sm:$0x1] %vm359, %v358
    %s361 = scalar_lea.vmem %s0, 55
    %v362 = vld [vmem:[%s361] sm:$0x1]
    %363 = vrot.lane.b32.xlu0 %v362, 19
    %v364 = vpop.permute.xlu0 %363
    %vm365 = vcmask 195736
    %s366 = scalar_lea.vmem [#allocation0], 16
    %367 = vst.msk [vmem:[%s366] sm:$0x1] %vm365, %v364
    %s368 = scalar_lea.vmem %s0, 29
    %v369 = vld [vmem:[%s368] sm:$0x1]
    %370 = vrot.lane.b32.xlu0 %v369, 17
    %v371 = vpop.permute.xlu0 %370
    %vm372 = vcmask 179336
    %s373 = scalar_lea.vmem [#allocation0], 8
    %374 = vst.msk [vmem:[%s373] sm:$0x1] %vm372, %v371
    %s375 = scalar_lea.vmem %s0, 3
    %v376 = vld [vmem:[%s375] sm:$0x1]
    %377 = vrot.lane.b32.xlu0 %v376, 15
    %v378 = vpop.permute.xlu0 %377
    %vm379 = vcmask 162936
    %380 = vst.msk [vmem:[#allocation0] sm:$0x1] %vm379, %v378
    %s381 = scalar_lea.vmem %s0, 54
    %v382 = vld [vmem:[%s381] sm:$0x1]
    %383 = vrot.lane.b32.xlu0 %v382, 14
    %v384 = vpop.permute.xlu0 %383
    %vm385 = vcmask 154736
    %s386 = scalar_lea.vmem [#allocation0], 16
    %387 = vst.msk [vmem:[%s386] sm:$0x1] %vm385, %v384
    %s388 = scalar_lea.vmem %s0, 28
    %v389 = vld [vmem:[%s388] sm:$0x1]
    %390 = vrot.lane.b32.xlu0 %v389, 12
    %v391 = vpop.permute.xlu0 %390
    %vm392 = vcmask 138336
    %s393 = scalar_lea.vmem [#allocation0], 8
    %394 = vst.msk [vmem:[%s393] sm:$0x1] %vm392, %v391
    %s395 = scalar_lea.vmem %s0, 2
    %v396 = vld [vmem:[%s395] sm:$0x1]
    %397 = vrot.lane.b32.xlu0 %v396, 10
    %v398 = vpop.permute.xlu0 %397
    %vm399 = vcmask 121936
    %400 = vst.msk [vmem:[#allocation0] sm:$0x1] %vm399, %v398
    %s401 = scalar_lea.vmem %s0, 53
    %v402 = vld [vmem:[%s401] sm:$0x1]
    %403 = vrot.lane.b32.xlu0 %v402, 9
    %v404 = vpop.permute.xlu0 %403
    %vm405 = vcmask 113736
    %s406 = scalar_lea.vmem [#allocation0], 16
    %407 = vst.msk [vmem:[%s406] sm:$0x1] %vm405, %v404
    %s408 = scalar_lea.vmem %s0, 27
    %v409 = vld [vmem:[%s408] sm:$0x1]
    %410 = vrot.lane.b32.xlu0 %v409, 7
    %v411 = vpop.permute.xlu0 %410
    %vm412 = vcmask 97336
    %s413 = scalar_lea.vmem [#allocation0], 8
    %414 = vst.msk [vmem:[%s413] sm:$0x1] %vm412, %v411
    %s415 = scalar_lea.vmem %s0, 1
    %v416 = vld [vmem:[%s415] sm:$0x1]
    %417 = vrot.lane.b32.xlu0 %v416, 5
    %v418 = vpop.permute.xlu0 %417
    %vm419 = vcmask 80936
    %420 = vst.msk [vmem:[#allocation0] sm:$0x1] %vm419, %v418
    %s421 = scalar_lea.vmem %s0, 52
    %v422 = vld [vmem:[%s421] sm:$0x1]
    %423 = vrot.lane.b32.xlu0 %v422, 4
    %v424 = vpop.permute.xlu0 %423
    %vm425 = vcmask 72736
    %s426 = scalar_lea.vmem [#allocation0], 16
    %427 = vst.msk [vmem:[%s426] sm:$0x1] %vm425, %v424
    %s428 = scalar_lea.vmem %s0, 26
    %v429 = vld [vmem:[%s428] sm:$0x1]
    %430 = vrot.lane.b32.xlu0 %v429, 2
    %v431 = vpop.permute.xlu0 %430
    %vm432 = vcmask 56336
    %s433 = scalar_lea.vmem [#allocation0], 8
    %434 = vst.msk [vmem:[%s433] sm:$0x1] %vm432, %v431
    %s436 = sshllo.u32 0, 1
    %v438 = vld [vmem:[#allocation0] sm:%s436]
    %s439 = sshllo.u32 0, 1
    %440 = vst [vmem:[%s1] sm:%s439] %v438
    %s441 = scalar_lea.vmem [#allocation0], 8
    %v442 = vld [vmem:[%s441] sm:%s436]
    %s443 = sshllo.u32 0, 1
    %s444 = scalar_lea.vmem %s1, 1
    %445 = vst [vmem:[%s444] sm:%s443] %v442
    %s446 = scalar_lea.vmem [#allocation0], 16
    %v447 = vld [vmem:[%s446] sm:%s436]
    %s448 = sshllo.u32 0, 1
    %s449 = smul.addr 1, 2
    %s450 = scalar_lea.vmem %s1, %s449
    %451 = vst [vmem:[%s450] sm:%s448] %v447

// kernel: tile.13
$region0: #{tile.13}
  #allocation0 [shape = 's32[1]{0}', space=sflag, size = 0x4, scoped, tag = 'scoped memory for tile.13']
  %s0 = inlined_call_operand.vmem [shape: f32[2], index: 0, kind: input, shape index: {}]
  %s1 = inlined_call_operand.vmem [shape: f32[64,2], index: 1, kind: output, shape index: {}]
  // Predicated region
  $region2: #{tile.13} parent=0 // pred_check
    _
  $region3: #{tile.13} parent=0 // pred_check_branch
    %3 = sbr.rel (0) target = $region5
  $region4: #{tile.13} parent=0 // pred_region
    _
  $region5: #{tile.13} parent=0 // pred_fallthru
    _
  %v4 = vld [vmem:[%s0] ss:$0 sm:$0xff]
  %5 = vst [vmem:[%s1] sm:$0xff] %v4
  %s6 = scalar_lea.vmem %s1, 8
  %7 = vst [vmem:[%s6] sm:$0xff] %v4
  %s8 = scalar_lea.vmem %s1, 16
  %9 = vst [vmem:[%s8] sm:$0xff] %v4
  %s10 = scalar_lea.vmem %s1, 24
  %11 = vst [vmem:[%s10] sm:$0xff] %v4
  %s12 = scalar_lea.vmem %s1, 32
  %13 = vst [vmem:[%s12] sm:$0xff] %v4
  %s14 = scalar_lea.vmem %s1, 40
  %15 = vst [vmem:[%s14] sm:$0xff] %v4
  %s16 = scalar_lea.vmem %s1, 48
  %17 = vst [vmem:[%s16] sm:$0xff] %v4
  %s18 = scalar_lea.vmem %s1, 56
  %19 = vst [vmem:[%s18] sm:$0xff] %v4

// kernel: tile.14
$region0: #{tile.14}
  %s0 = inlined_call_operand.vmem [shape: f32[64,2], index: 0, kind: input, shape index: {}]
  %s1 = inlined_call_operand.vmem [shape: f32[1,128], index: 1, kind: output, shape index: {}]
  $region1: #{tile.14} parent=0
    #allocation0 [shape = 'u8[4096]{0}', space=vmem, size = 0x1000, scoped, tag = 'scoped mem for output reshape']
    %v2 = vld [vmem:[%s0] sm:$0x1]
    %vm3 = vcmask 15360
    %4 = vst.msk [vmem:[#allocation0] sm:$0x1] %vm3, %v2
    %s5 = scalar_lea.vmem %s0, 63
    %v6 = vld [vmem:[%s5] sm:$0x1]
    %7 = vrot.lane.b32.xlu0 %v6, 126
    %v8 = vpop.permute.xlu0 %7
    %vm9 = vcmask 1048560
    %10 = vst.msk [vmem:[#allocation0] sm:$0x1] %vm9, %v8
    %s11 = scalar_lea.vmem %s0, 62
    %v12 = vld [vmem:[%s11] sm:$0x1]
    %13 = vrot.lane.b32.xlu0 %v12, 124
    %v14 = vpop.permute.xlu0 %13
    %vm15 = vcmask 1032160
    %16 = vst.msk [vmem:[#allocation0] sm:$0x1] %vm15, %v14
    %s17 = scalar_lea.vmem %s0, 61
    %v18 = vld [vmem:[%s17] sm:$0x1]
    %19 = vrot.lane.b32.xlu0 %v18, 122
    %v20 = vpop.permute.xlu0 %19
    %vm21 = vcmask 1015760
    %22 = vst.msk [vmem:[#allocation0] sm:$0x1] %vm21, %v20
    %s23 = scalar_lea.vmem %s0, 60
    %v24 = vld [vmem:[%s23] sm:$0x1]
    %25 = vrot.lane.b32.xlu0 %v24, 120
    %v26 = vpop.permute.xlu0 %25
    %vm27 = vcmask 999360
    %28 = vst.msk [vmem:[#allocation0] sm:$0x1] %vm27, %v26
    %s29 = scalar_lea.vmem %s0, 59
    %v30 = vld [vmem:[%s29] sm:$0x1]
    %31 = vrot.lane.b32.xlu0 %v30, 118
    %v32 = vpop.permute.xlu0 %31
    %vm33 = vcmask 982960
    %34 = vst.msk [vmem:[#allocation0] sm:$0x1] %vm33, %v32
    %s35 = scalar_lea.vmem %s0, 58
    %v36 = vld [vmem:[%s35] sm:$0x1]
    %37 = vrot.lane.b32.xlu0 %v36, 116
    %v38 = vpop.permute.xlu0 %37
    %vm39 = vcmask 966560
    %40 = vst.msk [vmem:[#allocation0] sm:$0x1] %vm39, %v38
    %s41 = scalar_lea.vmem %s0, 57
    %v42 = vld [vmem:[%s41] sm:$0x1]
    %43 = vrot.lane.b32.xlu0 %v42, 114
    %v44 = vpop.permute.xlu0 %43
    %vm45 = vcmask 950160
    %46 = vst.msk [vmem:[#allocation0] sm:$0x1] %vm45, %v44
    %s47 = scalar_lea.vmem %s0, 56
    %v48 = vld [vmem:[%s47] sm:$0x1]
    %49 = vrot.lane.b32.xlu0 %v48, 112
    %v50 = vpop.permute.xlu0 %49
    %vm51 = vcmask 933760
    %52 = vst.msk [vmem:[#allocation0] sm:$0x1] %vm51, %v50
    %s53 = scalar_lea.vmem %s0, 55
    %v54 = vld [vmem:[%s53] sm:$0x1]
    %55 = vrot.lane.b32.xlu0 %v54, 110
    %v56 = vpop.permute.xlu0 %55
    %vm57 = vcmask 917360
    %58 = vst.msk [vmem:[#allocation0] sm:$0x1] %vm57, %v56
    %s59 = scalar_lea.vmem %s0, 54
    %v60 = vld [vmem:[%s59] sm:$0x1]
    %61 = vrot.lane.b32.xlu0 %v60, 108
    %v62 = vpop.permute.xlu0 %61
    %vm63 = vcmask 900960
    %64 = vst.msk [vmem:[#allocation0] sm:$0x1] %vm63, %v62
    %s65 = scalar_lea.vmem %s0, 53
    %v66 = vld [vmem:[%s65] sm:$0x1]
    %67 = vrot.lane.b32.xlu0 %v66, 106
    %v68 = vpop.permute.xlu0 %67
    %vm69 = vcmask 884560
    %70 = vst.msk [vmem:[#allocation0] sm:$0x1] %vm69, %v68
    %s71 = scalar_lea.vmem %s0, 52
    %v72 = vld [vmem:[%s71] sm:$0x1]
    %73 = vrot.lane.b32.xlu0 %v72, 104
    %v74 = vpop.permute.xlu0 %73
    %vm75 = vcmask 868160
    %76 = vst.msk [vmem:[#allocation0] sm:$0x1] %vm75, %v74
    %s77 = scalar_lea.vmem %s0, 51
    %v78 = vld [vmem:[%s77] sm:$0x1]
    %79 = vrot.lane.b32.xlu0 %v78, 102
    %v80 = vpop.permute.xlu0 %79
    %vm81 = vcmask 851760
    %82 = vst.msk [vmem:[#allocation0] sm:$0x1] %vm81, %v80
    %s83 = scalar_lea.vmem %s0, 50
    %v84 = vld [vmem:[%s83] sm:$0x1]
    %85 = vrot.lane.b32.xlu0 %v84, 100
    %v86 = vpop.permute.xlu0 %85
    %vm87 = vcmask 835360
    %88 = vst.msk [vmem:[#allocation0] sm:$0x1] %vm87, %v86
    %s89 = scalar_lea.vmem %s0, 49
    %v90 = vld [vmem:[%s89] sm:$0x1]
    %91 = vrot.lane.b32.xlu0 %v90, 98
    %v92 = vpop.permute.xlu0 %91
    %vm93 = vcmask 818960
    %94 = vst.msk [vmem:[#allocation0] sm:$0x1] %vm93, %v92
    %s95 = scalar_lea.vmem %s0, 48
    %v96 = vld [vmem:[%s95] sm:$0x1]
    %97 = vrot.lane.b32.xlu0 %v96, 96
    %v98 = vpop.permute.xlu0 %97
    %vm99 = vcmask 802560
    %100 = vst.msk [vmem:[#allocation0] sm:$0x1] %vm99, %v98
    %s101 = scalar_lea.vmem %s0, 47
    %v102 = vld [vmem:[%s101] sm:$0x1]
    %103 = vrot.lane.b32.xlu0 %v102, 94
    %v104 = vpop.permute.xlu0 %103
    %vm105 = vcmask 786160
    %106 = vst.msk [vmem:[#allocation0] sm:$0x1] %vm105, %v104
    %s107 = scalar_lea.vmem %s0, 46
    %v108 = vld [vmem:[%s107] sm:$0x1]
    %109 = vrot.lane.b32.xlu0 %v108, 92
    %v110 = vpop.permute.xlu0 %109
    %vm111 = vcmask 769760
    %112 = vst.msk [vmem:[#allocation0] sm:$0x1] %vm111, %v110
    %s113 = scalar_lea.vmem %s0, 45
    %v114 = vld [vmem:[%s113] sm:$0x1]
    %115 = vrot.lane.b32.xlu0 %v114, 90
    %v116 = vpop.permute.xlu0 %115
    %vm117 = vcmask 753360
    %118 = vst.msk [vmem:[#allocation0] sm:$0x1] %vm117, %v116
    %s119 = scalar_lea.vmem %s0, 44
    %v120 = vld [vmem:[%s119] sm:$0x1]
    %121 = vrot.lane.b32.xlu0 %v120, 88
    %v122 = vpop.permute.xlu0 %121
    %vm123 = vcmask 736960
    %124 = vst.msk [vmem:[#allocation0] sm:$0x1] %vm123, %v122
    %s125 = scalar_lea.vmem %s0, 43
    %v126 = vld [vmem:[%s125] sm:$0x1]
    %127 = vrot.lane.b32.xlu0 %v126, 86
    %v128 = vpop.permute.xlu0 %127
    %vm129 = vcmask 720560
    %130 = vst.msk [vmem:[#allocation0] sm:$0x1] %vm129, %v128
    %s131 = scalar_lea.vmem %s0, 42
    %v132 = vld [vmem:[%s131] sm:$0x1]
    %133 = vrot.lane.b32.xlu0 %v132, 84
    %v134 = vpop.permute.xlu0 %133
    %vm135 = vcmask 704160
    %136 = vst.msk [vmem:[#allocation0] sm:$0x1] %vm135, %v134
    %s137 = scalar_lea.vmem %s0, 41
    %v138 = vld [vmem:[%s137] sm:$0x1]
    %139 = vrot.lane.b32.xlu0 %v138, 82
    %v140 = vpop.permute.xlu0 %139
    %vm141 = vcmask 687760
    %142 = vst.msk [vmem:[#allocation0] sm:$0x1] %vm141, %v140
    %s143 = scalar_lea.vmem %s0, 40
    %v144 = vld [vmem:[%s143] sm:$0x1]
    %145 = vrot.lane.b32.xlu0 %v144, 80
    %v146 = vpop.permute.xlu0 %145
    %vm147 = vcmask 671360
    %148 = vst.msk [vmem:[#allocation0] sm:$0x1] %vm147, %v146
    %s149 = scalar_lea.vmem %s0, 39
    %v150 = vld [vmem:[%s149] sm:$0x1]
    %151 = vrot.lane.b32.xlu0 %v150, 78
    %v152 = vpop.permute.xlu0 %151
    %vm153 = vcmask 654960
    %154 = vst.msk [vmem:[#allocation0] sm:$0x1] %vm153, %v152
    %s155 = scalar_lea.vmem %s0, 38
    %v156 = vld [vmem:[%s155] sm:$0x1]
    %157 = vrot.lane.b32.xlu0 %v156, 76
    %v158 = vpop.permute.xlu0 %157
    %vm159 = vcmask 638560
    %160 = vst.msk [vmem:[#allocation0] sm:$0x1] %vm159, %v158
    %s161 = scalar_lea.vmem %s0, 37
    %v162 = vld [vmem:[%s161] sm:$0x1]
    %163 = vrot.lane.b32.xlu0 %v162, 74
    %v164 = vpop.permute.xlu0 %163
    %vm165 = vcmask 622160
    %166 = vst.msk [vmem:[#allocation0] sm:$0x1] %vm165, %v164
    %s167 = scalar_lea.vmem %s0, 36
    %v168 = vld [vmem:[%s167] sm:$0x1]
    %169 = vrot.lane.b32.xlu0 %v168, 72
    %v170 = vpop.permute.xlu0 %169
    %vm171 = vcmask 605760
    %172 = vst.msk [vmem:[#allocation0] sm:$0x1] %vm171, %v170
    %s173 = scalar_lea.vmem %s0, 35
    %v174 = vld [vmem:[%s173] sm:$0x1]
    %175 = vrot.lane.b32.xlu0 %v174, 70
    %v176 = vpop.permute.xlu0 %175
    %vm177 = vcmask 589360
    %178 = vst.msk [vmem:[#allocation0] sm:$0x1] %vm177, %v176
    %s179 = scalar_lea.vmem %s0, 34
    %v180 = vld [vmem:[%s179] sm:$0x1]
    %181 = vrot.lane.b32.xlu0 %v180, 68
    %v182 = vpop.permute.xlu0 %181
    %vm183 = vcmask 572960
    %184 = vst.msk [vmem:[#allocation0] sm:$0x1] %vm183, %v182
    %s185 = scalar_lea.vmem %s0, 33
    %v186 = vld [vmem:[%s185] sm:$0x1]
    %187 = vrot.lane.b32.xlu0 %v186, 66
    %v188 = vpop.permute.xlu0 %187
    %vm189 = vcmask 556560
    %190 = vst.msk [vmem:[#allocation0] sm:$0x1] %vm189, %v188
    %s191 = scalar_lea.vmem %s0, 32
    %v192 = vld [vmem:[%s191] sm:$0x1]
    %193 = vrot.lane.b32.xlu0 %v192, 64
    %v194 = vpop.permute.xlu0 %193
    %vm195 = vcmask 540160
    %196 = vst.msk [vmem:[#allocation0] sm:$0x1] %vm195, %v194
    %s197 = scalar_lea.vmem %s0, 31
    %v198 = vld [vmem:[%s197] sm:$0x1]
    %199 = vrot.lane.b32.xlu0 %v198, 62
    %v200 = vpop.permute.xlu0 %199
    %vm201 = vcmask 523760
    %202 = vst.msk [vmem:[#allocation0] sm:$0x1] %vm201, %v200
    %s203 = scalar_lea.vmem %s0, 30
    %v204 = vld [vmem:[%s203] sm:$0x1]
    %205 = vrot.lane.b32.xlu0 %v204, 60
    %v206 = vpop.permute.xlu0 %205
    %vm207 = vcmask 507360
    %208 = vst.msk [vmem:[#allocation0] sm:$0x1] %vm207, %v206
    %s209 = scalar_lea.vmem %s0, 29
    %v210 = vld [vmem:[%s209] sm:$0x1]
    %211 = vrot.lane.b32.xlu0 %v210, 58
    %v212 = vpop.permute.xlu0 %211
    %vm213 = vcmask 490960
    %214 = vst.msk [vmem:[#allocation0] sm:$0x1] %vm213, %v212
    %s215 = scalar_lea.vmem %s0, 28
    %v216 = vld [vmem:[%s215] sm:$0x1]
    %217 = vrot.lane.b32.xlu0 %v216, 56
    %v218 = vpop.permute.xlu0 %217
    %vm219 = vcmask 474560
    %220 = vst.msk [vmem:[#allocation0] sm:$0x1] %vm219, %v218
    %s221 = scalar_lea.vmem %s0, 27
    %v222 = vld [vmem:[%s221] sm:$0x1]
    %223 = vrot.lane.b32.xlu0 %v222, 54
    %v224 = vpop.permute.xlu0 %223
    %vm225 = vcmask 458160
    %226 = vst.msk [vmem:[#allocation0] sm:$0x1] %vm225, %v224
    %s227 = scalar_lea.vmem %s0, 26
    %v228 = vld [vmem:[%s227] sm:$0x1]
    %229 = vrot.lane.b32.xlu0 %v228, 52
    %v230 = vpop.permute.xlu0 %229
    %vm231 = vcmask 441760
    %232 = vst.msk [vmem:[#allocation0] sm:$0x1] %vm231, %v230
    %s233 = scalar_lea.vmem %s0, 25
    %v234 = vld [vmem:[%s233] sm:$0x1]
    %235 = vrot.lane.b32.xlu0 %v234, 50
    %v236 = vpop.permute.xlu0 %235
    %vm237 = vcmask 425360
    %238 = vst.msk [vmem:[#allocation0] sm:$0x1] %vm237, %v236
    %s239 = scalar_lea.vmem %s0, 24
    %v240 = vld [vmem:[%s239] sm:$0x1]
    %241 = vrot.lane.b32.xlu0 %v240, 48
    %v242 = vpop.permute.xlu0 %241
    %vm243 = vcmask 408960
    %244 = vst.msk [vmem:[#allocation0] sm:$0x1] %vm243, %v242
    %s245 = scalar_lea.vmem %s0, 23
    %v246 = vld [vmem:[%s245] sm:$0x1]
    %247 = vrot.lane.b32.xlu0 %v246, 46
    %v248 = vpop.permute.xlu0 %247
    %vm249 = vcmask 392560
    %250 = vst.msk [vmem:[#allocation0] sm:$0x1] %vm249, %v248
    %s251 = scalar_lea.vmem %s0, 22
    %v252 = vld [vmem:[%s251] sm:$0x1]
    %253 = vrot.lane.b32.xlu0 %v252, 44
    %v254 = vpop.permute.xlu0 %253
    %vm255 = vcmask 376160
    %256 = vst.msk [vmem:[#allocation0] sm:$0x1] %vm255, %v254
    %s257 = scalar_lea.vmem %s0, 21
    %v258 = vld [vmem:[%s257] sm:$0x1]
    %259 = vrot.lane.b32.xlu0 %v258, 42
    %v260 = vpop.permute.xlu0 %259
    %vm261 = vcmask 359760
    %262 = vst.msk [vmem:[#allocation0] sm:$0x1] %vm261, %v260
    %s263 = scalar_lea.vmem %s0, 20
    %v264 = vld [vmem:[%s263] sm:$0x1]
    %265 = vrot.lane.b32.xlu0 %v264, 40
    %v266 = vpop.permute.xlu0 %265
    %vm267 = vcmask 343360
    %268 = vst.msk [vmem:[#allocation0] sm:$0x1] %vm267, %v266
    %s269 = scalar_lea.vmem %s0, 19
    %v270 = vld [vmem:[%s269] sm:$0x1]
    %271 = vrot.lane.b32.xlu0 %v270, 38
    %v272 = vpop.permute.xlu0 %271
    %vm273 = vcmask 326960
    %274 = vst.msk [vmem:[#allocation0] sm:$0x1] %vm273, %v272
    %s275 = scalar_lea.vmem %s0, 18
    %v276 = vld [vmem:[%s275] sm:$0x1]
    %277 = vrot.lane.b32.xlu0 %v276, 36
    %v278 = vpop.permute.xlu0 %277
    %vm279 = vcmask 310560
    %280 = vst.msk [vmem:[#allocation0] sm:$0x1] %vm279, %v278
    %s281 = scalar_lea.vmem %s0, 17
    %v282 = vld [vmem:[%s281] sm:$0x1]
    %283 = vrot.lane.b32.xlu0 %v282, 34
    %v284 = vpop.permute.xlu0 %283
    %vm285 = vcmask 294160
    %286 = vst.msk [vmem:[#allocation0] sm:$0x1] %vm285, %v284
    %s287 = scalar_lea.vmem %s0, 16
    %v288 = vld [vmem:[%s287] sm:$0x1]
    %289 = vrot.lane.b32.xlu0 %v288, 32
    %v290 = vpop.permute.xlu0 %289
    %vm291 = vcmask 277760
    %292 = vst.msk [vmem:[#allocation0] sm:$0x1] %vm291, %v290
    %s293 = scalar_lea.vmem %s0, 15
    %v294 = vld [vmem:[%s293] sm:$0x1]
    %295 = vrot.lane.b32.xlu0 %v294, 30
    %v296 = vpop.permute.xlu0 %295
    %vm297 = vcmask 261360
    %298 = vst.msk [vmem:[#allocation0] sm:$0x1] %vm297, %v296
    %s299 = scalar_lea.vmem %s0, 14
    %v300 = vld [vmem:[%s299] sm:$0x1]
    %301 = vrot.lane.b32.xlu0 %v300, 28
    %v302 = vpop.permute.xlu0 %301
    %vm303 = vcmask 244960
    %304 = vst.msk [vmem:[#allocation0] sm:$0x1] %vm303, %v302
    %s305 = scalar_lea.vmem %s0, 13
    %v306 = vld [vmem:[%s305] sm:$0x1]
    %307 = vrot.lane.b32.xlu0 %v306, 26
    %v308 = vpop.permute.xlu0 %307
    %vm309 = vcmask 228560
    %310 = vst.msk [vmem:[#allocation0] sm:$0x1] %vm309, %v308
    %s311 = scalar_lea.vmem %s0, 12
    %v312 = vld [vmem:[%s311] sm:$0x1]
    %313 = vrot.lane.b32.xlu0 %v312, 24
    %v314 = vpop.permute.xlu0 %313
    %vm315 = vcmask 212160
    %316 = vst.msk [vmem:[#allocation0] sm:$0x1] %vm315, %v314
    %s317 = scalar_lea.vmem %s0, 11
    %v318 = vld [vmem:[%s317] sm:$0x1]
    %319 = vrot.lane.b32.xlu0 %v318, 22
    %v320 = vpop.permute.xlu0 %319
    %vm321 = vcmask 195760
    %322 = vst.msk [vmem:[#allocation0] sm:$0x1] %vm321, %v320
    %s323 = scalar_lea.vmem %s0, 10
    %v324 = vld [vmem:[%s323] sm:$0x1]
    %325 = vrot.lane.b32.xlu0 %v324, 20
    %v326 = vpop.permute.xlu0 %325
    %vm327 = vcmask 179360
    %328 = vst.msk [vmem:[#allocation0] sm:$0x1] %vm327, %v326
    %s329 = scalar_lea.vmem %s0, 9
    %v330 = vld [vmem:[%s329] sm:$0x1]
    %331 = vrot.lane.b32.xlu0 %v330, 18
    %v332 = vpop.permute.xlu0 %331
    %vm333 = vcmask 162960
    %334 = vst.msk [vmem:[#allocation0] sm:$0x1] %vm333, %v332
    %s335 = scalar_lea.vmem %s0, 8
    %v336 = vld [vmem:[%s335] sm:$0x1]
    %337 = vrot.lane.b32.xlu0 %v336, 16
    %v338 = vpop.permute.xlu0 %337
    %vm339 = vcmask 146560
    %340 = vst.msk [vmem:[#allocation0] sm:$0x1] %vm339, %v338
    %s341 = scalar_lea.vmem %s0, 7
    %v342 = vld [vmem:[%s341] sm:$0x1]
    %343 = vrot.lane.b32.xlu0 %v342, 14
    %v344 = vpop.permute.xlu0 %343
    %vm345 = vcmask 130160
    %346 = vst.msk [vmem:[#allocation0] sm:$0x1] %vm345, %v344
    %s347 = scalar_lea.vmem %s0, 6
    %v348 = vld [vmem:[%s347] sm:$0x1]
    %349 = vrot.lane.b32.xlu0 %v348, 12
    %v350 = vpop.permute.xlu0 %349
    %vm351 = vcmask 113760
    %352 = vst.msk [vmem:[#allocation0] sm:$0x1] %vm351, %v350
    %s353 = scalar_lea.vmem %s0, 5
    %v354 = vld [vmem:[%s353] sm:$0x1]
    %355 = vrot.lane.b32.xlu0 %v354, 10
    %v356 = vpop.permute.xlu0 %355
    %vm357 = vcmask 97360
    %358 = vst.msk [vmem:[#allocation0] sm:$0x1] %vm357, %v356
    %s359 = scalar_lea.vmem %s0, 4
    %v360 = vld [vmem:[%s359] sm:$0x1]
    %361 = vrot.lane.b32.xlu0 %v360, 8
    %v362 = vpop.permute.xlu0 %361
    %vm363 = vcmask 80960
    %364 = vst.msk [vmem:[#allocation0] sm:$0x1] %vm363, %v362
    %s365 = scalar_lea.vmem %s0, 3
    %v366 = vld [vmem:[%s365] sm:$0x1]
    %367 = vrot.lane.b32.xlu0 %v366, 6
    %v368 = vpop.permute.xlu0 %367
    %vm369 = vcmask 64560
    %370 = vst.msk [vmem:[#allocation0] sm:$0x1] %vm369, %v368
    %s371 = scalar_lea.vmem %s0, 2
    %v372 = vld [vmem:[%s371] sm:$0x1]
    %373 = vrot.lane.b32.xlu0 %v372, 4
    %v374 = vpop.permute.xlu0 %373
    %vm375 = vcmask 48160
    %376 = vst.msk [vmem:[#allocation0] sm:$0x1] %vm375, %v374
    %s377 = scalar_lea.vmem %s0, 1
    %v378 = vld [vmem:[%s377] sm:$0x1]
    %379 = vrot.lane.b32.xlu0 %v378, 2
    %v380 = vpop.permute.xlu0 %379
    %vm381 = vcmask 31760
    %382 = vst.msk [vmem:[#allocation0] sm:$0x1] %vm381, %v380
    %s384 = sshllo.u32 0, 1
    %v386 = vld [vmem:[#allocation0] sm:%s384]
    %s387 = sshllo.u32 0, 1
    %388 = vst [vmem:[%s1] sm:%s387] %v386

// kernel: cnn_forward.1
$region0: #{cnn_forward.1}
  #allocation0 [shape = 'u32[]', space=smem, size = 0x4, offset = 0x4, fixed_abs, tag = 'smem constant byte address 0x4 - core index']
  #allocation1 [shape = 'u32[144,128]{1,0:T(1,128)}', space=vmem, size = 0x12000, scoped, tag = 'internal scratch']
  #allocation2 [shape = 'bf16[8,2322]{1,0:T(8,128)(2,1)}', space=vmem, size = 0x9800, scoped, tag = 'scratch operand']
  #allocation3 [shape = 'f32[1]{0:T(128)S(6)}', space=smem, size = 0x200, scoped, tag = 'scoped memory for cnn_forward.1']
  %s0 = inlined_call_operand.vmem [shape: bf16[2,3,10,258], index: 0, kind: input, shape index: {}]
  %s1 = inlined_call_operand.vmem [shape: bf16[2322,128], index: 1, kind: input, shape index: {}]
  %s2 = inlined_call_operand.vmem [shape: f32[1,128], index: 2, kind: input, shape index: {}]
  %s3 = inlined_call_operand.<no memory space> [shape: f32[1], index: 3, kind: input, shape index: {}]
  %s4 = inlined_call_operand.vmem [shape: bf16[128,320], index: 4, kind: input, shape index: {}]
  %s5 = inlined_call_operand.vmem [shape: f32[1,320], index: 5, kind: input, shape index: {}]
  %s6 = inlined_call_operand.vmem [shape: f32[16,128], index: 6, kind: output, shape index: {0}]
  %s7 = inlined_call_operand.vmem [shape: f32[16,320], index: 7, kind: output, shape index: {1}]
  %8 = xla_tuple %s6, %s7
  %s9 = sld [smem:[#allocation0]]
  $region65: #{cnn_forward.1} parent=0
    _
  %s11 = ssub.s32 1, %s9
  %s12 = scalar_select 0, %s11, %s9
  %13 = sst [smem:[#allocation3]] %s3
  loop: start=0, step=1, limit=4
  $region2: #{cnn_forward.1} parent=0 // loop_pre_header
    _
  $region3: #{cnn_forward.1} parent=0 // loop_header
    %s15 = sphi 0, %s19
    %p16 = scmp.ge.s32.totalorder %s15, 4
    %s25 = sphi 0, %s27
    %s28 = sphi 0, %s25
    %s29 = sphi 0, %s28
    %s45 = sphi 0, %s29
    %s49 = sphi 0, %s49
    %s51 = sphi 0, %s49
    %s52 = sphi 0, %s51
    %s66 = sphi 0, %s52
    %s70 = sphi 0, %s70
    %s72 = sphi 0, %s70
    %s73 = sphi 0, %s72
    %s87 = sphi 0, %s73
    %s91 = sphi 0, %s91
    %s93 = sphi 0, %s91
    %s94 = sphi 0, %s93
    %s108 = sphi 0, %s94
    %s112 = sphi 0, %s112
    %s114 = sphi 0, %s112
    %s115 = sphi 0, %s114
    %s129 = sphi 0, %s115
    %s133 = sphi 0, %s133
    %s135 = sphi 0, %s133
    %s136 = sphi 0, %s135
    %s150 = sphi 0, %s136
    %s156 = sphi 0, %s158
    %s159 = sphi 0, %s156
    %s160 = sphi 0, %s159
    %s176 = sphi 0, %s160
    %s182 = sphi 0, %s184
    %s185 = sphi 0, %s182
    %s186 = sphi 0, %s185
    %s202 = sphi 0, %s186
  $region4: #{cnn_forward.1} parent=0 // loop_header_branch
    %18 = sbr.rel (%p16) target = $region8
  $region5: #{cnn_forward.1} parent=0 // loop_body
    %s20 = ssub.s32 %s15, 1
    %s21 = ssub.s32 %s15, 2
    %s22 = sadd.s32 %s15, 1
    %s23 = ssub.s32 %s15, %s22
    %p24 = scmp.eq.s32.totalorder %s23, 0
    %s26 = sadd.s32 %s25, 1
    %s27 = scalar_select %p24, %s25, %s26
    %p30 = pneg %p24
    %p31 = scmp.eq.s32.totalorder %s15, 1
    %p32 = por %p30, %p31
    %p33 = scmp.ne.s32.totalorder %s25, %s28
    %p34 = scmp.eq.s32.totalorder %s15, 0
    %p35 = por %p33, %p34
    %p36 = scmp.ne.s32.totalorder %s25, %s28
    %p37 = scmp.eq.s32.totalorder %s20, 1
    %p38 = por %p36, %p37
    %p39 = scmp.ne.s32.totalorder %s28, %s29
    %p40 = scmp.eq.s32.totalorder %s20, 0
    %p41 = por %p39, %p40
    %p42 = scmp.ne.s32.totalorder %s28, %s29
    %p43 = scmp.eq.s32.totalorder %s21, 1
    %p44 = por %p42, %p43
    %p46 = scmp.ne.s32.totalorder %s29, %s45
    %p47 = scmp.eq.s32.totalorder %s21, 0
    %p48 = por %p46, %p47
    %s50 = sadd.s32 %s49, 1
    %p53 = scmp.eq.s32.totalorder %s15, 1
    %p54 = scmp.ne.s32.totalorder %s49, %s51
    %p55 = scmp.eq.s32.totalorder %s15, 0
    %p56 = por %p54, %p55
    %p57 = scmp.ne.s32.totalorder %s49, %s51
    %p58 = scmp.eq.s32.totalorder %s20, 1
    %p59 = por %p57, %p58
    %p60 = scmp.ne.s32.totalorder %s51, %s52
    %p61 = scmp.eq.s32.totalorder %s20, 0
    %p62 = por %p60, %p61
    %p63 = scmp.ne.s32.totalorder %s51, %s52
    %p64 = scmp.eq.s32.totalorder %s21, 1
    %p65 = por %p63, %p64
    %p67 = scmp.ne.s32.totalorder %s52, %s66
    %p68 = scmp.eq.s32.totalorder %s21, 0
    %p69 = por %p67, %p68
    %s71 = sadd.s32 %s70, 1
    %p74 = scmp.eq.s32.totalorder %s15, 1
    %p75 = scmp.ne.s32.totalorder %s70, %s72
    %p76 = scmp.eq.s32.totalorder %s15, 0
    %p77 = por %p75, %p76
    %p78 = scmp.ne.s32.totalorder %s70, %s72
    %p79 = scmp.eq.s32.totalorder %s20, 1
    %p80 = por %p78, %p79
    %p81 = scmp.ne.s32.totalorder %s72, %s73
    %p82 = scmp.eq.s32.totalorder %s20, 0
    %p83 = por %p81, %p82
    %p84 = scmp.ne.s32.totalorder %s72, %s73
    %p85 = scmp.eq.s32.totalorder %s21, 1
    %p86 = por %p84, %p85
    %p88 = scmp.ne.s32.totalorder %s73, %s87
    %p89 = scmp.eq.s32.totalorder %s21, 0
    %p90 = por %p88, %p89
    %s92 = sadd.s32 %s91, 1
    %p95 = scmp.eq.s32.totalorder %s15, 1
    %p96 = scmp.ne.s32.totalorder %s91, %s93
    %p97 = scmp.eq.s32.totalorder %s15, 0
    %p98 = por %p96, %p97
    %p99 = scmp.ne.s32.totalorder %s91, %s93
    %p100 = scmp.eq.s32.totalorder %s20, 1
    %p101 = por %p99, %p100
    %p102 = scmp.ne.s32.totalorder %s93, %s94
    %p103 = scmp.eq.s32.totalorder %s20, 0
    %p104 = por %p102, %p103
    %p105 = scmp.ne.s32.totalorder %s93, %s94
    %p106 = scmp.eq.s32.totalorder %s21, 1
    %p107 = por %p105, %p106
    %p109 = scmp.ne.s32.totalorder %s94, %s108
    %p110 = scmp.eq.s32.totalorder %s21, 0
    %p111 = por %p109, %p110
    %s113 = sadd.s32 %s112, 1
    %p116 = scmp.eq.s32.totalorder %s15, 1
    %p117 = scmp.ne.s32.totalorder %s112, %s114
    %p118 = scmp.eq.s32.totalorder %s15, 0
    %p119 = por %p117, %p118
    %p120 = scmp.ne.s32.totalorder %s112, %s114
    %p121 = scmp.eq.s32.totalorder %s20, 1
    %p122 = por %p120, %p121
    %p123 = scmp.ne.s32.totalorder %s114, %s115
    %p124 = scmp.eq.s32.totalorder %s20, 0
    %p125 = por %p123, %p124
    %p126 = scmp.ne.s32.totalorder %s114, %s115
    %p127 = scmp.eq.s32.totalorder %s21, 1
    %p128 = por %p126, %p127
    %p130 = scmp.ne.s32.totalorder %s115, %s129
    %p131 = scmp.eq.s32.totalorder %s21, 0
    %p132 = por %p130, %p131
    %s134 = sadd.s32 %s133, 1
    %p137 = scmp.eq.s32.totalorder %s15, 1
    %p138 = scmp.ne.s32.totalorder %s133, %s135
    %p139 = scmp.eq.s32.totalorder %s15, 0
    %p140 = por %p138, %p139
    %p141 = scmp.ne.s32.totalorder %s133, %s135
    %p142 = scmp.eq.s32.totalorder %s20, 1
    %p143 = por %p141, %p142
    %p144 = scmp.ne.s32.totalorder %s135, %s136
    %p145 = scmp.eq.s32.totalorder %s20, 0
    %p146 = por %p144, %p145
    %p147 = scmp.ne.s32.totalorder %s135, %s136
    %p148 = scmp.eq.s32.totalorder %s21, 1
    %p149 = por %p147, %p148
    %p151 = scmp.ne.s32.totalorder %s136, %s150
    %p152 = scmp.eq.s32.totalorder %s21, 0
    %p153 = por %p151, %p152
    %s154 = ssub.s32 %s15, %s22
    %p155 = scmp.eq.s32.totalorder %s154, 0
    %s157 = sadd.s32 %s156, 1
    %s158 = scalar_select %p155, %s156, %s157
    %p161 = pneg %p155
    %p162 = scmp.eq.s32.totalorder %s15, 1
    %p163 = por %p161, %p162
    %p164 = scmp.ne.s32.totalorder %s156, %s159
    %p165 = scmp.eq.s32.totalorder %s15, 0
    %p166 = por %p164, %p165
    %p167 = scmp.ne.s32.totalorder %s156, %s159
    %p168 = scmp.eq.s32.totalorder %s20, 1
    %p169 = por %p167, %p168
    %p170 = scmp.ne.s32.totalorder %s159, %s160
    %p171 = scmp.eq.s32.totalorder %s20, 0
    %p172 = por %p170, %p171
    %p173 = scmp.ne.s32.totalorder %s159, %s160
    %p174 = scmp.eq.s32.totalorder %s21, 1
    %p175 = por %p173, %p174
    %p177 = scmp.ne.s32.totalorder %s160, %s176
    %p178 = scmp.eq.s32.totalorder %s21, 0
    %p179 = por %p177, %p178
    %s180 = ssub.s32 %s15, %s22
    %p181 = scmp.eq.s32.totalorder %s180, 0
    %s183 = sadd.s32 %s182, 1
    %s184 = scalar_select %p181, %s182, %s183
    %p187 = pneg %p181
    %p188 = scmp.eq.s32.totalorder %s15, 1
    %p189 = por %p187, %p188
    %p190 = scmp.ne.s32.totalorder %s182, %s185
    %p191 = scmp.eq.s32.totalorder %s15, 0
    %p192 = por %p190, %p191
    %p193 = scmp.ne.s32.totalorder %s182, %s185
    %p194 = scmp.eq.s32.totalorder %s20, 1
    %p195 = por %p193, %p194
    %p196 = scmp.ne.s32.totalorder %s185, %s186
    %p197 = scmp.eq.s32.totalorder %s20, 0
    %p198 = por %p196, %p197
    %p199 = scmp.ne.s32.totalorder %s185, %s186
    %p200 = scmp.eq.s32.totalorder %s21, 1
    %p201 = por %p199, %p200
    %p203 = scmp.ne.s32.totalorder %s186, %s202
    %p204 = scmp.eq.s32.totalorder %s21, 0
    %p205 = por %p203, %p204
    %p206 = scmp.le.s32.totalorder 1, %s15
    %p207 = scmp.lt.s32.totalorder %s15, 3
    %p208 = pnand %p206, %p207
    %p209 = pneg %p208
    // Predicated region
    $region9: #{cnn_forward.1} parent=5 // pred_check
      _
    $region10: #{cnn_forward.1} parent=5 // pred_check_branch
      %211 = sbr.rel (%p208) target = $region12
    $region11: #{cnn_forward.1} parent=5 // pred_region
      %s212 = ssub.s32 %s15, 1
      // Predicated region
      $region13: #{cnn_forward.1} parent=11 // pred_check
        %p213 = pneg %p62
      $region14: #{cnn_forward.1} parent=11 // pred_check_branch
        %215 = sbr.rel (%p213) target = $region16
      $region15: #{cnn_forward.1} parent=11 // pred_region
        _
      $region16: #{cnn_forward.1} parent=11 // pred_fallthru
        _
      // Predicated region
      $region17: #{cnn_forward.1} parent=11 // pred_check
        %p216 = pneg %p83
      $region18: #{cnn_forward.1} parent=11 // pred_check_branch
        %218 = sbr.rel (%p216) target = $region20
      $region19: #{cnn_forward.1} parent=11 // pred_region
        _
      $region20: #{cnn_forward.1} parent=11 // pred_fallthru
        _
      // Predicated region
      $region21: #{cnn_forward.1} parent=11 // pred_check
        %p219 = pneg %p104
      $region22: #{cnn_forward.1} parent=11 // pred_check_branch
        %221 = sbr.rel (%p219) target = $region24
      $region23: #{cnn_forward.1} parent=11 // pred_region
        _
      $region24: #{cnn_forward.1} parent=11 // pred_fallthru
        _
      // Predicated region
      $region25: #{cnn_forward.1} parent=11 // pred_check
        %p222 = pneg %p125
      $region26: #{cnn_forward.1} parent=11 // pred_check_branch
        %224 = sbr.rel (%p222) target = $region28
      $region27: #{cnn_forward.1} parent=11 // pred_region
        _
      $region28: #{cnn_forward.1} parent=11 // pred_fallthru
        _
      // Predicated region
      $region29: #{cnn_forward.1} parent=11 // pred_check
        %p225 = pneg %p146
      $region30: #{cnn_forward.1} parent=11 // pred_check_branch
        %227 = sbr.rel (%p225) target = $region32
      $region31: #{cnn_forward.1} parent=11 // pred_region
        _
      $region32: #{cnn_forward.1} parent=11 // pred_fallthru
        _
    $region12: #{cnn_forward.1} parent=5 // pred_fallthru
      _
    %p228 = scmp.lt.s32.totalorder %s15, 2
    // Predicated region
    $region33: #{cnn_forward.1} parent=5 // pred_check
      %p229 = pneg %p228
    $region34: #{cnn_forward.1} parent=5 // pred_check_branch
      %231 = sbr.rel (%p229) target = $region36
    $region35: #{cnn_forward.1} parent=5 // pred_region
      // Predicated region
      $region37: #{cnn_forward.1} parent=35 // pred_check
        %p232 = pneg %p35
      $region38: #{cnn_forward.1} parent=35 // pred_check_branch
        %234 = sbr.rel (%p232) target = $region40
      $region39: #{cnn_forward.1} parent=35 // pred_region
        %p235 = scmp.lt.s32.totalorder %s15, 1
        %s236 = scalar_select %p235, %s15, 1
        %s237 = smul.addr %s236, 18
        %s238 = smul.addr %s237, 4
        %s239 = scalar_lea.vmem %s0, %s238
      $region40: #{cnn_forward.1} parent=35 // pred_fallthru
        _
    $region36: #{cnn_forward.1} parent=5 // pred_fallthru
      _
    %p240 = scmp.le.s32.totalorder 1, %s15
    %p241 = scmp.lt.s32.totalorder %s15, 3
    %p242 = pnand %p240, %p241
    %p243 = pneg %p242
    // Predicated region
    $region41: #{cnn_forward.1} parent=5 // pred_check
      _
    $region42: #{cnn_forward.1} parent=5 // pred_check_branch
      %245 = sbr.rel (%p242) target = $region44
    $region43: #{cnn_forward.1} parent=5 // pred_region
      %s246 = ssub.s32 %s15, 1
      %p247 = scmp.lt.s32.totalorder %s20, 1
      %s248 = scalar_select %p247, %s20, 1
      %s249 = smul.addr %s248, 18
      %s250 = smul.addr %s249, 4
      %s251 = scalar_lea.vmem %s0, %s250
      %p252 = pneg %p41
      %p253 = pneg %p38
      %p254 = pneg %p62
      %p255 = pneg %p59
      %p256 = pneg %p83
      %p257 = pneg %p80
      %p258 = pneg %p104
      %p259 = pneg %p101
      %p260 = pneg %p125
      %p261 = pneg %p122
      %p262 = pneg %p146
      %p263 = pneg %p143
      %p264 = pneg %p172
      %p265 = pneg %p169
      %p266 = scmp.lt.s32.totalorder %s20, 1
      %s267 = scalar_select %p266, %s20, 1
      %s268 = smul.addr %s267, 8
      %s269 = scalar_lea.vmem %s6, %s268
      %p270 = pneg %p198
      %p271 = pneg %p195
      %p272 = scmp.lt.s32.totalorder %s20, 1
      %s273 = scalar_select %p272, %s20, 1
      %s274 = smul.addr %s273, 3
      %s275 = smul.addr %s274, 8
      %s276 = scalar_lea.vmem %s7, %s275
      %p277 = scmp.lt.s32.totalorder %s20, 1
      %s278 = scalar_select %p277, %s20, 1
      %s279 = smul.addr %s278, 18
      %s280 = smul.addr %s279, 4
      %s281 = scalar_lea.vmem %s0, %s280
      %p282 = scmp.lt.s32.totalorder %s20, 1
      %s283 = scalar_select %p282, %s20, 1
      %s284 = smul.addr %s283, 8
      %s285 = scalar_lea.vmem %s6, %s284
      %p286 = scmp.lt.s32.totalorder %s20, 1
      %s287 = scalar_select %p286, %s20, 1
      %s288 = smul.addr %s287, 3
      %s289 = smul.addr %s288, 8
      %s290 = scalar_lea.vmem %s7, %s289
      %v292 = vld [vmem:[%s281] sm:$0xff]
      %v293 = vld [vmem:[%s281 + $0x8] sm:$0xf]
      %v294 = vld [vmem:[%s281 + $0xc] sm:$0x11]
      %v295 = vld [vmem:[%s281 + $0x14] sm:$0x1]
      %296 = vst [vmem:[#allocation2] sm:$0xff] %v292
      %vm297 = vcmask 11264
      %298 = vst.msk [vmem:[#allocation2 + $0x8] sm:$0xf] %vm297, %v293
      %vm299 = vsmask.f32 3328
      %vm300 = vsmask.f32 7440
      %vm301 = vmor %vm299, %vm300
      %v303 = vshrl.u32 %v292, 16
      %v305 = vrot.slane %v303, 4
      %v306 = vshll.u32 %v292, 16
      %v308 = vrot.slane %v306, 5
      %v309 = vor.u32 %v305, %v308
      %v310 = vrot.slane %v309, 4
      %v312 = vshll.u32 %v294, 16
      %v314 = vrot.slane %v312, 5
      %v315 = vsel %vm301, %v310, %v314
      %v317 = vshrl.u32 %v293, 16
      %v319 = vrot.slane %v317, 4
      %v320 = vshll.u32 %v293, 16
      %v322 = vrot.slane %v320, 5
      %v323 = vor.u32 %v319, %v322
      %v324 = vrot.slane %v323, 4
      %v326 = vshll.u32 %v295, 16
      %v328 = vrot.slane %v326, 5
      %v329 = vsel %vm301, %v324, %v328
      %330 = vrot.lane.b32.xlu0 %v315, 2
      %v331 = vpop.permute.xlu0 %330
      %332 = vrot.lane.b32.xlu0 %v329, 2
      %v333 = vpop.permute.xlu0 %332
      %v334 = vrot.slane %v331, 4
      %vm335 = vcmask 15360
      %v336 = vsel %vm335, %v334, %v331
      %v337 = vsel %vm335, %v334, %v333
      %vm340 = vcmask 1043472
      %vm341 = vcmask 1047556
      %vm342 = vmor %vm341, %vm340
      %343 = vst.msk [vmem:[#allocation2 + $0x8] sm:$0xff] %vm342, %v336
      %vm344 = vcmask 27648
      %345 = vst.msk [vmem:[#allocation2 + $0x10] sm:$0xf] %vm344, %v337
      %vm350 = vcmask 1042432
      %vm351 = vcmask 1046532
      %vm352 = vmor %vm350, %vm351
      %v353 = vrot.slane %v292, 5
      %v354 = vrot.slane %v353, 4
      %v355 = vrot.slane %v294, 5
      %v356 = vsel %vm352, %v354, %v355
      %v357 = vrot.slane %v293, 5
      %v358 = vrot.slane %v357, 4
      %v359 = vrot.slane %v295, 5
      %v360 = vsel %vm352, %v358, %v359
      %361 = vrot.lane.b32.xlu0 %v356, 4
      %v362 = vpop.permute.xlu0 %361
      %363 = vrot.lane.b32.xlu0 %v360, 4
      %v364 = vpop.permute.xlu0 %363
      %v365 = vrot.slane %v362, 4
      %vm366 = vcmask 31744
      %v367 = vsel %vm366, %v365, %v362
      %v368 = vsel %vm366, %v365, %v364
      %vm371 = vcmask 1043488
      %vm372 = vmor %vm341, %vm371
      %373 = vst.msk [vmem:[#allocation2 + $0x10] sm:$0xff] %vm372, %v367
      %vm374 = vcmask 44032
      %375 = vst.msk [vmem:[#allocation2 + $0x18] sm:$0xf] %vm374, %v368
      %s376 = scalar_lea.vmem %s281, 24
      %v377 = vld [vmem:[%s376] sm:$0xff]
      %v378 = vld [vmem:[%s376 + $0x8] sm:$0xf]
      %v379 = vld [vmem:[%s376 + $0xc] sm:$0x11]
      %v380 = vld [vmem:[%s376 + $0x14] sm:$0x1]
      %383 = vrot.lane.b32.xlu0 %v377, 6
      %v384 = vpop.permute.xlu0 %383
      %385 = vrot.lane.b32.xlu0 %v378, 6
      %v386 = vpop.permute.xlu0 %385
      %v387 = vrot.slane %v384, 4
      %vm388 = vcmask 48128
      %v389 = vsel %vm388, %v387, %v384
      %v390 = vsel %vm388, %v387, %v386
      %vm393 = vcmask 1043504
      %vm394 = vmor %vm341, %vm393
      %395 = vst.msk [vmem:[#allocation2 + $0x18] sm:$0xff] %vm394, %v389
      %vm396 = vcmask 60416
      %397 = vst.msk [vmem:[#allocation2 + $0x20] sm:$0xf] %vm396, %v390
      %v399 = vshrl.u32 %v377, 16
      %v401 = vrot.slane %v399, 4
      %v402 = vshll.u32 %v377, 16
      %v404 = vrot.slane %v402, 5
      %v405 = vor.u32 %v401, %v404
      %v406 = vrot.slane %v405, 4
      %v408 = vshll.u32 %v379, 16
      %v410 = vrot.slane %v408, 5
      %v411 = vsel %vm301, %v406, %v410
      %v413 = vshrl.u32 %v378, 16
      %v415 = vrot.slane %v413, 4
      %v416 = vshll.u32 %v378, 16
      %v418 = vrot.slane %v416, 5
      %v419 = vor.u32 %v415, %v418
      %v420 = vrot.slane %v419, 4
      %v422 = vshll.u32 %v380, 16
      %v424 = vrot.slane %v422, 5
      %v425 = vsel %vm301, %v420, %v424
      %426 = vrot.lane.b32.xlu0 %v411, 8
      %v427 = vpop.permute.xlu0 %426
      %428 = vrot.lane.b32.xlu0 %v425, 8
      %v429 = vpop.permute.xlu0 %428
      %v430 = vrot.slane %v427, 4
      %vm431 = vcmask 64512
      %v432 = vsel %vm431, %v430, %v427
      %v433 = vsel %vm431, %v430, %v429
      %vm436 = vcmask 1043520
      %vm437 = vmor %vm341, %vm436
      %438 = vst.msk [vmem:[#allocation2 + $0x20] sm:$0xff] %vm437, %v432
      %vm439 = vcmask 76800
      %440 = vst.msk [vmem:[#allocation2 + $0x28] sm:$0xf] %vm439, %v433
      %v443 = vrot.slane %v377, 5
      %v444 = vrot.slane %v443, 4
      %v445 = vrot.slane %v379, 5
      %v446 = vsel %vm352, %v444, %v445
      %v447 = vrot.slane %v378, 5
      %v448 = vrot.slane %v447, 4
      %v449 = vrot.slane %v380, 5
      %v450 = vsel %vm352, %v448, %v449
      %451 = vrot.lane.b32.xlu0 %v446, 10
      %v452 = vpop.permute.xlu0 %451
      %453 = vrot.lane.b32.xlu0 %v450, 10
      %v454 = vpop.permute.xlu0 %453
      %v455 = vrot.slane %v452, 4
      %vm456 = vcmask 80896
      %v457 = vsel %vm456, %v455, %v452
      %v458 = vsel %vm456, %v455, %v454
      %vm461 = vcmask 1043536
      %vm462 = vmor %vm341, %vm461
      %463 = vst.msk [vmem:[#allocation2 + $0x28] sm:$0xff] %vm462, %v457
      %vm464 = vcmask 93184
      %465 = vst.msk [vmem:[#allocation2 + $0x30] sm:$0xf] %vm464, %v458
      %s466 = scalar_lea.vmem %s281, 48
      %v467 = vld [vmem:[%s466] sm:$0xff]
      %v468 = vld [vmem:[%s466 + $0x8] sm:$0xf]
      %v469 = vld [vmem:[%s466 + $0xc] sm:$0x11]
      %v470 = vld [vmem:[%s466 + $0x14] sm:$0x1]
      %473 = vrot.lane.b32.xlu0 %v467, 12
      %v474 = vpop.permute.xlu0 %473
      %475 = vrot.lane.b32.xlu0 %v468, 12
      %v476 = vpop.permute.xlu0 %475
      %v477 = vrot.slane %v474, 4
      %vm478 = vcmask 97280
      %v479 = vsel %vm478, %v477, %v474
      %v480 = vsel %vm478, %v477, %v476
      %vm483 = vcmask 1043552
      %vm484 = vmor %vm341, %vm483
      %485 = vst.msk [vmem:[#allocation2 + $0x30] sm:$0xff] %vm484, %v479
      %vm486 = vcmask 109568
      %487 = vst.msk [vmem:[#allocation2 + $0x38] sm:$0xf] %vm486, %v480
      %v489 = vshrl.u32 %v467, 16
      %v491 = vrot.slane %v489, 4
      %v492 = vshll.u32 %v467, 16
      %v494 = vrot.slane %v492, 5
      %v495 = vor.u32 %v491, %v494
      %v496 = vrot.slane %v495, 4
      %v498 = vshll.u32 %v469, 16
      %v500 = vrot.slane %v498, 5
      %v501 = vsel %vm301, %v496, %v500
      %v503 = vshrl.u32 %v468, 16
      %v505 = vrot.slane %v503, 4
      %v506 = vshll.u32 %v468, 16
      %v508 = vrot.slane %v506, 5
      %v509 = vor.u32 %v505, %v508
      %v510 = vrot.slane %v509, 4
      %v512 = vshll.u32 %v470, 16
      %v514 = vrot.slane %v512, 5
      %v515 = vsel %vm301, %v510, %v514
      %516 = vrot.lane.b32.xlu0 %v501, 14
      %v517 = vpop.permute.xlu0 %516
      %518 = vrot.lane.b32.xlu0 %v515, 14
      %v519 = vpop.permute.xlu0 %518
      %v520 = vrot.slane %v517, 4
      %vm521 = vcmask 113664
      %v522 = vsel %vm521, %v520, %v517
      %v523 = vsel %vm521, %v520, %v519
      %vm526 = vcmask 1043568
      %vm527 = vmor %vm341, %vm526
      %528 = vst.msk [vmem:[#allocation2 + $0x38] sm:$0xff] %vm527, %v522
      %vm529 = vcmask 125952
      %530 = vst.msk [vmem:[#allocation2 + $0x40] sm:$0xf] %vm529, %v523
      %v533 = vrot.slane %v467, 5
      %v534 = vrot.slane %v533, 4
      %v535 = vrot.slane %v469, 5
      %v536 = vsel %vm352, %v534, %v535
      %v537 = vrot.slane %v468, 5
      %v538 = vrot.slane %v537, 4
      %v539 = vrot.slane %v470, 5
      %v540 = vsel %vm352, %v538, %v539
      %541 = vrot.lane.b32.xlu0 %v536, 16
      %v542 = vpop.permute.xlu0 %541
      %543 = vrot.lane.b32.xlu0 %v540, 16
      %v544 = vpop.permute.xlu0 %543
      %v545 = vrot.slane %v542, 4
      %vm546 = vcmask 130048
      %v547 = vsel %vm546, %v545, %v542
      %v548 = vsel %vm546, %v545, %v544
      %vm551 = vcmask 1043584
      %vm552 = vmor %vm341, %vm551
      %553 = vst.msk [vmem:[#allocation2 + $0x40] sm:$0xff] %vm552, %v547
      %vm554 = vcmask 142336
      %555 = vst.msk [vmem:[#allocation2 + $0x48] sm:$0xf] %vm554, %v548
      %v556 = vld [vmem:[#allocation2] sm:$0xff]
      %v557 = vld [vmem:[#allocation2 + $0x8] sm:$0xff]
      %v558 = vld [vmem:[#allocation2 + $0x10] sm:$0xff]
      %v559 = vld [vmem:[#allocation2 + $0x18] sm:$0xff]
      %v560 = vld [vmem:[#allocation2 + $0x20] sm:$0xff]
      %v561 = vld [vmem:[#allocation2 + $0x28] sm:$0xff]
      %v562 = vld [vmem:[#allocation2 + $0x30] sm:$0xff]
      %v563 = vld [vmem:[#allocation2 + $0x38] sm:$0xff]
      %v564 = vld [vmem:[#allocation2 + $0x40] sm:$0xff]
      %v565 = vld [vmem:[#allocation2 + $0x48] sm:$0xf]
      %v566 = vld [vmem:[%s1] sm:$0xf]
      %v567 = vld [vmem:[%s1 + $0x4] sm:$0xf]
      %v568 = vld [vmem:[%s1 + $0x8] sm:$0xf]
      %v569 = vld [vmem:[%s1 + $0xc] sm:$0xf]
      %v570 = vld [vmem:[%s1 + $0x10] sm:$0xf]
      %v571 = vld [vmem:[%s1 + $0x14] sm:$0xf]
      %v572 = vld [vmem:[%s1 + $0x18] sm:$0xf]
      %v573 = vld [vmem:[%s1 + $0x1c] sm:$0xf]
      %v574 = vld [vmem:[%s1 + $0x20] sm:$0xf]
      %v575 = vld [vmem:[%s1 + $0x24] sm:$0xf]
      %v576 = vld [vmem:[%s1 + $0x28] sm:$0xf]
      %v577 = vld [vmem:[%s1 + $0x2c] sm:$0xf]
      %v578 = vld [vmem:[%s1 + $0x30] sm:$0xf]
      %v579 = vld [vmem:[%s1 + $0x34] sm:$0xf]
      %v580 = vld [vmem:[%s1 + $0x38] sm:$0xf]
      %v581 = vld [vmem:[%s1 + $0x3c] sm:$0xf]
      %v582 = vld [vmem:[%s1 + $0x40] sm:$0xf]
      %v583 = vld [vmem:[%s1 + $0x44] sm:$0xf]
      %v584 = vld [vmem:[%s1 + $0x48] sm:$0xf]
      %v585 = vld [vmem:[%s1 + $0x4c] sm:$0xf]
      %v586 = vld [vmem:[%s1 + $0x50] sm:$0xf]
      %v587 = vld [vmem:[%s1 + $0x54] sm:$0xf]
      %v588 = vld [vmem:[%s1 + $0x58] sm:$0xf]
      %v589 = vld [vmem:[%s1 + $0x5c] sm:$0xf]
      %v590 = vld [vmem:[%s1 + $0x60] sm:$0xf]
      %v591 = vld [vmem:[%s1 + $0x64] sm:$0xf]
      %v592 = vld [vmem:[%s1 + $0x68] sm:$0xf]
      %v593 = vld [vmem:[%s1 + $0x6c] sm:$0xf]
      %v594 = vld [vmem:[%s1 + $0x70] sm:$0xf]
      %v595 = vld [vmem:[%s1 + $0x74] sm:$0xf]
      %v596 = vld [vmem:[%s1 + $0x78] sm:$0xf]
      %v597 = vld [vmem:[%s1 + $0x7c] sm:$0xf]
      %v598 = vld [vmem:[%s1 + $0x80] sm:$0xf]
      %v599 = vld [vmem:[%s1 + $0x84] sm:$0xf]
      %v600 = vld [vmem:[%s1 + $0x88] sm:$0xf]
      %v601 = vld [vmem:[%s1 + $0x8c] sm:$0xf]
      %v602 = vld [vmem:[%s1 + $0x90] sm:$0xf]
      %v603 = vld [vmem:[%s1 + $0x94] sm:$0xf]
      %v604 = vld [vmem:[%s1 + $0x98] sm:$0xf]
      %v605 = vld [vmem:[%s1 + $0x9c] sm:$0xf]
      %v606 = vld [vmem:[%s1 + $0xa0] sm:$0xf]
      %v607 = vld [vmem:[%s1 + $0xa4] sm:$0xf]
      %v608 = vld [vmem:[%s1 + $0xa8] sm:$0xf]
      %v609 = vld [vmem:[%s1 + $0xac] sm:$0xf]
      %v610 = vld [vmem:[%s1 + $0xb0] sm:$0xf]
      %v611 = vld [vmem:[%s1 + $0xb4] sm:$0xf]
      %v612 = vld [vmem:[%s1 + $0xb8] sm:$0xf]
      %v613 = vld [vmem:[%s1 + $0xbc] sm:$0xf]
      %v614 = vld [vmem:[%s1 + $0xc0] sm:$0xf]
      %v615 = vld [vmem:[%s1 + $0xc4] sm:$0xf]
      %v616 = vld [vmem:[%s1 + $0xc8] sm:$0xf]
      %v617 = vld [vmem:[%s1 + $0xcc] sm:$0xf]
      %v618 = vld [vmem:[%s1 + $0xd0] sm:$0xf]
      %v619 = vld [vmem:[%s1 + $0xd4] sm:$0xf]
      %v620 = vld [vmem:[%s1 + $0xd8] sm:$0xf]
      %v621 = vld [vmem:[%s1 + $0xdc] sm:$0xf]
      %v622 = vld [vmem:[%s1 + $0xe0] sm:$0xf]
      %v623 = vld [vmem:[%s1 + $0xe4] sm:$0xf]
      %v624 = vld [vmem:[%s1 + $0xe8] sm:$0xf]
      %v625 = vld [vmem:[%s1 + $0xec] sm:$0xf]
      %v626 = vld [vmem:[%s1 + $0xf0] sm:$0xf]
      %v627 = vld [vmem:[%s1 + $0xf4] sm:$0xf]
      %v628 = vld [vmem:[%s1 + $0xf8] sm:$0xf]
      %v629 = vld [vmem:[%s1 + $0xfc] sm:$0xf]
      %v630 = vld [vmem:[%s1 + $0x100] sm:$0xf]
      %v631 = vld [vmem:[%s1 + $0x104] sm:$0xf]
      %v632 = vld [vmem:[%s1 + $0x108] sm:$0xf]
      %v633 = vld [vmem:[%s1 + $0x10c] sm:$0xf]
      %v634 = vld [vmem:[%s1 + $0x110] sm:$0xf]
      %v635 = vld [vmem:[%s1 + $0x114] sm:$0xf]
      %v636 = vld [vmem:[%s1 + $0x118] sm:$0xf]
      %v637 = vld [vmem:[%s1 + $0x11c] sm:$0xf]
      %v638 = vld [vmem:[%s1 + $0x120] sm:$0xf]
      %v639 = vld [vmem:[%s1 + $0x124] sm:$0xf]
      %v640 = vld [vmem:[%s1 + $0x128] sm:$0xf]
      %v641 = vld [vmem:[%s1 + $0x12c] sm:$0xf]
      %v642 = vld [vmem:[%s1 + $0x130] sm:$0xf]
      %v643 = vld [vmem:[%s1 + $0x134] sm:$0xf]
      %v644 = vld [vmem:[%s1 + $0x138] sm:$0xf]
      %v645 = vld [vmem:[%s1 + $0x13c] sm:$0xf]
      %v646 = vld [vmem:[%s1 + $0x140] sm:$0xf]
      %v647 = vld [vmem:[%s1 + $0x144] sm:$0xf]
      %v648 = vld [vmem:[%s1 + $0x148] sm:$0xf]
      %v649 = vld [vmem:[%s1 + $0x14c] sm:$0xf]
      %v650 = vld [vmem:[%s1 + $0x150] sm:$0xf]
      %v651 = vld [vmem:[%s1 + $0x154] sm:$0xf]
      %v652 = vld [vmem:[%s1 + $0x158] sm:$0xf]
      %v653 = vld [vmem:[%s1 + $0x15c] sm:$0xf]
      %v654 = vld [vmem:[%s1 + $0x160] sm:$0xf]
      %v655 = vld [vmem:[%s1 + $0x164] sm:$0xf]
      %v656 = vld [vmem:[%s1 + $0x168] sm:$0xf]
      %v657 = vld [vmem:[%s1 + $0x16c] sm:$0xf]
      %v658 = vld [vmem:[%s1 + $0x170] sm:$0xf]
      %v659 = vld [vmem:[%s1 + $0x174] sm:$0xf]
      %v660 = vld [vmem:[%s1 + $0x178] sm:$0xf]
      %v661 = vld [vmem:[%s1 + $0x17c] sm:$0xf]
      %v662 = vld [vmem:[%s1 + $0x180] sm:$0xf]
      %v663 = vld [vmem:[%s1 + $0x184] sm:$0xf]
      %v664 = vld [vmem:[%s1 + $0x188] sm:$0xf]
      %v665 = vld [vmem:[%s1 + $0x18c] sm:$0xf]
      %v666 = vld [vmem:[%s1 + $0x190] sm:$0xf]
      %v667 = vld [vmem:[%s1 + $0x194] sm:$0xf]
      %v668 = vld [vmem:[%s1 + $0x198] sm:$0xf]
      %v669 = vld [vmem:[%s1 + $0x19c] sm:$0xf]
      %v670 = vld [vmem:[%s1 + $0x1a0] sm:$0xf]
      %v671 = vld [vmem:[%s1 + $0x1a4] sm:$0xf]
      %v672 = vld [vmem:[%s1 + $0x1a8] sm:$0xf]
      %v673 = vld [vmem:[%s1 + $0x1ac] sm:$0xf]
      %v674 = vld [vmem:[%s1 + $0x1b0] sm:$0xf]
      %v675 = vld [vmem:[%s1 + $0x1b4] sm:$0xf]
      %v676 = vld [vmem:[%s1 + $0x1b8] sm:$0xf]
      %v677 = vld [vmem:[%s1 + $0x1bc] sm:$0xf]
      %v678 = vld [vmem:[%s1 + $0x1c0] sm:$0xf]
      %v679 = vld [vmem:[%s1 + $0x1c4] sm:$0xf]
      %v680 = vld [vmem:[%s1 + $0x1c8] sm:$0xf]
      %v681 = vld [vmem:[%s1 + $0x1cc] sm:$0xf]
      %v682 = vld [vmem:[%s1 + $0x1d0] sm:$0xf]
      %v683 = vld [vmem:[%s1 + $0x1d4] sm:$0xf]
      %v684 = vld [vmem:[%s1 + $0x1d8] sm:$0xf]
      %v685 = vld [vmem:[%s1 + $0x1dc] sm:$0xf]
      %v686 = vld [vmem:[%s1 + $0x1e0] sm:$0xf]
      %v687 = vld [vmem:[%s1 + $0x1e4] sm:$0xf]
      %v688 = vld [vmem:[%s1 + $0x1e8] sm:$0xf]
      %v689 = vld [vmem:[%s1 + $0x1ec] sm:$0xf]
      %v690 = vld [vmem:[%s1 + $0x1f0] sm:$0xf]
      %v691 = vld [vmem:[%s1 + $0x1f4] sm:$0xf]
      %v692 = vld [vmem:[%s1 + $0x1f8] sm:$0xf]
      %v693 = vld [vmem:[%s1 + $0x1fc] sm:$0xf]
      %v694 = vld [vmem:[%s1 + $0x200] sm:$0xf]
      %v695 = vld [vmem:[%s1 + $0x204] sm:$0xf]
      %v696 = vld [vmem:[%s1 + $0x208] sm:$0xf]
      %v697 = vld [vmem:[%s1 + $0x20c] sm:$0xf]
      %v698 = vld [vmem:[%s1 + $0x210] sm:$0xf]
      %v699 = vld [vmem:[%s1 + $0x214] sm:$0xf]
      %v700 = vld [vmem:[%s1 + $0x218] sm:$0xf]
      %v701 = vld [vmem:[%s1 + $0x21c] sm:$0xf]
      %v702 = vld [vmem:[%s1 + $0x220] sm:$0xf]
      %v703 = vld [vmem:[%s1 + $0x224] sm:$0xf]
      %v704 = vld [vmem:[%s1 + $0x228] sm:$0xf]
      %v705 = vld [vmem:[%s1 + $0x22c] sm:$0xf]
      %v706 = vld [vmem:[%s1 + $0x230] sm:$0xf]
      %v707 = vld [vmem:[%s1 + $0x234] sm:$0xf]
      %v708 = vld [vmem:[%s1 + $0x238] sm:$0xf]
      %v709 = vld [vmem:[%s1 + $0x23c] sm:$0xf]
      %v710 = vld [vmem:[%s1 + $0x240] sm:$0xf]
      %v711 = vld [vmem:[%s1 + $0x244] sm:$0xf]
      %v712 = vld [vmem:[%s1 + $0x248] sm:$0xf]
      %v713 = vld [vmem:[%s1 + $0x24c] sm:$0xf]
      %v714 = vld [vmem:[%s1 + $0x250] sm:$0xf]
      %v715 = vld [vmem:[%s1 + $0x254] sm:$0xf]
      %v716 = vld [vmem:[%s1 + $0x258] sm:$0xf]
      %v717 = vld [vmem:[%s1 + $0x25c] sm:$0xf]
      %v718 = vld [vmem:[%s1 + $0x260] sm:$0xf]
      %v719 = vld [vmem:[%s1 + $0x264] sm:$0xf]
      %v720 = vld [vmem:[%s1 + $0x268] sm:$0xf]
      %v721 = vld [vmem:[%s1 + $0x26c] sm:$0xf]
      %v722 = vld [vmem:[%s1 + $0x270] sm:$0xf]
      %v723 = vld [vmem:[%s1 + $0x274] sm:$0xf]
      %v724 = vld [vmem:[%s1 + $0x278] sm:$0xf]
      %v725 = vld [vmem:[%s1 + $0x27c] sm:$0xf]
      %v726 = vld [vmem:[%s1 + $0x280] sm:$0xf]
      %v727 = vld [vmem:[%s1 + $0x284] sm:$0xf]
      %v728 = vld [vmem:[%s1 + $0x288] sm:$0xf]
      %v729 = vld [vmem:[%s1 + $0x28c] sm:$0xf]
      %v730 = vld [vmem:[%s1 + $0x290] sm:$0xf]
      %v731 = vld [vmem:[%s1 + $0x294] sm:$0xf]
      %v732 = vld [vmem:[%s1 + $0x298] sm:$0xf]
      %v733 = vld [vmem:[%s1 + $0x29c] sm:$0xf]
      %v734 = vld [vmem:[%s1 + $0x2a0] sm:$0xf]
      %v735 = vld [vmem:[%s1 + $0x2a4] sm:$0xf]
      %v736 = vld [vmem:[%s1 + $0x2a8] sm:$0xf]
      %v737 = vld [vmem:[%s1 + $0x2ac] sm:$0xf]
      %v738 = vld [vmem:[%s1 + $0x2b0] sm:$0xf]
      %v739 = vld [vmem:[%s1 + $0x2b4] sm:$0xf]
      %v740 = vld [vmem:[%s1 + $0x2b8] sm:$0xf]
      %v741 = vld [vmem:[%s1 + $0x2bc] sm:$0xf]
      %v742 = vld [vmem:[%s1 + $0x2c0] sm:$0xf]
      %v743 = vld [vmem:[%s1 + $0x2c4] sm:$0xf]
      %v744 = vld [vmem:[%s1 + $0x2c8] sm:$0xf]
      %v745 = vld [vmem:[%s1 + $0x2cc] sm:$0xf]
      %v746 = vld [vmem:[%s1 + $0x2d0] sm:$0xf]
      %v747 = vld [vmem:[%s1 + $0x2d4] sm:$0xf]
      %v748 = vld [vmem:[%s1 + $0x2d8] sm:$0xf]
      %v749 = vld [vmem:[%s1 + $0x2dc] sm:$0xf]
      %v750 = vld [vmem:[%s1 + $0x2e0] sm:$0xf]
      %v751 = vld [vmem:[%s1 + $0x2e4] sm:$0xf]
      %v752 = vld [vmem:[%s1 + $0x2e8] sm:$0xf]
      %v753 = vld [vmem:[%s1 + $0x2ec] sm:$0xf]
      %v754 = vld [vmem:[%s1 + $0x2f0] sm:$0xf]
      %v755 = vld [vmem:[%s1 + $0x2f4] sm:$0xf]
      %v756 = vld [vmem:[%s1 + $0x2f8] sm:$0xf]
      %v757 = vld [vmem:[%s1 + $0x2fc] sm:$0xf]
      %v758 = vld [vmem:[%s1 + $0x300] sm:$0xf]
      %v759 = vld [vmem:[%s1 + $0x304] sm:$0xf]
      %v760 = vld [vmem:[%s1 + $0x308] sm:$0xf]
      %v761 = vld [vmem:[%s1 + $0x30c] sm:$0xf]
      %v762 = vld [vmem:[%s1 + $0x310] sm:$0xf]
      %v763 = vld [vmem:[%s1 + $0x314] sm:$0xf]
      %v764 = vld [vmem:[%s1 + $0x318] sm:$0xf]
      %v765 = vld [vmem:[%s1 + $0x31c] sm:$0xf]
      %v766 = vld [vmem:[%s1 + $0x320] sm:$0xf]
      %v767 = vld [vmem:[%s1 + $0x324] sm:$0xf]
      %v768 = vld [vmem:[%s1 + $0x328] sm:$0xf]
      %v769 = vld [vmem:[%s1 + $0x32c] sm:$0xf]
      %v770 = vld [vmem:[%s1 + $0x330] sm:$0xf]
      %v771 = vld [vmem:[%s1 + $0x334] sm:$0xf]
      %v772 = vld [vmem:[%s1 + $0x338] sm:$0xf]
      %v773 = vld [vmem:[%s1 + $0x33c] sm:$0xf]
      %v774 = vld [vmem:[%s1 + $0x340] sm:$0xf]
      %v775 = vld [vmem:[%s1 + $0x344] sm:$0xf]
      %v776 = vld [vmem:[%s1 + $0x348] sm:$0xf]
      %v777 = vld [vmem:[%s1 + $0x34c] sm:$0xf]
      %v778 = vld [vmem:[%s1 + $0x350] sm:$0xf]
      %v779 = vld [vmem:[%s1 + $0x354] sm:$0xf]
      %v780 = vld [vmem:[%s1 + $0x358] sm:$0xf]
      %v781 = vld [vmem:[%s1 + $0x35c] sm:$0xf]
      %v782 = vld [vmem:[%s1 + $0x360] sm:$0xf]
      %v783 = vld [vmem:[%s1 + $0x364] sm:$0xf]
      %v784 = vld [vmem:[%s1 + $0x368] sm:$0xf]
      %v785 = vld [vmem:[%s1 + $0x36c] sm:$0xf]
      %v786 = vld [vmem:[%s1 + $0x370] sm:$0xf]
      %v787 = vld [vmem:[%s1 + $0x374] sm:$0xf]
      %v788 = vld [vmem:[%s1 + $0x378] sm:$0xf]
      %v789 = vld [vmem:[%s1 + $0x37c] sm:$0xf]
      %v790 = vld [vmem:[%s1 + $0x380] sm:$0xf]
      %v791 = vld [vmem:[%s1 + $0x384] sm:$0xf]
      %v792 = vld [vmem:[%s1 + $0x388] sm:$0xf]
      %v793 = vld [vmem:[%s1 + $0x38c] sm:$0xf]
      %v794 = vld [vmem:[%s1 + $0x390] sm:$0xf]
      %v795 = vld [vmem:[%s1 + $0x394] sm:$0xf]
      %v796 = vld [vmem:[%s1 + $0x398] sm:$0xf]
      %v797 = vld [vmem:[%s1 + $0x39c] sm:$0xf]
      %v798 = vld [vmem:[%s1 + $0x3a0] sm:$0xf]
      %v799 = vld [vmem:[%s1 + $0x3a4] sm:$0xf]
      %v800 = vld [vmem:[%s1 + $0x3a8] sm:$0xf]
      %v801 = vld [vmem:[%s1 + $0x3ac] sm:$0xf]
      %v802 = vld [vmem:[%s1 + $0x3b0] sm:$0xf]
      %v803 = vld [vmem:[%s1 + $0x3b4] sm:$0xf]
      %v804 = vld [vmem:[%s1 + $0x3b8] sm:$0xf]
      %v805 = vld [vmem:[%s1 + $0x3bc] sm:$0xf]
      %v806 = vld [vmem:[%s1 + $0x3c0] sm:$0xf]
      %v807 = vld [vmem:[%s1 + $0x3c4] sm:$0xf]
      %v808 = vld [vmem:[%s1 + $0x3c8] sm:$0xf]
      %v809 = vld [vmem:[%s1 + $0x3cc] sm:$0xf]
      %v810 = vld [vmem:[%s1 + $0x3d0] sm:$0xf]
      %v811 = vld [vmem:[%s1 + $0x3d4] sm:$0xf]
      %v812 = vld [vmem:[%s1 + $0x3d8] sm:$0xf]
      %v813 = vld [vmem:[%s1 + $0x3dc] sm:$0xf]
      %v814 = vld [vmem:[%s1 + $0x3e0] sm:$0xf]
      %v815 = vld [vmem:[%s1 + $0x3e4] sm:$0xf]
      %v816 = vld [vmem:[%s1 + $0x3e8] sm:$0xf]
      %v817 = vld [vmem:[%s1 + $0x3ec] sm:$0xf]
      %v818 = vld [vmem:[%s1 + $0x3f0] sm:$0xf]
      %v819 = vld [vmem:[%s1 + $0x3f4] sm:$0xf]
      %v820 = vld [vmem:[%s1 + $0x3f8] sm:$0xf]
      %v821 = vld [vmem:[%s1 + $0x3fc] sm:$0xf]
      %v822 = vld [vmem:[%s1 + $0x400] sm:$0xf]
      %v823 = vld [vmem:[%s1 + $0x404] sm:$0xf]
      %v824 = vld [vmem:[%s1 + $0x408] sm:$0xf]
      %v825 = vld [vmem:[%s1 + $0x40c] sm:$0xf]
      %v826 = vld [vmem:[%s1 + $0x410] sm:$0xf]
      %v827 = vld [vmem:[%s1 + $0x414] sm:$0xf]
      %v828 = vld [vmem:[%s1 + $0x418] sm:$0xf]
      %v829 = vld [vmem:[%s1 + $0x41c] sm:$0xf]
      %v830 = vld [vmem:[%s1 + $0x420] sm:$0xf]
      %v831 = vld [vmem:[%s1 + $0x424] sm:$0xf]
      %v832 = vld [vmem:[%s1 + $0x428] sm:$0xf]
      %v833 = vld [vmem:[%s1 + $0x42c] sm:$0xf]
      %v834 = vld [vmem:[%s1 + $0x430] sm:$0xf]
      %v835 = vld [vmem:[%s1 + $0x434] sm:$0xf]
      %v836 = vld [vmem:[%s1 + $0x438] sm:$0xf]
      %v837 = vld [vmem:[%s1 + $0x43c] sm:$0xf]
      %v838 = vld [vmem:[%s1 + $0x440] sm:$0xf]
      %v839 = vld [vmem:[%s1 + $0x444] sm:$0xf]
      %v840 = vld [vmem:[%s1 + $0x448] sm:$0xf]
      %v841 = vld [vmem:[%s1 + $0x44c] sm:$0xf]
      %v842 = vld [vmem:[%s1 + $0x450] sm:$0xf]
      %v843 = vld [vmem:[%s1 + $0x454] sm:$0xf]
      %v844 = vld [vmem:[%s1 + $0x458] sm:$0xf]
      %v845 = vld [vmem:[%s1 + $0x45c] sm:$0xf]
      %v846 = vld [vmem:[%s1 + $0x460] sm:$0xf]
      %v847 = vld [vmem:[%s1 + $0x464] sm:$0xf]
      %v848 = vld [vmem:[%s1 + $0x468] sm:$0xf]
      %v849 = vld [vmem:[%s1 + $0x46c] sm:$0xf]
      %v850 = vld [vmem:[%s1 + $0x470] sm:$0xf]
      %v851 = vld [vmem:[%s1 + $0x474] sm:$0xf]
      %v852 = vld [vmem:[%s1 + $0x478] sm:$0xf]
      %v853 = vld [vmem:[%s1 + $0x47c] sm:$0xf]
      %v854 = vld [vmem:[%s1 + $0x480] sm:$0xf]
      %v855 = vld [vmem:[%s1 + $0x484] sm:$0xf]
      %v856 = vld [vmem:[%s1 + $0x488] sm:$0x1]
      %v857 = vld [vmem:[%s2] sm:$0x1]
      %v859 = vlaneseq
      %v860 = vshrl.u32 %v859, 7
      %v861 = vsub.s32 0, %v860
      %v862 = vrot.slane %v857, %v861
      %v874 = vunpack.c.l.b16 %v556
      %v875 = vunpack.c.h.b16 %v556
      %v876 = vunpack.c.l.b16 %v557
      %v877 = vunpack.c.h.b16 %v557
      %v878 = vunpack.c.l.b16 %v558
      %v879 = vunpack.c.h.b16 %v558
      %v880 = vunpack.c.l.b16 %v559
      %v881 = vunpack.c.h.b16 %v559
      %v882 = vunpack.c.l.b16 %v560
      %v883 = vunpack.c.h.b16 %v560
      %v884 = vunpack.c.l.b16 %v561
      %v885 = vunpack.c.h.b16 %v561
      %v886 = vunpack.c.l.b16 %v562
      %v887 = vunpack.c.h.b16 %v562
      %v888 = vunpack.c.l.b16 %v563
      %v889 = vunpack.c.h.b16 %v563
      %v890 = vunpack.c.l.b16 %v564
      %v891 = vunpack.c.h.b16 %v564
      %v892 = vunpack.c.l.b16 %v565
      %v893 = vpack.c.b16 %v874, %v874
      %v894 = vpack.c.b16 %v875, %v875
      %v895 = vpack.c.b16 %v876, %v876
      %v896 = vpack.c.b16 %v877, %v877
      %v897 = vpack.c.b16 %v878, %v878
      %v898 = vpack.c.b16 %v879, %v879
      %v899 = vpack.c.b16 %v880, %v880
      %v900 = vpack.c.b16 %v881, %v881
      %v901 = vpack.c.b16 %v882, %v882
      %v902 = vpack.c.b16 %v883, %v883
      %v903 = vpack.c.b16 %v884, %v884
      %v904 = vpack.c.b16 %v885, %v885
      %v905 = vpack.c.b16 %v886, %v886
      %v906 = vpack.c.b16 %v887, %v887
      %v907 = vpack.c.b16 %v888, %v888
      %v908 = vpack.c.b16 %v889, %v889
      %v909 = vpack.c.b16 %v890, %v890
      %v910 = vpack.c.b16 %v891, %v891
      %v911 = vpack.c.b16 %v892, %v892
      %v1221 = vunpack.c.l.b16 %v566
      %v1222 = vunpack.c.l.b16 %v567
      %v1223 = vunpack.c.l.b16 %v568
      %v1224 = vunpack.c.l.b16 %v569
      %v1225 = vunpack.c.l.b16 %v570
      %v1226 = vunpack.c.l.b16 %v571
      %v1227 = vunpack.c.l.b16 %v572
      %v1228 = vunpack.c.l.b16 %v573
      %v1229 = vunpack.c.l.b16 %v574
      %v1230 = vunpack.c.l.b16 %v575
      %v1231 = vunpack.c.l.b16 %v576
      %v1232 = vunpack.c.l.b16 %v577
      %v1233 = vunpack.c.l.b16 %v578
      %v1234 = vunpack.c.l.b16 %v579
      %v1235 = vunpack.c.l.b16 %v580
      %v1236 = vunpack.c.l.b16 %v581
      %v1237 = vunpack.c.l.b16 %v582
      %v1238 = vunpack.c.l.b16 %v583
      %v1239 = vunpack.c.l.b16 %v584
      %v1240 = vunpack.c.l.b16 %v585
      %v1241 = vunpack.c.l.b16 %v586
      %v1242 = vunpack.c.l.b16 %v587
      %v1243 = vunpack.c.l.b16 %v588
      %v1244 = vunpack.c.l.b16 %v589
      %v1245 = vunpack.c.l.b16 %v590
      %v1246 = vunpack.c.l.b16 %v591
      %v1247 = vunpack.c.l.b16 %v592
      %v1248 = vunpack.c.l.b16 %v593
      %v1249 = vunpack.c.l.b16 %v594
      %v1250 = vunpack.c.l.b16 %v595
      %v1251 = vunpack.c.l.b16 %v596
      %v1252 = vunpack.c.l.b16 %v597
      %v1253 = vunpack.c.l.b16 %v598
      %v1254 = vunpack.c.l.b16 %v599
      %v1255 = vunpack.c.l.b16 %v600
      %v1256 = vunpack.c.l.b16 %v601
      %v1257 = vunpack.c.l.b16 %v602
      %v1258 = vunpack.c.l.b16 %v603
      %v1259 = vunpack.c.l.b16 %v604
      %v1260 = vunpack.c.l.b16 %v605
      %v1261 = vunpack.c.l.b16 %v606
      %v1262 = vunpack.c.l.b16 %v607
      %v1263 = vunpack.c.l.b16 %v608
      %v1264 = vunpack.c.l.b16 %v609
      %v1265 = vunpack.c.l.b16 %v610
      %v1266 = vunpack.c.l.b16 %v611
      %v1267 = vunpack.c.l.b16 %v612
      %v1268 = vunpack.c.l.b16 %v613
      %v1269 = vunpack.c.l.b16 %v614
      %v1270 = vunpack.c.l.b16 %v615
      %v1271 = vunpack.c.l.b16 %v616
      %v1272 = vunpack.c.l.b16 %v617
      %v1273 = vunpack.c.l.b16 %v618
      %v1274 = vunpack.c.l.b16 %v619
      %v1275 = vunpack.c.l.b16 %v620
      %v1276 = vunpack.c.l.b16 %v621
      %v1277 = vunpack.c.l.b16 %v622
      %v1278 = vunpack.c.l.b16 %v623
      %v1279 = vunpack.c.l.b16 %v624
      %v1280 = vunpack.c.l.b16 %v625
      %v1281 = vunpack.c.l.b16 %v626
      %v1282 = vunpack.c.l.b16 %v627
      %v1283 = vunpack.c.l.b16 %v628
      %v1284 = vunpack.c.l.b16 %v629
      %v1285 = vunpack.c.l.b16 %v630
      %v1286 = vunpack.c.l.b16 %v631
      %v1287 = vunpack.c.l.b16 %v632
      %v1288 = vunpack.c.l.b16 %v633
      %v1289 = vunpack.c.l.b16 %v634
      %v1290 = vunpack.c.l.b16 %v635
      %v1291 = vunpack.c.l.b16 %v636
      %v1292 = vunpack.c.l.b16 %v637
      %v1293 = vunpack.c.l.b16 %v638
      %v1294 = vunpack.c.l.b16 %v639
      %v1295 = vunpack.c.l.b16 %v640
      %v1296 = vunpack.c.l.b16 %v641
      %v1297 = vunpack.c.l.b16 %v642
      %v1298 = vunpack.c.l.b16 %v643
      %v1299 = vunpack.c.l.b16 %v644
      %v1300 = vunpack.c.l.b16 %v645
      %v1301 = vunpack.c.l.b16 %v646
      %v1302 = vunpack.c.l.b16 %v647
      %v1303 = vunpack.c.l.b16 %v648
      %v1304 = vunpack.c.l.b16 %v649
      %v1305 = vunpack.c.l.b16 %v650
      %v1306 = vunpack.c.l.b16 %v651
      %v1307 = vunpack.c.l.b16 %v652
      %v1308 = vunpack.c.l.b16 %v653
      %v1309 = vunpack.c.l.b16 %v654
      %v1310 = vunpack.c.l.b16 %v655
      %v1311 = vunpack.c.l.b16 %v656
      %v1312 = vunpack.c.l.b16 %v657
      %v1313 = vunpack.c.l.b16 %v658
      %v1314 = vunpack.c.l.b16 %v659
      %v1315 = vunpack.c.l.b16 %v660
      %v1316 = vunpack.c.l.b16 %v661
      %v1317 = vunpack.c.l.b16 %v662
      %v1318 = vunpack.c.l.b16 %v663
      %v1319 = vunpack.c.l.b16 %v664
      %v1320 = vunpack.c.l.b16 %v665
      %v1321 = vunpack.c.l.b16 %v666
      %v1322 = vunpack.c.l.b16 %v667
      %v1323 = vunpack.c.l.b16 %v668
      %v1324 = vunpack.c.l.b16 %v669
      %v1325 = vunpack.c.l.b16 %v670
      %v1326 = vunpack.c.l.b16 %v671
      %v1327 = vunpack.c.l.b16 %v672
      %v1328 = vunpack.c.l.b16 %v673
      %v1329 = vunpack.c.l.b16 %v674
      %v1330 = vunpack.c.l.b16 %v675
      %v1331 = vunpack.c.l.b16 %v676
      %v1332 = vunpack.c.l.b16 %v677
      %v1333 = vunpack.c.l.b16 %v678
      %v1334 = vunpack.c.l.b16 %v679
      %v1335 = vunpack.c.l.b16 %v680
      %v1336 = vunpack.c.l.b16 %v681
      %v1337 = vunpack.c.l.b16 %v682
      %v1338 = vunpack.c.l.b16 %v683
      %v1339 = vunpack.c.l.b16 %v684
      %v1340 = vunpack.c.l.b16 %v685
      %v1341 = vunpack.c.l.b16 %v686
      %v1342 = vunpack.c.l.b16 %v687
      %v1343 = vunpack.c.l.b16 %v688
      %v1344 = vunpack.c.l.b16 %v689
      %v1345 = vunpack.c.l.b16 %v690
      %v1346 = vunpack.c.l.b16 %v691
      %v1347 = vunpack.c.l.b16 %v692
      %v1348 = vunpack.c.l.b16 %v693
      %v1349 = vunpack.c.l.b16 %v694
      %v1350 = vunpack.c.l.b16 %v695
      %v1351 = vunpack.c.l.b16 %v696
      %v1352 = vunpack.c.l.b16 %v697
      %v1353 = vunpack.c.l.b16 %v698
      %v1354 = vunpack.c.l.b16 %v699
      %v1355 = vunpack.c.l.b16 %v700
      %v1356 = vunpack.c.l.b16 %v701
      %v1357 = vunpack.c.l.b16 %v702
      %v1358 = vunpack.c.l.b16 %v703
      %v1359 = vunpack.c.l.b16 %v704
      %v1360 = vunpack.c.l.b16 %v705
      %v1361 = vunpack.c.l.b16 %v706
      %v1362 = vunpack.c.l.b16 %v707
      %v1363 = vunpack.c.l.b16 %v708
      %v1364 = vunpack.c.l.b16 %v709
      %v1365 = vunpack.c.l.b16 %v710
      %v1366 = vunpack.c.l.b16 %v711
      %v1367 = vunpack.c.l.b16 %v712
      %v1368 = vunpack.c.l.b16 %v713
      %v1369 = vunpack.c.l.b16 %v714
      %v1370 = vunpack.c.l.b16 %v715
      %v1371 = vunpack.c.l.b16 %v716
      %v1372 = vunpack.c.l.b16 %v717
      %v1373 = vunpack.c.l.b16 %v718
      %v1374 = vunpack.c.l.b16 %v719
      %v1375 = vunpack.c.l.b16 %v720
      %v1376 = vunpack.c.l.b16 %v721
      %v1377 = vunpack.c.l.b16 %v722
      %v1378 = vunpack.c.l.b16 %v723
      %v1379 = vunpack.c.l.b16 %v724
      %v1380 = vunpack.c.l.b16 %v725
      %v1381 = vunpack.c.l.b16 %v726
      %v1382 = vunpack.c.l.b16 %v727
      %v1383 = vunpack.c.l.b16 %v728
      %v1384 = vunpack.c.l.b16 %v729
      %v1385 = vunpack.c.l.b16 %v730
      %v1386 = vunpack.c.l.b16 %v731
      %v1387 = vunpack.c.l.b16 %v732
      %v1388 = vunpack.c.l.b16 %v733
      %v1389 = vunpack.c.l.b16 %v734
      %v1390 = vunpack.c.l.b16 %v735
      %v1391 = vunpack.c.l.b16 %v736
      %v1392 = vunpack.c.l.b16 %v737
      %v1393 = vunpack.c.l.b16 %v738
      %v1394 = vunpack.c.l.b16 %v739
      %v1395 = vunpack.c.l.b16 %v740
      %v1396 = vunpack.c.l.b16 %v741
      %v1397 = vunpack.c.l.b16 %v742
      %v1398 = vunpack.c.l.b16 %v743
      %v1399 = vunpack.c.l.b16 %v744
      %v1400 = vunpack.c.l.b16 %v745
      %v1401 = vunpack.c.l.b16 %v746
      %v1402 = vunpack.c.l.b16 %v747
      %v1403 = vunpack.c.l.b16 %v748
      %v1404 = vunpack.c.l.b16 %v749
      %v1405 = vunpack.c.l.b16 %v750
      %v1406 = vunpack.c.l.b16 %v751
      %v1407 = vunpack.c.l.b16 %v752
      %v1408 = vunpack.c.l.b16 %v753
      %v1409 = vunpack.c.l.b16 %v754
      %v1410 = vunpack.c.l.b16 %v755
      %v1411 = vunpack.c.l.b16 %v756
      %v1412 = vunpack.c.l.b16 %v757
      %v1413 = vunpack.c.l.b16 %v758
      %v1414 = vunpack.c.l.b16 %v759
      %v1415 = vunpack.c.l.b16 %v760
      %v1416 = vunpack.c.l.b16 %v761
      %v1417 = vunpack.c.l.b16 %v762
      %v1418 = vunpack.c.l.b16 %v763
      %v1419 = vunpack.c.l.b16 %v764
      %v1420 = vunpack.c.l.b16 %v765
      %v1421 = vunpack.c.l.b16 %v766
      %v1422 = vunpack.c.l.b16 %v767
      %v1423 = vunpack.c.l.b16 %v768
      %v1424 = vunpack.c.l.b16 %v769
      %v1425 = vunpack.c.l.b16 %v770
      %v1426 = vunpack.c.l.b16 %v771
      %v1427 = vunpack.c.l.b16 %v772
      %v1428 = vunpack.c.l.b16 %v773
      %v1429 = vunpack.c.l.b16 %v774
      %v1430 = vunpack.c.l.b16 %v775
      %v1431 = vunpack.c.l.b16 %v776
      %v1432 = vunpack.c.l.b16 %v777
      %v1433 = vunpack.c.l.b16 %v778
      %v1434 = vunpack.c.l.b16 %v779
      %v1435 = vunpack.c.l.b16 %v780
      %v1436 = vunpack.c.l.b16 %v781
      %v1437 = vunpack.c.l.b16 %v782
      %v1438 = vunpack.c.l.b16 %v783
      %v1439 = vunpack.c.l.b16 %v784
      %v1440 = vunpack.c.l.b16 %v785
      %v1441 = vunpack.c.l.b16 %v786
      %v1442 = vunpack.c.l.b16 %v787
      %v1443 = vunpack.c.l.b16 %v788
      %v1444 = vunpack.c.l.b16 %v789
      %v1445 = vunpack.c.l.b16 %v790
      %v1446 = vunpack.c.l.b16 %v791
      %v1447 = vunpack.c.l.b16 %v792
      %v1448 = vunpack.c.l.b16 %v793
      %v1449 = vunpack.c.l.b16 %v794
      %v1450 = vunpack.c.l.b16 %v795
      %v1451 = vunpack.c.l.b16 %v796
      %v1452 = vunpack.c.l.b16 %v797
      %v1453 = vunpack.c.l.b16 %v798
      %v1454 = vunpack.c.l.b16 %v799
      %v1455 = vunpack.c.l.b16 %v800
      %v1456 = vunpack.c.l.b16 %v801
      %v1457 = vunpack.c.l.b16 %v802
      %v1458 = vunpack.c.l.b16 %v803
      %v1459 = vunpack.c.l.b16 %v804
      %v1460 = vunpack.c.l.b16 %v805
      %v1461 = vunpack.c.l.b16 %v806
      %v1462 = vunpack.c.l.b16 %v807
      %v1463 = vunpack.c.l.b16 %v808
      %v1464 = vunpack.c.l.b16 %v809
      %v1465 = vunpack.c.l.b16 %v810
      %v1466 = vunpack.c.l.b16 %v811
      %v1467 = vunpack.c.l.b16 %v812
      %v1468 = vunpack.c.l.b16 %v813
      %v1469 = vunpack.c.l.b16 %v814
      %v1470 = vunpack.c.l.b16 %v815
      %v1471 = vunpack.c.l.b16 %v816
      %v1472 = vunpack.c.l.b16 %v817
      %v1473 = vunpack.c.l.b16 %v818
      %v1474 = vunpack.c.l.b16 %v819
      %v1475 = vunpack.c.l.b16 %v820
      %v1476 = vunpack.c.l.b16 %v821
      %v1477 = vunpack.c.l.b16 %v822
      %v1478 = vunpack.c.l.b16 %v823
      %v1479 = vunpack.c.l.b16 %v824
      %v1480 = vunpack.c.l.b16 %v825
      %v1481 = vunpack.c.l.b16 %v826
      %v1482 = vunpack.c.l.b16 %v827
      %v1483 = vunpack.c.l.b16 %v828
      %v1484 = vunpack.c.l.b16 %v829
      %v1485 = vunpack.c.l.b16 %v830
      %v1486 = vunpack.c.l.b16 %v831
      %v1487 = vunpack.c.l.b16 %v832
      %v1488 = vunpack.c.l.b16 %v833
      %v1489 = vunpack.c.l.b16 %v834
      %v1490 = vunpack.c.l.b16 %v835
      %v1491 = vunpack.c.l.b16 %v836
      %v1492 = vunpack.c.l.b16 %v837
      %v1493 = vunpack.c.l.b16 %v838
      %v1494 = vunpack.c.l.b16 %v839
      %v1495 = vunpack.c.l.b16 %v840
      %v1496 = vunpack.c.l.b16 %v841
      %v1497 = vunpack.c.l.b16 %v842
      %v1498 = vunpack.c.l.b16 %v843
      %v1499 = vunpack.c.l.b16 %v844
      %v1500 = vunpack.c.l.b16 %v845
      %v1501 = vunpack.c.l.b16 %v846
      %v1502 = vunpack.c.l.b16 %v847
      %v1503 = vunpack.c.l.b16 %v848
      %v1504 = vunpack.c.l.b16 %v849
      %v1505 = vunpack.c.l.b16 %v850
      %v1506 = vunpack.c.l.b16 %v851
      %v1507 = vunpack.c.l.b16 %v852
      %v1508 = vunpack.c.l.b16 %v853
      %v1509 = vunpack.c.l.b16 %v854
      %v1510 = vunpack.c.l.b16 %v855
      %v1511 = vunpack.c.l.b16 %v856
      %v1512 = vpack.c.b16 %v1222, %v1221
      %v1513 = vpack.c.b16 %v1224, %v1223
      %v1514 = vpack.c.b16 %v1226, %v1225
      %v1515 = vpack.c.b16 %v1228, %v1227
      %v1516 = vpack.c.b16 %v1230, %v1229
      %v1517 = vpack.c.b16 %v1232, %v1231
      %v1518 = vpack.c.b16 %v1234, %v1233
      %v1519 = vpack.c.b16 %v1236, %v1235
      %v1520 = vpack.c.b16 %v1238, %v1237
      %v1521 = vpack.c.b16 %v1240, %v1239
      %v1522 = vpack.c.b16 %v1242, %v1241
      %v1523 = vpack.c.b16 %v1244, %v1243
      %v1524 = vpack.c.b16 %v1246, %v1245
      %v1525 = vpack.c.b16 %v1248, %v1247
      %v1526 = vpack.c.b16 %v1250, %v1249
      %v1527 = vpack.c.b16 %v1252, %v1251
      %v1528 = vpack.c.b16 %v1254, %v1253
      %v1529 = vpack.c.b16 %v1256, %v1255
      %v1530 = vpack.c.b16 %v1258, %v1257
      %v1531 = vpack.c.b16 %v1260, %v1259
      %v1532 = vpack.c.b16 %v1262, %v1261
      %v1533 = vpack.c.b16 %v1264, %v1263
      %v1534 = vpack.c.b16 %v1266, %v1265
      %v1535 = vpack.c.b16 %v1268, %v1267
      %v1536 = vpack.c.b16 %v1270, %v1269
      %v1537 = vpack.c.b16 %v1272, %v1271
      %v1538 = vpack.c.b16 %v1274, %v1273
      %v1539 = vpack.c.b16 %v1276, %v1275
      %v1540 = vpack.c.b16 %v1278, %v1277
      %v1541 = vpack.c.b16 %v1280, %v1279
      %v1542 = vpack.c.b16 %v1282, %v1281
      %v1543 = vpack.c.b16 %v1284, %v1283
      %v1544 = vpack.c.b16 %v1286, %v1285
      %v1545 = vpack.c.b16 %v1288, %v1287
      %v1546 = vpack.c.b16 %v1290, %v1289
      %v1547 = vpack.c.b16 %v1292, %v1291
      %v1548 = vpack.c.b16 %v1294, %v1293
      %v1549 = vpack.c.b16 %v1296, %v1295
      %v1550 = vpack.c.b16 %v1298, %v1297
      %v1551 = vpack.c.b16 %v1300, %v1299
      %v1552 = vpack.c.b16 %v1302, %v1301
      %v1553 = vpack.c.b16 %v1304, %v1303
      %v1554 = vpack.c.b16 %v1306, %v1305
      %v1555 = vpack.c.b16 %v1308, %v1307
      %v1556 = vpack.c.b16 %v1310, %v1309
      %v1557 = vpack.c.b16 %v1312, %v1311
      %v1558 = vpack.c.b16 %v1314, %v1313
      %v1559 = vpack.c.b16 %v1316, %v1315
      %v1560 = vpack.c.b16 %v1318, %v1317
      %v1561 = vpack.c.b16 %v1320, %v1319
      %v1562 = vpack.c.b16 %v1322, %v1321
      %v1563 = vpack.c.b16 %v1324, %v1323
      %v1564 = vpack.c.b16 %v1326, %v1325
      %v1565 = vpack.c.b16 %v1328, %v1327
      %v1566 = vpack.c.b16 %v1330, %v1329
      %v1567 = vpack.c.b16 %v1332, %v1331
      %v1568 = vpack.c.b16 %v1334, %v1333
      %v1569 = vpack.c.b16 %v1336, %v1335
      %v1570 = vpack.c.b16 %v1338, %v1337
      %v1571 = vpack.c.b16 %v1340, %v1339
      %v1572 = vpack.c.b16 %v1342, %v1341
      %v1573 = vpack.c.b16 %v1344, %v1343
      %v1574 = vpack.c.b16 %v1346, %v1345
      %v1575 = vpack.c.b16 %v1348, %v1347
      %v1576 = vpack.c.b16 %v1350, %v1349
      %v1577 = vpack.c.b16 %v1352, %v1351
      %v1578 = vpack.c.b16 %v1354, %v1353
      %v1579 = vpack.c.b16 %v1356, %v1355
      %v1580 = vpack.c.b16 %v1358, %v1357
      %v1581 = vpack.c.b16 %v1360, %v1359
      %v1582 = vpack.c.b16 %v1362, %v1361
      %v1583 = vpack.c.b16 %v1364, %v1363
      %v1584 = vpack.c.b16 %v1366, %v1365
      %v1585 = vpack.c.b16 %v1368, %v1367
      %v1586 = vpack.c.b16 %v1370, %v1369
      %v1587 = vpack.c.b16 %v1372, %v1371
      %v1588 = vpack.c.b16 %v1374, %v1373
      %v1589 = vpack.c.b16 %v1376, %v1375
      %v1590 = vpack.c.b16 %v1378, %v1377
      %v1591 = vpack.c.b16 %v1380, %v1379
      %v1592 = vpack.c.b16 %v1382, %v1381
      %v1593 = vpack.c.b16 %v1384, %v1383
      %v1594 = vpack.c.b16 %v1386, %v1385
      %v1595 = vpack.c.b16 %v1388, %v1387
      %v1596 = vpack.c.b16 %v1390, %v1389
      %v1597 = vpack.c.b16 %v1392, %v1391
      %v1598 = vpack.c.b16 %v1394, %v1393
      %v1599 = vpack.c.b16 %v1396, %v1395
      %v1600 = vpack.c.b16 %v1398, %v1397
      %v1601 = vpack.c.b16 %v1400, %v1399
      %v1602 = vpack.c.b16 %v1402, %v1401
      %v1603 = vpack.c.b16 %v1404, %v1403
      %v1604 = vpack.c.b16 %v1406, %v1405
      %v1605 = vpack.c.b16 %v1408, %v1407
      %v1606 = vpack.c.b16 %v1410, %v1409
      %v1607 = vpack.c.b16 %v1412, %v1411
      %v1608 = vpack.c.b16 %v1414, %v1413
      %v1609 = vpack.c.b16 %v1416, %v1415
      %v1610 = vpack.c.b16 %v1418, %v1417
      %v1611 = vpack.c.b16 %v1420, %v1419
      %v1612 = vpack.c.b16 %v1422, %v1421
      %v1613 = vpack.c.b16 %v1424, %v1423
      %v1614 = vpack.c.b16 %v1426, %v1425
      %v1615 = vpack.c.b16 %v1428, %v1427
      %v1616 = vpack.c.b16 %v1430, %v1429
      %v1617 = vpack.c.b16 %v1432, %v1431
      %v1618 = vpack.c.b16 %v1434, %v1433
      %v1619 = vpack.c.b16 %v1436, %v1435
      %v1620 = vpack.c.b16 %v1438, %v1437
      %v1621 = vpack.c.b16 %v1440, %v1439
      %v1622 = vpack.c.b16 %v1442, %v1441
      %v1623 = vpack.c.b16 %v1444, %v1443
      %v1624 = vpack.c.b16 %v1446, %v1445
      %v1625 = vpack.c.b16 %v1448, %v1447
      %v1626 = vpack.c.b16 %v1450, %v1449
      %v1627 = vpack.c.b16 %v1452, %v1451
      %v1628 = vpack.c.b16 %v1454, %v1453
      %v1629 = vpack.c.b16 %v1456, %v1455
      %v1630 = vpack.c.b16 %v1458, %v1457
      %v1631 = vpack.c.b16 %v1460, %v1459
      %v1632 = vpack.c.b16 %v1462, %v1461
      %v1633 = vpack.c.b16 %v1464, %v1463
      %v1634 = vpack.c.b16 %v1466, %v1465
      %v1635 = vpack.c.b16 %v1468, %v1467
      %v1636 = vpack.c.b16 %v1470, %v1469
      %v1637 = vpack.c.b16 %v1472, %v1471
      %v1638 = vpack.c.b16 %v1474, %v1473
      %v1639 = vpack.c.b16 %v1476, %v1475
      %v1640 = vpack.c.b16 %v1478, %v1477
      %v1641 = vpack.c.b16 %v1480, %v1479
      %v1642 = vpack.c.b16 %v1482, %v1481
      %v1643 = vpack.c.b16 %v1484, %v1483
      %v1644 = vpack.c.b16 %v1486, %v1485
      %v1645 = vpack.c.b16 %v1488, %v1487
      %v1646 = vpack.c.b16 %v1490, %v1489
      %v1647 = vpack.c.b16 %v1492, %v1491
      %v1648 = vpack.c.b16 %v1494, %v1493
      %v1649 = vpack.c.b16 %v1496, %v1495
      %v1650 = vpack.c.b16 %v1498, %v1497
      %v1651 = vpack.c.b16 %v1500, %v1499
      %v1652 = vpack.c.b16 %v1502, %v1501
      %v1653 = vpack.c.b16 %v1504, %v1503
      %v1654 = vpack.c.b16 %v1506, %v1505
      %v1655 = vpack.c.b16 %v1508, %v1507
      %v1656 = vpack.c.b16 %v1510, %v1509
      %v1657 = vpack.c.b16 %v1511, %v1511
      %vm1803 = vcmask 146432
      %v1805 = vsel %vm1803, %v911, 0
      %vm1807 = vcmask 1040384
      %v1809 = vsel %vm1807, %v1657, 0
      %1811 = vmatprep.subr.bf16.mxu0 0
      %1812 = vmatpush1.bf16.msra.mxu0 %v1512
      %1813 = vmatprep.subr.bf16.mxu0 0
      %1814 = vmatpush1.bf16.msra.mxu0 %v1513
      %1815 = vmatprep.subr.bf16.mxu0 0
      %1816 = vmatpush1.bf16.msra.mxu0 %v1514
      %1817 = vmatprep.subr.bf16.mxu0 0
      %1818 = vmatpush1.bf16.msra.mxu0 %v1515
      %1819 = vmatprep.subr.bf16.mxu0 0
      %1820 = vmatpush1.bf16.msra.mxu0 %v1516
      %1821 = vmatprep.subr.bf16.mxu0 0
      %1822 = vmatpush1.bf16.msra.mxu0 %v1517
      %1823 = vmatprep.subr.bf16.mxu0 0
      %1824 = vmatpush1.bf16.msra.mxu0 %v1518
      %1825 = vmatprep.subr.bf16.mxu0 0
      %1826 = vmatpush1.bf16.msra.mxu0 %v1519
      %1827 = vmatprep.subr.bf16.mxu0 0
      %1828 = vmatpush1.bf16.msra.mxu0 %v1520
      %1829 = vmatprep.subr.bf16.mxu0 0
      %1830 = vmatpush1.bf16.msra.mxu0 %v1521
      %1831 = vmatprep.subr.bf16.mxu0 0
      %1832 = vmatpush1.bf16.msra.mxu0 %v1522
      %1833 = vmatprep.subr.bf16.mxu0 0
      %1834 = vmatpush1.bf16.msra.mxu0 %v1523
      %1835 = vmatprep.subr.bf16.mxu0 0
      %1836 = vmatpush1.bf16.msra.mxu0 %v1524
      %1837 = vmatprep.subr.bf16.mxu0 0
      %1838 = vmatpush1.bf16.msra.mxu0 %v1525
      %1839 = vmatprep.subr.bf16.mxu0 0
      %1840 = vmatpush1.bf16.msra.mxu0 %v1526
      %1841 = vmatprep.subr.bf16.mxu0 0
      %1842 = vmatpush1.bf16.msra.mxu0 %v1527
      %1843 = vmatprep.mubr.bf16.mxu0 %v894
      %1844 = vmatmul.mubr.bf16.gmra.mrb[0].mxu0 %v893
      %v1845 = vpop.f32.mrb[0].mxu0
      %v1846 = vadd.f32 %v862, %v1845
      %v1847 = vpop.f32.mrb[0].mxu0
      %v1848 = vpop.f32.mrb[0].mxu0
      %v1849 = vpop.f32.mrb[0].mxu0
      %1850 = vdwg.mxu0
      %1851 = vmatprep.subr.bf16.mxu0 0
      %1852 = vmatpush1.bf16.msra.mxu0 %v1528
      %1853 = vmatprep.subr.bf16.mxu0 0
      %1854 = vmatpush1.bf16.msra.mxu0 %v1529
      %1855 = vmatprep.subr.bf16.mxu0 0
      %1856 = vmatpush1.bf16.msra.mxu0 %v1530
      %1857 = vmatprep.subr.bf16.mxu0 0
      %1858 = vmatpush1.bf16.msra.mxu0 %v1531
      %1859 = vmatprep.subr.bf16.mxu0 0
      %1860 = vmatpush1.bf16.msra.mxu0 %v1532
      %1861 = vmatprep.subr.bf16.mxu0 0
      %1862 = vmatpush1.bf16.msra.mxu0 %v1533
      %1863 = vmatprep.subr.bf16.mxu0 0
      %1864 = vmatpush1.bf16.msra.mxu0 %v1534
      %1865 = vmatprep.subr.bf16.mxu0 0
      %1866 = vmatpush1.bf16.msra.mxu0 %v1535
      %1867 = vmatprep.subr.bf16.mxu0 0
      %1868 = vmatpush1.bf16.msra.mxu0 %v1536
      %1869 = vmatprep.subr.bf16.mxu0 0
      %1870 = vmatpush1.bf16.msra.mxu0 %v1537
      %1871 = vmatprep.subr.bf16.mxu0 0
      %1872 = vmatpush1.bf16.msra.mxu0 %v1538
      %1873 = vmatprep.subr.bf16.mxu0 0
      %1874 = vmatpush1.bf16.msra.mxu0 %v1539
      %1875 = vmatprep.subr.bf16.mxu0 0
      %1876 = vmatpush1.bf16.msra.mxu0 %v1540
      %1877 = vmatprep.subr.bf16.mxu0 0
      %1878 = vmatpush1.bf16.msra.mxu0 %v1541
      %1879 = vmatprep.subr.bf16.mxu0 0
      %1880 = vmatpush1.bf16.msra.mxu0 %v1542
      %1881 = vmatprep.subr.bf16.mxu0 0
      %1882 = vmatpush1.bf16.msra.mxu0 %v1543
      %1883 = vmatprep.mubr.bf16.mxu0 %v896
      %1884 = vmatmul.mubr.bf16.gmra.mrb[0].mxu0 %v895
      %v1885 = vpop.f32.mrb[0].mxu0
      %v1886 = vadd.f32 %v1846, %v1885
      %v1887 = vpop.f32.mrb[0].mxu0
      %v1888 = vpop.f32.mrb[0].mxu0
      %v1889 = vpop.f32.mrb[0].mxu0
      %1890 = vdwg.mxu0
      %1891 = vmatprep.subr.bf16.mxu0 0
      %1892 = vmatpush1.bf16.msra.mxu0 %v1544
      %1893 = vmatprep.subr.bf16.mxu0 0
      %1894 = vmatpush1.bf16.msra.mxu0 %v1545
      %1895 = vmatprep.subr.bf16.mxu0 0
      %1896 = vmatpush1.bf16.msra.mxu0 %v1546
      %1897 = vmatprep.subr.bf16.mxu0 0
      %1898 = vmatpush1.bf16.msra.mxu0 %v1547
      %1899 = vmatprep.subr.bf16.mxu0 0
      %1900 = vmatpush1.bf16.msra.mxu0 %v1548
      %1901 = vmatprep.subr.bf16.mxu0 0
      %1902 = vmatpush1.bf16.msra.mxu0 %v1549
      %1903 = vmatprep.subr.bf16.mxu0 0
      %1904 = vmatpush1.bf16.msra.mxu0 %v1550
      %1905 = vmatprep.subr.bf16.mxu0 0
      %1906 = vmatpush1.bf16.msra.mxu0 %v1551
      %1907 = vmatprep.subr.bf16.mxu0 0
      %1908 = vmatpush1.bf16.msra.mxu0 %v1552
      %1909 = vmatprep.subr.bf16.mxu0 0
      %1910 = vmatpush1.bf16.msra.mxu0 %v1553
      %1911 = vmatprep.subr.bf16.mxu0 0
      %1912 = vmatpush1.bf16.msra.mxu0 %v1554
      %1913 = vmatprep.subr.bf16.mxu0 0
      %1914 = vmatpush1.bf16.msra.mxu0 %v1555
      %1915 = vmatprep.subr.bf16.mxu0 0
      %1916 = vmatpush1.bf16.msra.mxu0 %v1556
      %1917 = vmatprep.subr.bf16.mxu0 0
      %1918 = vmatpush1.bf16.msra.mxu0 %v1557
      %1919 = vmatprep.subr.bf16.mxu0 0
      %1920 = vmatpush1.bf16.msra.mxu0 %v1558
      %1921 = vmatprep.subr.bf16.mxu0 0
      %1922 = vmatpush1.bf16.msra.mxu0 %v1559
      %1923 = vmatprep.mubr.bf16.mxu0 %v898
      %1924 = vmatmul.mubr.bf16.gmra.mrb[0].mxu0 %v897
      %v1925 = vpop.f32.mrb[0].mxu0
      %v1926 = vadd.f32 %v1886, %v1925
      %v1927 = vpop.f32.mrb[0].mxu0
      %v1928 = vpop.f32.mrb[0].mxu0
      %v1929 = vpop.f32.mrb[0].mxu0
      %1930 = vdwg.mxu0
      %1931 = vmatprep.subr.bf16.mxu0 0
      %1932 = vmatpush1.bf16.msra.mxu0 %v1560
      %1933 = vmatprep.subr.bf16.mxu0 0
      %1934 = vmatpush1.bf16.msra.mxu0 %v1561
      %1935 = vmatprep.subr.bf16.mxu0 0
      %1936 = vmatpush1.bf16.msra.mxu0 %v1562
      %1937 = vmatprep.subr.bf16.mxu0 0
      %1938 = vmatpush1.bf16.msra.mxu0 %v1563
      %1939 = vmatprep.subr.bf16.mxu0 0
      %1940 = vmatpush1.bf16.msra.mxu0 %v1564
      %1941 = vmatprep.subr.bf16.mxu0 0
      %1942 = vmatpush1.bf16.msra.mxu0 %v1565
      %1943 = vmatprep.subr.bf16.mxu0 0
      %1944 = vmatpush1.bf16.msra.mxu0 %v1566
      %1945 = vmatprep.subr.bf16.mxu0 0
      %1946 = vmatpush1.bf16.msra.mxu0 %v1567
      %1947 = vmatprep.subr.bf16.mxu0 0
      %1948 = vmatpush1.bf16.msra.mxu0 %v1568
      %1949 = vmatprep.subr.bf16.mxu0 0
      %1950 = vmatpush1.bf16.msra.mxu0 %v1569
      %1951 = vmatprep.subr.bf16.mxu0 0
      %1952 = vmatpush1.bf16.msra.mxu0 %v1570
      %1953 = vmatprep.subr.bf16.mxu0 0
      %1954 = vmatpush1.bf16.msra.mxu0 %v1571
      %1955 = vmatprep.subr.bf16.mxu0 0
      %1956 = vmatpush1.bf16.msra.mxu0 %v1572
      %1957 = vmatprep.subr.bf16.mxu0 0
      %1958 = vmatpush1.bf16.msra.mxu0 %v1573
      %1959 = vmatprep.subr.bf16.mxu0 0
      %1960 = vmatpush1.bf16.msra.mxu0 %v1574
      %1961 = vmatprep.subr.bf16.mxu0 0
      %1962 = vmatpush1.bf16.msra.mxu0 %v1575
      %1963 = vmatprep.mubr.bf16.mxu0 %v900
      %1964 = vmatmul.mubr.bf16.gmra.mrb[0].mxu0 %v899
      %v1965 = vpop.f32.mrb[0].mxu0
      %v1966 = vadd.f32 %v1926, %v1965
      %v1967 = vpop.f32.mrb[0].mxu0
      %v1968 = vpop.f32.mrb[0].mxu0
      %v1969 = vpop.f32.mrb[0].mxu0
      %1970 = vdwg.mxu0
      %1971 = vmatprep.subr.bf16.mxu0 0
      %1972 = vmatpush1.bf16.msra.mxu0 %v1576
      %1973 = vmatprep.subr.bf16.mxu0 0
      %1974 = vmatpush1.bf16.msra.mxu0 %v1577
      %1975 = vmatprep.subr.bf16.mxu0 0
      %1976 = vmatpush1.bf16.msra.mxu0 %v1578
      %1977 = vmatprep.subr.bf16.mxu0 0
      %1978 = vmatpush1.bf16.msra.mxu0 %v1579
      %1979 = vmatprep.subr.bf16.mxu0 0
      %1980 = vmatpush1.bf16.msra.mxu0 %v1580
      %1981 = vmatprep.subr.bf16.mxu0 0
      %1982 = vmatpush1.bf16.msra.mxu0 %v1581
      %1983 = vmatprep.subr.bf16.mxu0 0
      %1984 = vmatpush1.bf16.msra.mxu0 %v1582
      %1985 = vmatprep.subr.bf16.mxu0 0
      %1986 = vmatpush1.bf16.msra.mxu0 %v1583
      %1987 = vmatprep.subr.bf16.mxu0 0
      %1988 = vmatpush1.bf16.msra.mxu0 %v1584
      %1989 = vmatprep.subr.bf16.mxu0 0
      %1990 = vmatpush1.bf16.msra.mxu0 %v1585
      %1991 = vmatprep.subr.bf16.mxu0 0
      %1992 = vmatpush1.bf16.msra.mxu0 %v1586
      %1993 = vmatprep.subr.bf16.mxu0 0
      %1994 = vmatpush1.bf16.msra.mxu0 %v1587
      %1995 = vmatprep.subr.bf16.mxu0 0
      %1996 = vmatpush1.bf16.msra.mxu0 %v1588
      %1997 = vmatprep.subr.bf16.mxu0 0
      %1998 = vmatpush1.bf16.msra.mxu0 %v1589
      %1999 = vmatprep.subr.bf16.mxu0 0
      %2000 = vmatpush1.bf16.msra.mxu0 %v1590
      %2001 = vmatprep.subr.bf16.mxu0 0
      %2002 = vmatpush1.bf16.msra.mxu0 %v1591
      %2003 = vmatprep.mubr.bf16.mxu0 %v902
      %2004 = vmatmul.mubr.bf16.gmra.mrb[0].mxu0 %v901
      %v2005 = vpop.f32.mrb[0].mxu0
      %v2006 = vadd.f32 %v1966, %v2005
      %v2007 = vpop.f32.mrb[0].mxu0
      %v2008 = vpop.f32.mrb[0].mxu0
      %v2009 = vpop.f32.mrb[0].mxu0
      %2010 = vdwg.mxu0
      %2011 = vmatprep.subr.bf16.mxu0 0
      %2012 = vmatpush1.bf16.msra.mxu0 %v1592
      %2013 = vmatprep.subr.bf16.mxu0 0
      %2014 = vmatpush1.bf16.msra.mxu0 %v1593
      %2015 = vmatprep.subr.bf16.mxu0 0
      %2016 = vmatpush1.bf16.msra.mxu0 %v1594
      %2017 = vmatprep.subr.bf16.mxu0 0
      %2018 = vmatpush1.bf16.msra.mxu0 %v1595
      %2019 = vmatprep.subr.bf16.mxu0 0
      %2020 = vmatpush1.bf16.msra.mxu0 %v1596
      %2021 = vmatprep.subr.bf16.mxu0 0
      %2022 = vmatpush1.bf16.msra.mxu0 %v1597
      %2023 = vmatprep.subr.bf16.mxu0 0
      %2024 = vmatpush1.bf16.msra.mxu0 %v1598
      %2025 = vmatprep.subr.bf16.mxu0 0
      %2026 = vmatpush1.bf16.msra.mxu0 %v1599
      %2027 = vmatprep.subr.bf16.mxu0 0
      %2028 = vmatpush1.bf16.msra.mxu0 %v1600
      %2029 = vmatprep.subr.bf16.mxu0 0
      %2030 = vmatpush1.bf16.msra.mxu0 %v1601
      %2031 = vmatprep.subr.bf16.mxu0 0
      %2032 = vmatpush1.bf16.msra.mxu0 %v1602
      %2033 = vmatprep.subr.bf16.mxu0 0
      %2034 = vmatpush1.bf16.msra.mxu0 %v1603
      %2035 = vmatprep.subr.bf16.mxu0 0
      %2036 = vmatpush1.bf16.msra.mxu0 %v1604
      %2037 = vmatprep.subr.bf16.mxu0 0
      %2038 = vmatpush1.bf16.msra.mxu0 %v1605
      %2039 = vmatprep.subr.bf16.mxu0 0
      %2040 = vmatpush1.bf16.msra.mxu0 %v1606
      %2041 = vmatprep.subr.bf16.mxu0 0
      %2042 = vmatpush1.bf16.msra.mxu0 %v1607
      %2043 = vmatprep.mubr.bf16.mxu0 %v904
      %2044 = vmatmul.mubr.bf16.gmra.mrb[0].mxu0 %v903
      %v2045 = vpop.f32.mrb[0].mxu0
      %v2046 = vadd.f32 %v2006, %v2045
      %v2047 = vpop.f32.mrb[0].mxu0
      %v2048 = vpop.f32.mrb[0].mxu0
      %v2049 = vpop.f32.mrb[0].mxu0
      %2050 = vdwg.mxu0
      %2051 = vmatprep.subr.bf16.mxu0 0
      %2052 = vmatpush1.bf16.msra.mxu0 %v1608
      %2053 = vmatprep.subr.bf16.mxu0 0
      %2054 = vmatpush1.bf16.msra.mxu0 %v1609
      %2055 = vmatprep.subr.bf16.mxu0 0
      %2056 = vmatpush1.bf16.msra.mxu0 %v1610
      %2057 = vmatprep.subr.bf16.mxu0 0
      %2058 = vmatpush1.bf16.msra.mxu0 %v1611
      %2059 = vmatprep.subr.bf16.mxu0 0
      %2060 = vmatpush1.bf16.msra.mxu0 %v1612
      %2061 = vmatprep.subr.bf16.mxu0 0
      %2062 = vmatpush1.bf16.msra.mxu0 %v1613
      %2063 = vmatprep.subr.bf16.mxu0 0
      %2064 = vmatpush1.bf16.msra.mxu0 %v1614
      %2065 = vmatprep.subr.bf16.mxu0 0
      %2066 = vmatpush1.bf16.msra.mxu0 %v1615
      %2067 = vmatprep.subr.bf16.mxu0 0
      %2068 = vmatpush1.bf16.msra.mxu0 %v1616
      %2069 = vmatprep.subr.bf16.mxu0 0
      %2070 = vmatpush1.bf16.msra.mxu0 %v1617
      %2071 = vmatprep.subr.bf16.mxu0 0
      %2072 = vmatpush1.bf16.msra.mxu0 %v1618
      %2073 = vmatprep.subr.bf16.mxu0 0
      %2074 = vmatpush1.bf16.msra.mxu0 %v1619
      %2075 = vmatprep.subr.bf16.mxu0 0
      %2076 = vmatpush1.bf16.msra.mxu0 %v1620
      %2077 = vmatprep.subr.bf16.mxu0 0
      %2078 = vmatpush1.bf16.msra.mxu0 %v1621
      %2079 = vmatprep.subr.bf16.mxu0 0
      %2080 = vmatpush1.bf16.msra.mxu0 %v1622
      %2081 = vmatprep.subr.bf16.mxu0 0
      %2082 = vmatpush1.bf16.msra.mxu0 %v1623
      %2083 = vmatprep.mubr.bf16.mxu0 %v906
      %2084 = vmatmul.mubr.bf16.gmra.mrb[0].mxu0 %v905
      %v2085 = vpop.f32.mrb[0].mxu0
      %v2086 = vadd.f32 %v2046, %v2085
      %v2087 = vpop.f32.mrb[0].mxu0
      %v2088 = vpop.f32.mrb[0].mxu0
      %v2089 = vpop.f32.mrb[0].mxu0
      %2090 = vdwg.mxu0
      %2091 = vmatprep.subr.bf16.mxu0 0
      %2092 = vmatpush1.bf16.msra.mxu0 %v1624
      %2093 = vmatprep.subr.bf16.mxu0 0
      %2094 = vmatpush1.bf16.msra.mxu0 %v1625
      %2095 = vmatprep.subr.bf16.mxu0 0
      %2096 = vmatpush1.bf16.msra.mxu0 %v1626
      %2097 = vmatprep.subr.bf16.mxu0 0
      %2098 = vmatpush1.bf16.msra.mxu0 %v1627
      %2099 = vmatprep.subr.bf16.mxu0 0
      %2100 = vmatpush1.bf16.msra.mxu0 %v1628
      %2101 = vmatprep.subr.bf16.mxu0 0
      %2102 = vmatpush1.bf16.msra.mxu0 %v1629
      %2103 = vmatprep.subr.bf16.mxu0 0
      %2104 = vmatpush1.bf16.msra.mxu0 %v1630
      %2105 = vmatprep.subr.bf16.mxu0 0
      %2106 = vmatpush1.bf16.msra.mxu0 %v1631
      %2107 = vmatprep.subr.bf16.mxu0 0
      %2108 = vmatpush1.bf16.msra.mxu0 %v1632
      %2109 = vmatprep.subr.bf16.mxu0 0
      %2110 = vmatpush1.bf16.msra.mxu0 %v1633
      %2111 = vmatprep.subr.bf16.mxu0 0
      %2112 = vmatpush1.bf16.msra.mxu0 %v1634
      %2113 = vmatprep.subr.bf16.mxu0 0
      %2114 = vmatpush1.bf16.msra.mxu0 %v1635
      %2115 = vmatprep.subr.bf16.mxu0 0
      %2116 = vmatpush1.bf16.msra.mxu0 %v1636
      %2117 = vmatprep.subr.bf16.mxu0 0
      %2118 = vmatpush1.bf16.msra.mxu0 %v1637
      %2119 = vmatprep.subr.bf16.mxu0 0
      %2120 = vmatpush1.bf16.msra.mxu0 %v1638
      %2121 = vmatprep.subr.bf16.mxu0 0
      %2122 = vmatpush1.bf16.msra.mxu0 %v1639
      %2123 = vmatprep.mubr.bf16.mxu0 %v908
      %2124 = vmatmul.mubr.bf16.gmra.mrb[0].mxu0 %v907
      %v2125 = vpop.f32.mrb[0].mxu0
      %v2126 = vadd.f32 %v2086, %v2125
      %v2127 = vpop.f32.mrb[0].mxu0
      %v2128 = vpop.f32.mrb[0].mxu0
      %v2129 = vpop.f32.mrb[0].mxu0
      %2130 = vdwg.mxu0
      %2131 = vmatprep.subr.bf16.mxu0 0
      %2132 = vmatpush1.bf16.msra.mxu0 %v1640
      %2133 = vmatprep.subr.bf16.mxu0 0
      %2134 = vmatpush1.bf16.msra.mxu0 %v1641
      %2135 = vmatprep.subr.bf16.mxu0 0
      %2136 = vmatpush1.bf16.msra.mxu0 %v1642
      %2137 = vmatprep.subr.bf16.mxu0 0
      %2138 = vmatpush1.bf16.msra.mxu0 %v1643
      %2139 = vmatprep.subr.bf16.mxu0 0
      %2140 = vmatpush1.bf16.msra.mxu0 %v1644
      %2141 = vmatprep.subr.bf16.mxu0 0
      %2142 = vmatpush1.bf16.msra.mxu0 %v1645
      %2143 = vmatprep.subr.bf16.mxu0 0
      %2144 = vmatpush1.bf16.msra.mxu0 %v1646
      %2145 = vmatprep.subr.bf16.mxu0 0
      %2146 = vmatpush1.bf16.msra.mxu0 %v1647
      %2147 = vmatprep.subr.bf16.mxu0 0
      %2148 = vmatpush1.bf16.msra.mxu0 %v1648
      %2149 = vmatprep.subr.bf16.mxu0 0
      %2150 = vmatpush1.bf16.msra.mxu0 %v1649
      %2151 = vmatprep.subr.bf16.mxu0 0
      %2152 = vmatpush1.bf16.msra.mxu0 %v1650
      %2153 = vmatprep.subr.bf16.mxu0 0
      %2154 = vmatpush1.bf16.msra.mxu0 %v1651
      %2155 = vmatprep.subr.bf16.mxu0 0
      %2156 = vmatpush1.bf16.msra.mxu0 %v1652
      %2157 = vmatprep.subr.bf16.mxu0 0
      %2158 = vmatpush1.bf16.msra.mxu0 %v1653
      %2159 = vmatprep.subr.bf16.mxu0 0
      %2160 = vmatpush1.bf16.msra.mxu0 %v1654
      %2161 = vmatprep.subr.bf16.mxu0 0
      %2162 = vmatpush1.bf16.msra.mxu0 %v1655
      %2163 = vmatprep.mubr.bf16.mxu0 %v910
      %2164 = vmatmul.mubr.bf16.gmra.mrb[0].mxu0 %v909
      %v2165 = vpop.f32.mrb[0].mxu0
      %v2166 = vadd.f32 %v2126, %v2165
      %v2167 = vpop.f32.mrb[0].mxu0
      %v2168 = vpop.f32.mrb[0].mxu0
      %v2169 = vpop.f32.mrb[0].mxu0
      %2170 = vdwg.mxu0
      %2171 = vmatprep.subr.bf16.mxu0 0
      %2172 = vmatpush1.bf16.msra.mxu0 %v1656
      %2173 = vmatprep.subr.bf16.mxu0 0
      %2174 = vmatpush1.bf16.msra.mxu0 %v1809
      %2175 = vmatprep.subr.bf16.mxu0 0
      %2176 = vmatpush1.bf16.msra.mxu0 0
      %2177 = vmatprep.subr.bf16.mxu0 0
      %2178 = vmatpush1.bf16.msra.mxu0 0
      %2179 = vmatprep.subr.bf16.mxu0 0
      %2180 = vmatpush1.bf16.msra.mxu0 0
      %2181 = vmatprep.subr.bf16.mxu0 0
      %2182 = vmatpush1.bf16.msra.mxu0 0
      %2183 = vmatprep.subr.bf16.mxu0 0
      %2184 = vmatpush1.bf16.msra.mxu0 0
      %2185 = vmatprep.subr.bf16.mxu0 0
      %2186 = vmatpush1.bf16.msra.mxu0 0
      %2187 = vmatprep.subr.bf16.mxu0 0
      %2188 = vmatpush1.bf16.msra.mxu0 0
      %2189 = vmatprep.subr.bf16.mxu0 0
      %2190 = vmatpush1.bf16.msra.mxu0 0
      %2191 = vmatprep.subr.bf16.mxu0 0
      %2192 = vmatpush1.bf16.msra.mxu0 0
      %2193 = vmatprep.subr.bf16.mxu0 0
      %2194 = vmatpush1.bf16.msra.mxu0 0
      %2195 = vmatprep.subr.bf16.mxu0 0
      %2196 = vmatpush1.bf16.msra.mxu0 0
      %2197 = vmatprep.subr.bf16.mxu0 0
      %2198 = vmatpush1.bf16.msra.mxu0 0
      %2199 = vmatprep.subr.bf16.mxu0 0
      %2200 = vmatpush1.bf16.msra.mxu0 0
      %2201 = vmatprep.subr.bf16.mxu0 0
      %2202 = vmatpush1.bf16.msra.mxu0 0
      %2203 = vmatprep.mubr.bf16.mxu0 0
      %2204 = vmatmul.mubr.bf16.gmra.mrb[0].mxu0 %v1805
      %v2205 = vpop.f32.mrb[0].mxu0
      %v2206 = vadd.f32 %v2166, %v2205
      %v2207 = vpop.f32.mrb[0].mxu0
      %v2208 = vpop.f32.mrb[0].mxu0
      %v2209 = vpop.f32.mrb[0].mxu0
      %2210 = vdwg.mxu0
      %s2211 = sld [smem:[#allocation3]]
      %vm2212 = vcmp.gt.f32.partialorder %v2206, 0.0
      %v2213 = vstv %s2211
      %v2214 = vmul.f32 %v2213, %v2206
      %v2215 = vsel %vm2212, %v2206, %v2214
      %v2216 = vpack.c.bf16 %v2215, %v2215
      %v2217 = vld [vmem:[%s4] sm:$0xff]
      %v2218 = vld [vmem:[%s4 + $0x8] sm:$0xf]
      %v2219 = vld [vmem:[%s4 + $0xc] sm:$0xff]
      %v2220 = vld [vmem:[%s4 + $0x14] sm:$0xf]
      %v2221 = vld [vmem:[%s4 + $0x18] sm:$0xff]
      %v2222 = vld [vmem:[%s4 + $0x20] sm:$0xf]
      %v2223 = vld [vmem:[%s4 + $0x24] sm:$0xff]
      %v2224 = vld [vmem:[%s4 + $0x2c] sm:$0xf]
      %v2225 = vld [vmem:[%s4 + $0x30] sm:$0xff]
      %v2226 = vld [vmem:[%s4 + $0x38] sm:$0xf]
      %v2227 = vld [vmem:[%s4 + $0x3c] sm:$0xff]
      %v2228 = vld [vmem:[%s4 + $0x44] sm:$0xf]
      %v2229 = vld [vmem:[%s4 + $0x48] sm:$0xff]
      %v2230 = vld [vmem:[%s4 + $0x50] sm:$0xf]
      %v2231 = vld [vmem:[%s4 + $0x54] sm:$0xff]
      %v2232 = vld [vmem:[%s4 + $0x5c] sm:$0xf]
      %v2233 = vld [vmem:[%s4 + $0x60] sm:$0xff]
      %v2234 = vld [vmem:[%s4 + $0x68] sm:$0xf]
      %v2235 = vld [vmem:[%s4 + $0x6c] sm:$0xff]
      %v2236 = vld [vmem:[%s4 + $0x74] sm:$0xf]
      %v2237 = vld [vmem:[%s4 + $0x78] sm:$0xff]
      %v2238 = vld [vmem:[%s4 + $0x80] sm:$0xf]
      %v2239 = vld [vmem:[%s4 + $0x84] sm:$0xff]
      %v2240 = vld [vmem:[%s4 + $0x8c] sm:$0xf]
      %v2241 = vld [vmem:[%s4 + $0x90] sm:$0xff]
      %v2242 = vld [vmem:[%s4 + $0x98] sm:$0xf]
      %v2243 = vld [vmem:[%s4 + $0x9c] sm:$0xff]
      %v2244 = vld [vmem:[%s4 + $0xa4] sm:$0xf]
      %v2245 = vld [vmem:[%s4 + $0xa8] sm:$0xff]
      %v2246 = vld [vmem:[%s4 + $0xb0] sm:$0xf]
      %v2247 = vld [vmem:[%s4 + $0xb4] sm:$0xff]
      %v2248 = vld [vmem:[%s4 + $0xbc] sm:$0xf]
      %v2249 = vld [vmem:[%s5] sm:$0x7]
      %v2251 = vlaneseq
      %v2252 = vshrl.u32 %v2251, 7
      %v2253 = vsub.s32 0, %v2252
      %v2254 = vrot.slane %v2249, %v2253
      %v2255 = vlaneseq
      %v2256 = vshrl.u32 %v2255, 7
      %v2257 = vsub.s32 1, %v2256
      %v2258 = vrot.slane %v2249, %v2257
      %v2259 = vlaneseq
      %v2260 = vshrl.u32 %v2259, 7
      %v2261 = vsub.s32 2, %v2260
      %v2262 = vrot.slane %v2249, %v2261
      %v2298 = vunpack.c.l.b16 %v2217
      %v2299 = vunpack.c.h.b16 %v2217
      %v2300 = vunpack.c.l.b16 %v2218
      %v2301 = vunpack.c.l.b16 %v2219
      %v2302 = vunpack.c.h.b16 %v2219
      %v2303 = vunpack.c.l.b16 %v2220
      %v2304 = vunpack.c.l.b16 %v2221
      %v2305 = vunpack.c.h.b16 %v2221
      %v2306 = vunpack.c.l.b16 %v2222
      %v2307 = vunpack.c.l.b16 %v2223
      %v2308 = vunpack.c.h.b16 %v2223
      %v2309 = vunpack.c.l.b16 %v2224
      %v2310 = vunpack.c.l.b16 %v2225
      %v2311 = vunpack.c.h.b16 %v2225
      %v2312 = vunpack.c.l.b16 %v2226
      %v2313 = vunpack.c.l.b16 %v2227
      %v2314 = vunpack.c.h.b16 %v2227
      %v2315 = vunpack.c.l.b16 %v2228
      %v2316 = vunpack.c.l.b16 %v2229
      %v2317 = vunpack.c.h.b16 %v2229
      %v2318 = vunpack.c.l.b16 %v2230
      %v2319 = vunpack.c.l.b16 %v2231
      %v2320 = vunpack.c.h.b16 %v2231
      %v2321 = vunpack.c.l.b16 %v2232
      %v2322 = vunpack.c.l.b16 %v2233
      %v2323 = vunpack.c.h.b16 %v2233
      %v2324 = vunpack.c.l.b16 %v2234
      %v2325 = vunpack.c.l.b16 %v2235
      %v2326 = vunpack.c.h.b16 %v2235
      %v2327 = vunpack.c.l.b16 %v2236
      %v2328 = vunpack.c.l.b16 %v2237
      %v2329 = vunpack.c.h.b16 %v2237
      %v2330 = vunpack.c.l.b16 %v2238
      %v2331 = vunpack.c.l.b16 %v2239
      %v2332 = vunpack.c.h.b16 %v2239
      %v2333 = vunpack.c.l.b16 %v2240
      %v2334 = vunpack.c.l.b16 %v2241
      %v2335 = vunpack.c.h.b16 %v2241
      %v2336 = vunpack.c.l.b16 %v2242
      %v2337 = vunpack.c.l.b16 %v2243
      %v2338 = vunpack.c.h.b16 %v2243
      %v2339 = vunpack.c.l.b16 %v2244
      %v2340 = vunpack.c.l.b16 %v2245
      %v2341 = vunpack.c.h.b16 %v2245
      %v2342 = vunpack.c.l.b16 %v2246
      %v2343 = vunpack.c.l.b16 %v2247
      %v2344 = vunpack.c.h.b16 %v2247
      %v2345 = vunpack.c.l.b16 %v2248
      %v2346 = vpack.c.b16 %v2301, %v2298
      %v2347 = vpack.c.b16 %v2302, %v2299
      %v2348 = vpack.c.b16 %v2303, %v2300
      %v2349 = vpack.c.b16 %v2307, %v2304
      %v2350 = vpack.c.b16 %v2308, %v2305
      %v2351 = vpack.c.b16 %v2309, %v2306
      %v2352 = vpack.c.b16 %v2313, %v2310
      %v2353 = vpack.c.b16 %v2314, %v2311
      %v2354 = vpack.c.b16 %v2315, %v2312
      %v2355 = vpack.c.b16 %v2319, %v2316
      %v2356 = vpack.c.b16 %v2320, %v2317
      %v2357 = vpack.c.b16 %v2321, %v2318
      %v2358 = vpack.c.b16 %v2325, %v2322
      %v2359 = vpack.c.b16 %v2326, %v2323
      %v2360 = vpack.c.b16 %v2327, %v2324
      %v2361 = vpack.c.b16 %v2331, %v2328
      %v2362 = vpack.c.b16 %v2332, %v2329
      %v2363 = vpack.c.b16 %v2333, %v2330
      %v2364 = vpack.c.b16 %v2337, %v2334
      %v2365 = vpack.c.b16 %v2338, %v2335
      %v2366 = vpack.c.b16 %v2339, %v2336
      %v2367 = vpack.c.b16 %v2343, %v2340
      %v2368 = vpack.c.b16 %v2344, %v2341
      %v2369 = vpack.c.b16 %v2345, %v2342
      %2394 = vmatprep.subr.bf16.mxu0 %v2347
      %2395 = vmatpush1.bf16.msra.mxu0 %v2346
      %2396 = vmatprep.subr.bf16.mxu0 %v2350
      %2397 = vmatpush1.bf16.msra.mxu0 %v2349
      %2398 = vmatprep.subr.bf16.mxu0 %v2353
      %2399 = vmatpush1.bf16.msra.mxu0 %v2352
      %2400 = vmatprep.subr.bf16.mxu0 %v2356
      %2401 = vmatpush1.bf16.msra.mxu0 %v2355
      %2402 = vmatprep.subr.bf16.mxu0 %v2359
      %2403 = vmatpush1.bf16.msra.mxu0 %v2358
      %2404 = vmatprep.subr.bf16.mxu0 %v2362
      %2405 = vmatpush1.bf16.msra.mxu0 %v2361
      %2406 = vmatprep.subr.bf16.mxu0 %v2365
      %2407 = vmatpush1.bf16.msra.mxu0 %v2364
      %2408 = vmatprep.subr.bf16.mxu0 %v2368
      %2409 = vmatpush1.bf16.msra.mxu0 %v2367
      %2410 = vmatprep.subr.bf16.mxu0 0
      %2411 = vmatpush1.bf16.msra.mxu0 0
      %2412 = vmatprep.subr.bf16.mxu0 0
      %2413 = vmatpush1.bf16.msra.mxu0 0
      %2414 = vmatprep.subr.bf16.mxu0 0
      %2415 = vmatpush1.bf16.msra.mxu0 0
      %2416 = vmatprep.subr.bf16.mxu0 0
      %2417 = vmatpush1.bf16.msra.mxu0 0
      %2418 = vmatprep.subr.bf16.mxu0 0
      %2419 = vmatpush1.bf16.msra.mxu0 0
      %2420 = vmatprep.subr.bf16.mxu0 0
      %2421 = vmatpush1.bf16.msra.mxu0 0
      %2422 = vmatprep.subr.bf16.mxu0 0
      %2423 = vmatpush1.bf16.msra.mxu0 0
      %2424 = vmatprep.subr.bf16.mxu0 0
      %2425 = vmatpush1.bf16.msra.mxu0 0
      %2426 = vmatprep.mubr.bf16.mxu0 0
      %2427 = vmatmul.mubr.bf16.gmra.mrb[0].mxu0 %v2216
      %v2428 = vpop.f32.mrb[0].mxu0
      %v2429 = vadd.f32 %v2254, %v2428
      %v2430 = vpop.f32.mrb[0].mxu0
      %v2431 = vadd.f32 %v2258, %v2430
      %v2432 = vpop.f32.mrb[0].mxu0
      %v2433 = vpop.f32.mrb[0].mxu0
      %2434 = vdwg.mxu0
      %2435 = vmatprep.subr.bf16.mxu0 0
      %2436 = vmatpush1.bf16.msra.mxu0 %v2348
      %2437 = vmatprep.subr.bf16.mxu0 0
      %2438 = vmatpush1.bf16.msra.mxu0 %v2351
      %2439 = vmatprep.subr.bf16.mxu0 0
      %2440 = vmatpush1.bf16.msra.mxu0 %v2354
      %2441 = vmatprep.subr.bf16.mxu0 0
      %2442 = vmatpush1.bf16.msra.mxu0 %v2357
      %2443 = vmatprep.subr.bf16.mxu0 0
      %2444 = vmatpush1.bf16.msra.mxu0 %v2360
      %2445 = vmatprep.subr.bf16.mxu0 0
      %2446 = vmatpush1.bf16.msra.mxu0 %v2363
      %2447 = vmatprep.subr.bf16.mxu0 0
      %2448 = vmatpush1.bf16.msra.mxu0 %v2366
      %2449 = vmatprep.subr.bf16.mxu0 0
      %2450 = vmatpush1.bf16.msra.mxu0 %v2369
      %2451 = vmatprep.subr.bf16.mxu0 0
      %2452 = vmatpush1.bf16.msra.mxu0 0
      %2453 = vmatprep.subr.bf16.mxu0 0
      %2454 = vmatpush1.bf16.msra.mxu0 0
      %2455 = vmatprep.subr.bf16.mxu0 0
      %2456 = vmatpush1.bf16.msra.mxu0 0
      %2457 = vmatprep.subr.bf16.mxu0 0
      %2458 = vmatpush1.bf16.msra.mxu0 0
      %2459 = vmatprep.subr.bf16.mxu0 0
      %2460 = vmatpush1.bf16.msra.mxu0 0
      %2461 = vmatprep.subr.bf16.mxu0 0
      %2462 = vmatpush1.bf16.msra.mxu0 0
      %2463 = vmatprep.subr.bf16.mxu0 0
      %2464 = vmatpush1.bf16.msra.mxu0 0
      %2465 = vmatprep.subr.bf16.mxu0 0
      %2466 = vmatpush1.bf16.msra.mxu0 0
      %2467 = vmatprep.mubr.bf16.mxu0 0
      %2468 = vmatmul.mubr.bf16.gmra.mrb[0].mxu0 %v2216
      %v2469 = vpop.f32.mrb[0].mxu0
      %v2470 = vadd.f32 %v2262, %v2469
      %v2471 = vpop.f32.mrb[0].mxu0
      %v2472 = vpop.f32.mrb[0].mxu0
      %v2473 = vpop.f32.mrb[0].mxu0
      %2474 = vdwg.mxu0
      %2475 = vst [vmem:[%s285] sm:$0xff] %v2215
      %2476 = vst [vmem:[%s290] sm:$0xff] %v2429
      %2477 = vst [vmem:[%s290 + $0x8] sm:$0xff] %v2431
      %vm2478 = vcmask 523264
      %2479 = vst.msk [vmem:[%s290 + $0x10] sm:$0xff] %vm2478, %v2470
      %p2480 = scmp.lt.s32.totalorder %s20, 1
      %s2481 = scalar_select %p2480, %s20, 1
      %s2482 = smul.addr %s2481, 8
      %s2483 = scalar_lea.vmem %s6, %s2482
      %p2484 = scmp.lt.s32.totalorder %s20, 1
      %s2485 = scalar_select %p2484, %s20, 1
      %s2486 = smul.addr %s2485, 3
      %s2487 = smul.addr %s2486, 8
      %s2488 = scalar_lea.vmem %s7, %s2487
      // Predicated region
      $region45: #{cnn_forward.1} parent=43 // pred_check
        %p2489 = pneg %p169
      $region46: #{cnn_forward.1} parent=43 // pred_check_branch
        %2491 = sbr.rel (%p2489) target = $region48
      $region47: #{cnn_forward.1} parent=43 // pred_region
        _
      $region48: #{cnn_forward.1} parent=43 // pred_fallthru
        _
      // Predicated region
      $region49: #{cnn_forward.1} parent=43 // pred_check
        %p2492 = pneg %p195
      $region50: #{cnn_forward.1} parent=43 // pred_check_branch
        %2494 = sbr.rel (%p2492) target = $region52
      $region51: #{cnn_forward.1} parent=43 // pred_region
        _
      $region52: #{cnn_forward.1} parent=43 // pred_fallthru
        _
    $region44: #{cnn_forward.1} parent=5 // pred_fallthru
      _
    %p2495 = scmp.le.s32.totalorder 2, %s15
    // Predicated region
    $region53: #{cnn_forward.1} parent=5 // pred_check
      %p2496 = pneg %p2495
    $region54: #{cnn_forward.1} parent=5 // pred_check_branch
      %2498 = sbr.rel (%p2496) target = $region56
    $region55: #{cnn_forward.1} parent=5 // pred_region
      %s2499 = ssub.s32 %s15, 2
      // Predicated region
      $region57: #{cnn_forward.1} parent=55 // pred_check
        %p2500 = pneg %p175
      $region58: #{cnn_forward.1} parent=55 // pred_check_branch
        %2502 = sbr.rel (%p2500) target = $region60
      $region59: #{cnn_forward.1} parent=55 // pred_region
        %p2503 = scmp.lt.s32.totalorder %s21, 1
        %s2504 = scalar_select %p2503, %s21, 1
        %s2505 = smul.addr %s2504, 8
        %s2506 = scalar_lea.vmem %s6, %s2505
      $region60: #{cnn_forward.1} parent=55 // pred_fallthru
        _
      // Predicated region
      $region61: #{cnn_forward.1} parent=55 // pred_check
        %p2507 = pneg %p201
      $region62: #{cnn_forward.1} parent=55 // pred_check_branch
        %2509 = sbr.rel (%p2507) target = $region64
      $region63: #{cnn_forward.1} parent=55 // pred_region
        %p2510 = scmp.lt.s32.totalorder %s21, 1
        %s2511 = scalar_select %p2510, %s21, 1
        %s2512 = smul.addr %s2511, 3
        %s2513 = smul.addr %s2512, 8
        %s2514 = scalar_lea.vmem %s7, %s2513
      $region64: #{cnn_forward.1} parent=55 // pred_fallthru
        _
    $region56: #{cnn_forward.1} parent=5 // pred_fallthru
      _
  $region6: #{cnn_forward.1} parent=0 // loop_footer
    %s19 = sadd.s32 1, %s15
  $region7: #{cnn_forward.1} parent=0 // loop_footer_branch
    %14 = sbr.rel target = $region3
  $region8: #{cnn_forward.1} parent=0 // loop_exit
    _

</llo_original>
